<compile_context>
chip_gen: v7x
topology: tpu7x:2x2x1
jax: 0.10.0
libtpu: 0.0.40
codegen_flags: <defaults>
</compile_context>

<pallas_src>
import functools

import jax
import jax.numpy as jnp
from jax.experimental import pallas as pl
from jax.experimental.pallas import tpu as pltpu


_VMEM_LIMIT = 32 * 1024 * 1024  # explicit scoped-VMEM budget (safe on v5e/v6e/v7x)


# ----------------------------------------------------------------------------
# Tiling helper
# ----------------------------------------------------------------------------
def _pick_tile(dim, target, quantum):
    """Largest tile <= target that divides dim (multiples of `quantum`), else full dim."""
    if dim <= target:
        return dim
    t = (target // quantum) * quantum
    while t >= quantum:
        if dim % t == 0:
            return t
        t -= quantum
    return dim


# ----------------------------------------------------------------------------
# Tiled linear: y = act(x @ w + b)
# ----------------------------------------------------------------------------
def _linear_kernel(x_ref, w_ref, b_ref, o_ref, acc_ref, *, activation):
    @pl.when(pl.program_id(2) == 0)
    def _():
        acc_ref[...] = jnp.zeros_like(acc_ref)

    acc_ref[...] += jnp.dot(x_ref[...], w_ref[...],
                            preferred_element_type=jnp.float32)

    @pl.when(pl.program_id(2) == pl.num_programs(2) - 1)
    def _():
        y = acc_ref[...] + b_ref[...].astype(jnp.float32)
        if activation == "gelu":
            # TODO(synk): RoBERTa uses erf-GELU; tanh approximation (EUP) used here.
            y = jax.nn.gelu(y, approximate=True)
        o_ref[...] = y.astype(o_ref.dtype)


def linear(x, w, b, activation=None, out_dtype=jnp.bfloat16):
    M, K = x.shape
    K2, N = w.shape
    assert K2 == K
    # bf16 operands: sublane quantum 16 (2 rows per sublane) keeps stores unmasked.
    tm = _pick_tile(M, 512, 16)
    tn = _pick_tile(N, 512, 128)
    tk = _pick_tile(K, 1024, 128)
    grid = (M // tm, N // tn, K // tk)
    b2 = b.reshape(1, N).astype(jnp.float32)
    # TODO(synk): if profiling shows exposed weight DMA at k-block boundaries,
    # add pipeline_mode=pl.Buffered(3) on the weight BlockSpec.
    return pl.pallas_call(
        functools.partial(_linear_kernel, activation=activation),
        grid=grid,
        in_specs=[
            pl.BlockSpec((tm, tk), lambda i, j, k: (i, k)),
            pl.BlockSpec((tk, tn), lambda i, j, k: (k, j)),
            pl.BlockSpec((1, tn), lambda i, j, k: (0, j)),
        ],
        out_specs=pl.BlockSpec((tm, tn), lambda i, j, k: (i, j)),
        out_shape=jax.ShapeDtypeStruct((M, N), out_dtype),
        scratch_shapes=[pltpu.VMEM((tm, tn), jnp.float32)],
        compiler_params=pltpu.CompilerParams(
            dimension_semantics=("parallel", "parallel", "arbitrary"),
            vmem_limit_bytes=_VMEM_LIMIT),
    )(x, w, b2)


# ----------------------------------------------------------------------------
# Fused linear + residual add + LayerNorm: y = LN(x @ w + b + res)
# ----------------------------------------------------------------------------
def _linear_res_ln_kernel(x_ref, w_ref, b_ref, res_ref, g_ref, bt_ref,
                          o_ref, acc_ref, *, eps):
    @pl.when(pl.program_id(1) == 0)
    def _():
        acc_ref[...] = jnp.zeros_like(acc_ref)

    acc_ref[...] += jnp.dot(x_ref[...], w_ref[...],
                            preferred_element_type=jnp.float32)

    @pl.when(pl.program_id(1) == pl.num_programs(1) - 1)
    def _():
        y = (acc_ref[...] + b_ref[...].astype(jnp.float32)
             + res_ref[...].astype(jnp.float32))
        mean = jnp.mean(y, axis=-1, keepdims=True)
        var = jnp.mean((y - mean) ** 2, axis=-1, keepdims=True)
        norm = (y - mean) * jax.lax.rsqrt(var + eps)
        o_ref[...] = (norm * g_ref[...].astype(jnp.float32)
                      + bt_ref[...].astype(jnp.float32)).astype(o_ref.dtype)


def linear_residual_ln(x, w, b, res, gamma, beta, eps=1e-5,
                       out_dtype=jnp.bfloat16):
    M, K = x.shape
    K2, N = w.shape
    assert K2 == K and res.shape == (M, N)
    tm = _pick_tile(M, 512, 16)
    tk = _pick_tile(K, 1024, 128)
    grid = (M // tm, K // tk)
    b2 = b.reshape(1, N).astype(jnp.float32)
    g2 = gamma.reshape(1, N).astype(jnp.float32)
    bt2 = beta.reshape(1, N).astype(jnp.float32)
    return pl.pallas_call(
        functools.partial(_linear_res_ln_kernel, eps=eps),
        grid=grid,
        in_specs=[
            pl.BlockSpec((tm, tk), lambda i, k: (i, k)),
            pl.BlockSpec((tk, N), lambda i, k: (k, 0)),
            pl.BlockSpec((1, N), lambda i, k: (0, 0)),
            pl.BlockSpec((tm, N), lambda i, k: (i, 0)),
            pl.BlockSpec((1, N), lambda i, k: (0, 0)),
            pl.BlockSpec((1, N), lambda i, k: (0, 0)),
        ],
        out_specs=pl.BlockSpec((tm, N), lambda i, k: (i, 0)),
        out_shape=jax.ShapeDtypeStruct((M, N), out_dtype),
        scratch_shapes=[pltpu.VMEM((tm, N), jnp.float32)],
        compiler_params=pltpu.CompilerParams(
            dimension_semantics=("parallel", "arbitrary"),
            vmem_limit_bytes=_VMEM_LIMIT),
    )(x, w, b2, res, g2, bt2)


# ----------------------------------------------------------------------------
# Row-tiled LayerNorm (no residual) for the embedding LN
# ----------------------------------------------------------------------------
def _layernorm_kernel(x_ref, g_ref, b_ref, o_ref, *, eps):
    x = x_ref[...].astype(jnp.float32)
    mean = jnp.mean(x, axis=-1, keepdims=True)
    var = jnp.mean((x - mean) ** 2, axis=-1, keepdims=True)
    norm = (x - mean) * jax.lax.rsqrt(var + eps)
    o_ref[...] = (norm * g_ref[...].astype(jnp.float32)
                  + b_ref[...].astype(jnp.float32)).astype(o_ref.dtype)


def layernorm(x, gamma, beta, eps=1e-5, out_dtype=jnp.bfloat16):
    M, H = x.shape
    tm = _pick_tile(M, 512, 16)
    g2 = gamma.reshape(1, H).astype(jnp.float32)
    b2 = beta.reshape(1, H).astype(jnp.float32)
    return pl.pallas_call(
        functools.partial(_layernorm_kernel, eps=eps),
        grid=(M // tm,),
        in_specs=[
            pl.BlockSpec((tm, H), lambda i: (i, 0)),
            pl.BlockSpec((1, H), lambda i: (0, 0)),
            pl.BlockSpec((1, H), lambda i: (0, 0)),
        ],
        out_specs=pl.BlockSpec((tm, H), lambda i: (i, 0)),
        out_shape=jax.ShapeDtypeStruct((M, H), out_dtype),
        compiler_params=pltpu.CompilerParams(
            dimension_semantics=("parallel",),
            vmem_limit_bytes=_VMEM_LIMIT),
    )(x, g2, b2)


# ----------------------------------------------------------------------------
# Attention straight from the fused-QKV buffer.
#   qkv: (B, S, 3H), H = heads*Dh.  Grid = (batch, head, q-tile).
#   BlockSpec index maps pick the per-head column slices (Q at block h,
#   K at heads+h, V at 2*heads+h); output is written directly into the
#   merged (B, S, heads*Dh) layout -> zero head split/merge transposes.
#   The 1/sqrt(Dh) scale is folded into the Q projection weights.
# ----------------------------------------------------------------------------
def _attention_kernel(q_ref, k_ref, v_ref, o_ref):
    q = q_ref[...]                                   # (tq, Dh) bf16, pre-scaled
    k = k_ref[...]                                   # (S, Dh) bf16
    v = v_ref[...]                                   # (S, Dh) bf16
    # TODO(synk): K is contracted on its lane dim (implicit transpose through
    # the XLU); pre-transposing K to (Dh, S) in the QKV path would remove it.
    s = jax.lax.dot_general(q, k, (((1,), (1,)), ((), ())),
                            preferred_element_type=jnp.float32)   # (tq, S)
    m = jnp.max(s, axis=-1, keepdims=True)
    p = jnp.exp(s - m)
    denom = jnp.sum(p, axis=-1, keepdims=True)
    p = p * pl.reciprocal(denom, approx=True)
    out = jnp.dot(p.astype(v.dtype), v, preferred_element_type=jnp.float32)
    o_ref[...] = out.astype(o_ref.dtype)


def attention(qkv, *, heads):
    B, S, threeH = qkv.shape
    H = threeH // 3
    Dh = H // heads
    # TODO(synk): Dh < 128 (e.g. roberta-base Dh=64) needs head-grouped column
    # blocks to stay lane-aligned; this path requires a lane-multiple head dim.
    assert Dh % 128 == 0, "head dim must be a multiple of 128 for BlockSpec head split"
    tq = _pick_tile(S, 256, 16)
    grid = (B, heads, S // tq)
    q_spec = pl.BlockSpec((None, tq, Dh), lambda b, h, qi: (b, qi, h))
    k_spec = pl.BlockSpec((None, S, Dh), lambda b, h, qi: (b, 0, heads + h))
    v_spec = pl.BlockSpec((None, S, Dh), lambda b, h, qi: (b, 0, 2 * heads + h))
    o_spec = pl.BlockSpec((None, tq, Dh), lambda b, h, qi: (b, qi, h))
    return pl.pallas_call(
        _attention_kernel,
        grid=grid,
        in_specs=[q_spec, k_spec, v_spec],
        out_specs=o_spec,
        out_shape=jax.ShapeDtypeStruct((B, S, H), jnp.bfloat16),
        compiler_params=pltpu.CompilerParams(
            dimension_semantics=("parallel", "parallel", "parallel"),
            vmem_limit_bytes=_VMEM_LIMIT),
    )(qkv, qkv, qkv)


# ----------------------------------------------------------------------------
# Model wrapper (glue: embedding gather, free reshapes, tiny fc)
# ----------------------------------------------------------------------------
def init_params(key, *, vocab, max_pos, hidden, heads, ffn, layers, n_classes):
    def nrm(k, shape, dtype=jnp.bfloat16):
        return (jax.random.normal(k, shape, jnp.float32) * 0.02).astype(dtype)

    dh = hidden // heads
    q_scale = 1.0 / (dh ** 0.5)          # attention scale folded into Q projection

    keys = iter(jax.random.split(key, 4 + layers * 4))
    p = {
        # bf16 embeddings: halves the HBM traffic of the gather / positional add.
        "word_emb": nrm(next(keys), (vocab, hidden), jnp.bfloat16),
        "pos_emb": nrm(next(keys), (max_pos, hidden), jnp.bfloat16),
        "emb_ln_g": jnp.ones((hidden,), jnp.float32),
        "emb_ln_b": jnp.zeros((hidden,), jnp.float32),
        "fc_w": nrm(next(keys), (hidden, n_classes), jnp.float32),
        "fc_b": jnp.zeros((n_classes,), jnp.float32),
        "layers": [],
    }
    for _ in range(layers):
        # Fused QKV weight: columns [0:H)=Q (pre-scaled by 1/sqrt(Dh)),
        # [H:2H)=K, [2H:3H)=V.
        w_qkv = nrm(next(keys), (hidden, 3 * hidden))
        w_qkv = w_qkv.at[:, :hidden].multiply(q_scale)
        b_qkv = jnp.zeros((3 * hidden,), jnp.float32)   # Q bias would be scaled too
        lp = {
            "w_qkv": w_qkv,
            "b_qkv": b_qkv,
            "wo": nrm(next(keys), (hidden, hidden)),
            "bo": jnp.zeros((hidden,), jnp.float32),
            "ln1_g": jnp.ones((hidden,), jnp.float32),
            "ln1_b": jnp.zeros((hidden,), jnp.float32),
            "w1": nrm(next(keys), (hidden, ffn)),
            "b1": jnp.zeros((ffn,), jnp.float32),
            "w2": nrm(next(keys), (ffn, hidden)),
            "b2": jnp.zeros((hidden,), jnp.float32),
            "ln2_g": jnp.ones((hidden,), jnp.float32),
            "ln2_b": jnp.zeros((hidden,), jnp.float32),
        }
        p["layers"].append(lp)
    return p


def table_model_forward(ids, params, *, heads):
    # TODO(synk): pretrained roberta-base weights (HF AutoModel) cannot be loaded;
    # encoder weights are deterministic synthetic initializations of the same
    # structure. No attention_mask handling (the reference forward passes ids only).
    B, S = ids.shape
    H = params["word_emb"].shape[1]
    M = B * S

    # Embedding gather + positional add is glue; LN is a Pallas kernel.
    h = params["word_emb"][ids] + params["pos_emb"][jnp.arange(S)][None, :, :]
    h2 = layernorm(h.reshape(M, H), params["emb_ln_g"], params["emb_ln_b"])

    for lp in params["layers"]:
        # Fused QKV projection: single (M,H) x (H,3H) matmul.
        qkv = linear(h2, lp["w_qkv"], lp["b_qkv"])              # (M, 3H) bf16
        # Head split/merge handled entirely by BlockSpec indexing; the
        # reshapes below are metadata-only (row-major contiguous, no HBM copy).
        attn = attention(qkv.reshape(B, S, 3 * H), heads=heads)  # (B, S, H)
        # Output projection fused with residual add + LayerNorm.
        h2 = linear_residual_ln(attn.reshape(M, H), lp["wo"], lp["bo"], h2,
                                lp["ln1_g"], lp["ln1_b"])
        # FFN: up-proj (+gelu), then down-proj fused with residual + LN.
        ff = linear(h2, lp["w1"], lp["b1"], activation="gelu")
        h2 = linear_residual_ln(ff, lp["w2"], lp["b2"], h2,
                                lp["ln2_g"], lp["ln2_b"])

    enc = h2.reshape(B, S, H)[:, 0, :]                           # [CLS], (B, H)

    # Final fc (hidden -> 2) on B rows: plain XLA per perf review -- a 1-step
    # Pallas grid with a sublane-2 masked-store output is pure fixed overhead.
    logits = jnp.dot(enc.astype(jnp.float32), params["fc_w"]) + params["fc_b"]
    return logits


if __name__ == "__main__":
    B, S = 2, 8
    VOCAB, MAX_POS = 64, 16
    # Dh = HIDDEN // HEADS must be a multiple of 128 for the BlockSpec head split.
    HIDDEN, HEADS, FFN, LAYERS, N_CLASSES = 256, 2, 512, 2, 2

    key = jax.random.PRNGKey(0)
    k_ids, k_params = jax.random.split(key)
    x = jax.random.randint(k_ids, (B, S), 0, VOCAB, dtype=jnp.int32)  # token ids
    params = init_params(k_params, vocab=VOCAB, max_pos=MAX_POS, hidden=HIDDEN,
                         heads=HEADS, ffn=FFN, layers=LAYERS,
                         n_classes=N_CLASSES)

    fwd = jax.jit(functools.partial(table_model_forward, heads=HEADS))
    logits = fwd(x, params)
    jax.block_until_ready(logits)
    assert logits.shape == (B, N_CLASSES) and logits.dtype == jnp.float32
    print("KERNEL_OK")
</pallas_src>

<mosaic_0001>
module attributes {stable_mosaic.version = 11 : i64} {
  func.func @_linear_kernel(%arg0: i32, %arg1: i32, %arg2: i32, %arg3: memref<16x256xbf16, #tpu.memory_space<vmem>>, %arg4: memref<256x384xbf16, #tpu.memory_space<vmem>>, %arg5: memref<1x384xf32, #tpu.memory_space<vmem>>, %arg6: memref<16x384xbf16, #tpu.memory_space<vmem>>, %arg7: memref<16x384xf32, #tpu.memory_space<vmem>>) attributes {dimension_semantics = [#tpu.dimension_semantics<parallel>, #tpu.dimension_semantics<parallel>, #tpu.dimension_semantics<arbitrary>], iteration_bounds = array<i64: 1, 2, 1>, scalar_prefetch = 0 : i64, scratch_operands = 1 : i64, tpu.core_type = #tpu.core_type<tc>, window_params = [{transform_indices = @transform_0, window_bounds = array<i64: 16, 256>}, {transform_indices = @transform_1, window_bounds = array<i64: 256, 384>}, {transform_indices = @transform_2, window_bounds = array<i64: 1, 384>}, {transform_indices = @transform_3, window_bounds = array<i64: 16, 384>}]} {
    %c0_i32 = arith.constant 0 : i32
    %0 = arith.cmpi eq, %arg2, %c0_i32 : i32
    %1 = arith.extui %0 : i1 to i32
    %c0_i32_0 = arith.constant 0 : i32
    %2 = arith.cmpi ne, %1, %c0_i32_0 : i32
    scf.if %2 {
      %cst_10 = arith.constant 0.000000e+00 : f32
      %12 = vector.broadcast %cst_10 : f32 to vector<16x384xf32>
      %c0_11 = arith.constant 0 : index
      %c0_12 = arith.constant 0 : index
      %13 = vector.load %arg7[%c0_11, %c0_12] : memref<16x384xf32, #tpu.memory_space<vmem>>, vector<16x384xf32>
      tpu.vector_store %arg7[%c0_11, %c0_12], %12 {strides = array<i32>} : memref<16x384xf32, #tpu.memory_space<vmem>>, vector<16x384xf32>,
    } else {
    }
    %c0 = arith.constant 0 : index
    %c0_1 = arith.constant 0 : index
    %3 = vector.load %arg7[%c0, %c0_1] : memref<16x384xf32, #tpu.memory_space<vmem>>, vector<16x384xf32>
    %c0_2 = arith.constant 0 : index
    %c0_3 = arith.constant 0 : index
    %4 = vector.load %arg3[%c0_2, %c0_3] : memref<16x256xbf16, #tpu.memory_space<vmem>>, vector<16x256xbf16>
    %c0_4 = arith.constant 0 : index
    %c0_5 = arith.constant 0 : index
    %5 = vector.load %arg4[%c0_4, %c0_5] : memref<256x384xbf16, #tpu.memory_space<vmem>>, vector<256x384xbf16>
    %cst = arith.constant dense<0.000000e+00> : vector<16x384xf32>
    %6 = tpu.matmul %4, %5, %cst {dimension_numbers = #tpu.dot_dimension_numbers<[1], [0], [0], [1], [0, 0, 1, 1], [], []>} : vector<16x256xbf16>, vector<256x384xbf16>, vector<16x384xf32> -> vector<16x384xf32>
    %7 = arith.addf %3, %6 : vector<16x384xf32>
    %c0_6 = arith.constant 0 : index
    %c0_7 = arith.constant 0 : index
    %8 = vector.load %arg7[%c0_6, %c0_7] : memref<16x384xf32, #tpu.memory_space<vmem>>, vector<16x384xf32>
    tpu.vector_store %arg7[%c0_6, %c0_7], %7 {strides = array<i32>} : memref<16x384xf32, #tpu.memory_space<vmem>>, vector<16x384xf32>,
    %c0_i32_8 = arith.constant 0 : i32
    %9 = arith.cmpi eq, %arg2, %c0_i32_8 : i32
    %10 = arith.extui %9 : i1 to i32
    %c0_i32_9 = arith.constant 0 : i32
    %11 = arith.cmpi ne, %10, %c0_i32_9 : i32
    scf.if %11 {
      %c0_10 = arith.constant 0 : index
      %c0_11 = arith.constant 0 : index
      %12 = vector.load %arg7[%c0_10, %c0_11] : memref<16x384xf32, #tpu.memory_space<vmem>>, vector<16x384xf32>
      %c0_12 = arith.constant 0 : index
      %c0_13 = arith.constant 0 : index
      %13 = vector.load %arg5[%c0_12, %c0_13] : memref<1x384xf32, #tpu.memory_space<vmem>>, vector<1x384xf32>
      %14 = vector.broadcast %13 : vector<1x384xf32> to vector<16x384xf32>
      %15 = arith.addf %12, %14 : vector<16x384xf32>
      %16 = arith.truncf %15 : vector<16x384xf32> to vector<16x384xbf16>
      %c0_14 = arith.constant 0 : index
      %c0_15 = arith.constant 0 : index
      %17 = vector.load %arg6[%c0_14, %c0_15] : memref<16x384xbf16, #tpu.memory_space<vmem>>, vector<16x384xbf16>
      tpu.vector_store %arg6[%c0_14, %c0_15], %16 {strides = array<i32>} : memref<16x384xbf16, #tpu.memory_space<vmem>>, vector<16x384xbf16>,
    } else {
    }
    return
  }
  func.func @transform_0(%arg0: i32, %arg1: i32, %arg2: i32) -> (i32, i32) {
    %c0_i32 = arith.constant 0 : i32
    return %arg0, %arg2 : i32, i32
  }
  func.func @transform_1(%arg0: i32, %arg1: i32, %arg2: i32) -> (i32, i32) {
    %c0_i32 = arith.constant 0 : i32
    return %arg2, %arg1 : i32, i32
  }
  func.func @transform_2(%arg0: i32, %arg1: i32, %arg2: i32) -> (i32, i32) {
    %c0_i32 = arith.constant 0 : i32
    %c0_i32_0 = arith.constant 0 : i32
    return %c0_i32, %arg1 : i32, i32
  }
  func.func @transform_3(%arg0: i32, %arg1: i32, %arg2: i32) -> (i32, i32) {
    %c0_i32 = arith.constant 0 : i32
    return %arg0, %arg1 : i32, i32
  }
}

module attributes {stable_mosaic.version = 11 : i64} {
  func.func @_layernorm_kernel(%arg0: i32, %arg1: memref<16x256xbf16, #tpu.memory_space<vmem>>, %arg2: memref<1x256xf32, #tpu.memory_space<vmem>>, %arg3: memref<1x256xf32, #tpu.memory_space<vmem>>, %arg4: memref<16x256xbf16, #tpu.memory_space<vmem>>) attributes {dimension_semantics = [#tpu.dimension_semantics<parallel>], iteration_bounds = array<i64: 1>, scalar_prefetch = 0 : i64, scratch_operands = 0 : i64, tpu.core_type = #tpu.core_type<tc>, window_params = [{transform_indices = @transform_0, window_bounds = array<i64: 16, 256>}, {pipeline_mode = #tpu.pipeline_mode<synchronous>, transform_indices = @transform_1, window_bounds = array<i64: 1, 256>}, {pipeline_mode = #tpu.pipeline_mode<synchronous>, transform_indices = @transform_2, window_bounds = array<i64: 1, 256>}, {transform_indices = @transform_3, window_bounds = array<i64: 16, 256>}]} {
    %c0 = arith.constant 0 : index
    %c0_0 = arith.constant 0 : index
    %0 = vector.load %arg1[%c0, %c0_0] : memref<16x256xbf16, #tpu.memory_space<vmem>>, vector<16x256xbf16>
    %1 = arith.extf %0 : vector<16x256xbf16> to vector<16x256xf32>
    %cst = arith.constant dense<0.000000e+00> : vector<16xf32>
    %2 = vector.multi_reduction <add>, %1, %cst [1] : vector<16x256xf32> to vector<16xf32>
    %3 = vector.shape_cast %2 : vector<16xf32> to vector<16x1xf32>
    %cst_1 = arith.constant 2.560000e+02 : f32
    %4 = vector.broadcast %cst_1 : f32 to vector<16x1xf32>
    %5 = arith.divf %3, %4 : vector<16x1xf32>
    %6 = vector.broadcast %5 : vector<16x1xf32> to vector<16x256xf32>
    %7 = arith.subf %1, %6 : vector<16x256xf32>
    %8 = arith.mulf %7, %7 : vector<16x256xf32>
    %cst_2 = arith.constant dense<0.000000e+00> : vector<16xf32>
    %9 = vector.multi_reduction <add>, %8, %cst_2 [1] : vector<16x256xf32> to vector<16xf32>
    %10 = vector.shape_cast %9 : vector<16xf32> to vector<16x1xf32>
    %cst_3 = arith.constant 2.560000e+02 : f32
    %11 = vector.broadcast %cst_3 : f32 to vector<16x1xf32>
    %12 = arith.divf %10, %11 : vector<16x1xf32>
    %13 = vector.broadcast %5 : vector<16x1xf32> to vector<16x256xf32>
    %14 = arith.subf %1, %13 : vector<16x256xf32>
    %cst_4 = arith.constant 9.99999974E-6 : f32
    %15 = vector.broadcast %cst_4 : f32 to vector<16x1xf32>
    %16 = arith.addf %12, %15 : vector<16x1xf32>
    %17 = math.rsqrt %16 : vector<16x1xf32>
    %18 = vector.broadcast %17 : vector<16x1xf32> to vector<16x256xf32>
    %19 = arith.mulf %14, %18 : vector<16x256xf32>
    %c0_5 = arith.constant 0 : index
    %c0_6 = arith.constant 0 : index
    %20 = vector.load %arg2[%c0_5, %c0_6] : memref<1x256xf32, #tpu.memory_space<vmem>>, vector<1x256xf32>
    %21 = vector.broadcast %20 : vector<1x256xf32> to vector<16x256xf32>
    %22 = arith.mulf %19, %21 : vector<16x256xf32>
    %c0_7 = arith.constant 0 : index
    %c0_8 = arith.constant 0 : index
    %23 = vector.load %arg3[%c0_7, %c0_8] : memref<1x256xf32, #tpu.memory_space<vmem>>, vector<1x256xf32>
    %24 = vector.broadcast %23 : vector<1x256xf32> to vector<16x256xf32>
    %25 = arith.addf %22, %24 : vector<16x256xf32>
    %26 = arith.truncf %25 : vector<16x256xf32> to vector<16x256xbf16>
    %c0_9 = arith.constant 0 : index
    %c0_10 = arith.constant 0 : index
    %27 = vector.load %arg4[%c0_9, %c0_10] : memref<16x256xbf16, #tpu.memory_space<vmem>>, vector<16x256xbf16>
    tpu.vector_store %arg4[%c0_9, %c0_10], %26 {strides = array<i32>} : memref<16x256xbf16, #tpu.memory_space<vmem>>, vector<16x256xbf16>,
    return
  }
  func.func @transform_0(%arg0: i32) -> (i32, i32) {
    %c0_i32 = arith.constant 0 : i32
    %c0_i32_0 = arith.constant 0 : i32
    return %arg0, %c0_i32 : i32, i32
  }
  func.func @transform_1(%arg0: i32) -> (i32, i32) {
    %c0_i32 = arith.constant 0 : i32
    %c0_i32_0 = arith.constant 0 : i32
    %c0_i32_1 = arith.constant 0 : i32
    return %c0_i32, %c0_i32_0 : i32, i32
  }
  func.func @transform_2(%arg0: i32) -> (i32, i32) {
    %c0_i32 = arith.constant 0 : i32
    %c0_i32_0 = arith.constant 0 : i32
    %c0_i32_1 = arith.constant 0 : i32
    return %c0_i32, %c0_i32_0 : i32, i32
  }
  func.func @transform_3(%arg0: i32) -> (i32, i32) {
    %c0_i32 = arith.constant 0 : i32
    %c0_i32_0 = arith.constant 0 : i32
    return %arg0, %c0_i32 : i32, i32
  }
}

module attributes {stable_mosaic.version = 11 : i64} {
  func.func @_attention_kernel(%arg0: i32, %arg1: i32, %arg2: i32, %arg3: memref<1x8x128xbf16, #tpu.memory_space<vmem>>, %arg4: memref<1x8x128xbf16, #tpu.memory_space<vmem>>, %arg5: memref<1x8x128xbf16, #tpu.memory_space<vmem>>, %arg6: memref<1x8x128xbf16, #tpu.memory_space<vmem>>) attributes {dimension_semantics = [#tpu.dimension_semantics<parallel>, #tpu.dimension_semantics<parallel>, #tpu.dimension_semantics<parallel>], iteration_bounds = array<i64: 2, 2, 1>, scalar_prefetch = 0 : i64, scratch_operands = 0 : i64, tpu.core_type = #tpu.core_type<tc>, window_params = [{transform_indices = @transform_0, window_bounds = array<i64: 1, 8, 128>}, {transform_indices = @transform_1, window_bounds = array<i64: 1, 8, 128>}, {transform_indices = @transform_2, window_bounds = array<i64: 1, 8, 128>}, {transform_indices = @transform_3, window_bounds = array<i64: 1, 8, 128>}]} {
    %c0 = arith.constant 0 : index
    %c0_0 = arith.constant 0 : index
    %c0_1 = arith.constant 0 : index
    %0 = vector.load %arg3[%c0, %c0_0, %c0_1] : memref<1x8x128xbf16, #tpu.memory_space<vmem>>, vector<1x8x128xbf16>
    %1 = vector.shape_cast %0 : vector<1x8x128xbf16> to vector<8x128xbf16>
    %c0_2 = arith.constant 0 : index
    %c0_3 = arith.constant 0 : index
    %c0_4 = arith.constant 0 : index
    %2 = vector.load %arg4[%c0_2, %c0_3, %c0_4] : memref<1x8x128xbf16, #tpu.memory_space<vmem>>, vector<1x8x128xbf16>
    %3 = vector.shape_cast %2 : vector<1x8x128xbf16> to vector<8x128xbf16>
    %c0_5 = arith.constant 0 : index
    %c0_6 = arith.constant 0 : index
    %c0_7 = arith.constant 0 : index
    %4 = vector.load %arg5[%c0_5, %c0_6, %c0_7] : memref<1x8x128xbf16, #tpu.memory_space<vmem>>, vector<1x8x128xbf16>
    %5 = vector.shape_cast %4 : vector<1x8x128xbf16> to vector<8x128xbf16>
    %cst = arith.constant dense<0.000000e+00> : vector<8x8xf32>
    %6 = tpu.matmul %1, %3, %cst {dimension_numbers = #tpu.dot_dimension_numbers<[1], [1], [0], [0], [0, 0, 1, 0], [], []>} : vector<8x128xbf16>, vector<8x128xbf16>, vector<8x8xf32> -> vector<8x8xf32>
    %cst_8 = arith.constant dense<0xFF800000> : vector<8xf32>
    %7 = vector.multi_reduction <maximumf>, %6, %cst_8 [1] : vector<8x8xf32> to vector<8xf32>
    %8 = vector.shape_cast %7 : vector<8xf32> to vector<8x1xf32>
    %9 = vector.broadcast %8 : vector<8x1xf32> to vector<8x8xf32>
    %10 = arith.subf %6, %9 : vector<8x8xf32>
    %11 = math.exp %10 : vector<8x8xf32>
    %cst_9 = arith.constant dense<0.000000e+00> : vector<8xf32>
    %12 = vector.multi_reduction <add>, %11, %cst_9 [1] : vector<8x8xf32> to vector<8xf32>
    %13 = vector.shape_cast %12 : vector<8xf32> to vector<8x1xf32>
    %14 = tpu.reciprocal %13 {approx = true} : vector<8x1xf32> -> vector<8x1xf32>
    %15 = vector.broadcast %14 : vector<8x1xf32> to vector<8x8xf32>
    %16 = arith.mulf %11, %15 : vector<8x8xf32>
    %17 = arith.truncf %16 : vector<8x8xf32> to vector<8x8xbf16>
    %cst_10 = arith.constant dense<0.000000e+00> : vector<8x128xf32>
    %18 = tpu.matmul %17, %5, %cst_10 {dimension_numbers = #tpu.dot_dimension_numbers<[1], [0], [0], [1], [0, 0, 1, 1], [], []>} : vector<8x8xbf16>, vector<8x128xbf16>, vector<8x128xf32> -> vector<8x128xf32>
    %19 = arith.truncf %18 : vector<8x128xf32> to vector<8x128xbf16>
    %c0_11 = arith.constant 0 : index
    %c0_12 = arith.constant 0 : index
    %c0_13 = arith.constant 0 : index
    %20 = vector.load %arg6[%c0_11, %c0_12, %c0_13] : memref<1x8x128xbf16, #tpu.memory_space<vmem>>, vector<1x8x128xbf16>
    %21 = vector.shape_cast %20 : vector<1x8x128xbf16> to vector<8x128xbf16>
    %22 = vector.shape_cast %19 : vector<8x128xbf16> to vector<1x8x128xbf16>
    tpu.vector_store %arg6[%c0_11, %c0_12, %c0_13], %22 {strides = array<i32>} : memref<1x8x128xbf16, #tpu.memory_space<vmem>>, vector<1x8x128xbf16>,
    return
  }
  func.func @transform_0(%arg0: i32, %arg1: i32, %arg2: i32) -> (i32, i32, i32) {
    %c0_i32 = arith.constant 0 : i32
    return %arg0, %arg2, %arg1 : i32, i32, i32
  }
  func.func @transform_1(%arg0: i32, %arg1: i32, %arg2: i32) -> (i32, i32, i32) {
    %c2_i32 = arith.constant 2 : i32
    %0 = arith.addi %c2_i32, %arg1 : i32
    %c0_i32 = arith.constant 0 : i32
    %c0_i32_0 = arith.constant 0 : i32
    return %arg0, %c0_i32, %0 : i32, i32, i32
  }
  func.func @transform_2(%arg0: i32, %arg1: i32, %arg2: i32) -> (i32, i32, i32) {
    %c4_i32 = arith.constant 4 : i32
    %0 = arith.addi %c4_i32, %arg1 : i32
    %c0_i32 = arith.constant 0 : i32
    %c0_i32_0 = arith.constant 0 : i32
    return %arg0, %c0_i32, %0 : i32, i32, i32
  }
  func.func @transform_3(%arg0: i32, %arg1: i32, %arg2: i32) -> (i32, i32, i32) {
    %c0_i32 = arith.constant 0 : i32
    return %arg0, %arg2, %arg1 : i32, i32, i32
  }
}

module attributes {stable_mosaic.version = 11 : i64} {
  func.func @_linear_res_ln_kernel(%arg0: i32, %arg1: i32, %arg2: memref<16x256xbf16, #tpu.memory_space<vmem>>, %arg3: memref<256x256xbf16, #tpu.memory_space<vmem>>, %arg4: memref<1x256xf32, #tpu.memory_space<vmem>>, %arg5: memref<16x256xbf16, #tpu.memory_space<vmem>>, %arg6: memref<1x256xf32, #tpu.memory_space<vmem>>, %arg7: memref<1x256xf32, #tpu.memory_space<vmem>>, %arg8: memref<16x256xbf16, #tpu.memory_space<vmem>>, %arg9: memref<16x256xf32, #tpu.memory_space<vmem>>) attributes {dimension_semantics = [#tpu.dimension_semantics<parallel>, #tpu.dimension_semantics<arbitrary>], iteration_bounds = array<i64: 1, 1>, scalar_prefetch = 0 : i64, scratch_operands = 1 : i64, tpu.core_type = #tpu.core_type<tc>, window_params = [{transform_indices = @transform_0, window_bounds = array<i64: 16, 256>}, {transform_indices = @transform_1, window_bounds = array<i64: 256, 256>}, {pipeline_mode = #tpu.pipeline_mode<synchronous>, transform_indices = @transform_2, window_bounds = array<i64: 1, 256>}, {transform_indices = @transform_3, window_bounds = array<i64: 16, 256>}, {pipeline_mode = #tpu.pipeline_mode<synchronous>, transform_indices = @transform_4, window_bounds = array<i64: 1, 256>}, {pipeline_mode = #tpu.pipeline_mode<synchronous>, transform_indices = @transform_5, window_bounds = array<i64: 1, 256>}, {transform_indices = @transform_6, window_bounds = array<i64: 16, 256>}]} {
    %c0_i32 = arith.constant 0 : i32
    %0 = arith.cmpi eq, %arg1, %c0_i32 : i32
    %1 = arith.extui %0 : i1 to i32
    %c0_i32_0 = arith.constant 0 : i32
    %2 = arith.cmpi ne, %1, %c0_i32_0 : i32
    scf.if %2 {
      %cst_10 = arith.constant 0.000000e+00 : f32
      %12 = vector.broadcast %cst_10 : f32 to vector<16x256xf32>
      %c0_11 = arith.constant 0 : index
      %c0_12 = arith.constant 0 : index
      %13 = vector.load %arg9[%c0_11, %c0_12] : memref<16x256xf32, #tpu.memory_space<vmem>>, vector<16x256xf32>
      tpu.vector_store %arg9[%c0_11, %c0_12], %12 {strides = array<i32>} : memref<16x256xf32, #tpu.memory_space<vmem>>, vector<16x256xf32>,
    } else {
    }
    %c0 = arith.constant 0 : index
    %c0_1 = arith.constant 0 : index
    %3 = vector.load %arg9[%c0, %c0_1] : memref<16x256xf32, #tpu.memory_space<vmem>>, vector<16x256xf32>
    %c0_2 = arith.constant 0 : index
    %c0_3 = arith.constant 0 : index
    %4 = vector.load %arg2[%c0_2, %c0_3] : memref<16x256xbf16, #tpu.memory_space<vmem>>, vector<16x256xbf16>
    %c0_4 = arith.constant 0 : index
    %c0_5 = arith.constant 0 : index
    %5 = vector.load %arg3[%c0_4, %c0_5] : memref<256x256xbf16, #tpu.memory_space<vmem>>, vector<256x256xbf16>
    %cst = arith.constant dense<0.000000e+00> : vector<16x256xf32>
    %6 = tpu.matmul %4, %5, %cst {dimension_numbers = #tpu.dot_dimension_numbers<[1], [0], [0], [1], [0, 0, 1, 1], [], []>} : vector<16x256xbf16>, vector<256x256xbf16>, vector<16x256xf32> -> vector<16x256xf32>
    %7 = arith.addf %3, %6 : vector<16x256xf32>
    %c0_6 = arith.constant 0 : index
    %c0_7 = arith.constant 0 : index
    %8 = vector.load %arg9[%c0_6, %c0_7] : memref<16x256xf32, #tpu.memory_space<vmem>>, vector<16x256xf32>
    tpu.vector_store %arg9[%c0_6, %c0_7], %7 {strides = array<i32>} : memref<16x256xf32, #tpu.memory_space<vmem>>, vector<16x256xf32>,
    %c0_i32_8 = arith.constant 0 : i32
    %9 = arith.cmpi eq, %arg1, %c0_i32_8 : i32
    %10 = arith.extui %9 : i1 to i32
    %c0_i32_9 = arith.constant 0 : i32
    %11 = arith.cmpi ne, %10, %c0_i32_9 : i32
    scf.if %11 {
      %c0_10 = arith.constant 0 : index
      %c0_11 = arith.constant 0 : index
      %12 = vector.load %arg9[%c0_10, %c0_11] : memref<16x256xf32, #tpu.memory_space<vmem>>, vector<16x256xf32>
      %c0_12 = arith.constant 0 : index
      %c0_13 = arith.constant 0 : index
      %13 = vector.load %arg4[%c0_12, %c0_13] : memref<1x256xf32, #tpu.memory_space<vmem>>, vector<1x256xf32>
      %14 = vector.broadcast %13 : vector<1x256xf32> to vector<16x256xf32>
      %15 = arith.addf %12, %14 : vector<16x256xf32>
      %c0_14 = arith.constant 0 : index
      %c0_15 = arith.constant 0 : index
      %16 = vector.load %arg5[%c0_14, %c0_15] : memref<16x256xbf16, #tpu.memory_space<vmem>>, vector<16x256xbf16>
      %17 = arith.extf %16 : vector<16x256xbf16> to vector<16x256xf32>
      %18 = arith.addf %15, %17 : vector<16x256xf32>
      %cst_16 = arith.constant dense<0.000000e+00> : vector<16xf32>
      %19 = vector.multi_reduction <add>, %18, %cst_16 [1] : vector<16x256xf32> to vector<16xf32>
      %20 = vector.shape_cast %19 : vector<16xf32> to vector<16x1xf32>
      %cst_17 = arith.constant 2.560000e+02 : f32
      %21 = vector.broadcast %cst_17 : f32 to vector<16x1xf32>
      %22 = arith.divf %20, %21 : vector<16x1xf32>
      %23 = vector.broadcast %22 : vector<16x1xf32> to vector<16x256xf32>
      %24 = arith.subf %18, %23 : vector<16x256xf32>
      %25 = arith.mulf %24, %24 : vector<16x256xf32>
      %cst_18 = arith.constant dense<0.000000e+00> : vector<16xf32>
      %26 = vector.multi_reduction <add>, %25, %cst_18 [1] : vector<16x256xf32> to vector<16xf32>
      %27 = vector.shape_cast %26 : vector<16xf32> to vector<16x1xf32>
      %cst_19 = arith.constant 2.560000e+02 : f32
      %28 = vector.broadcast %cst_19 : f32 to vector<16x1xf32>
      %29 = arith.divf %27, %28 : vector<16x1xf32>
      %30 = vector.broadcast %22 : vector<16x1xf32> to vector<16x256xf32>
      %31 = arith.subf %18, %30 : vector<16x256xf32>
      %cst_20 = arith.constant 9.99999974E-6 : f32
      %32 = vector.broadcast %cst_20 : f32 to vector<16x1xf32>
      %33 = arith.addf %29, %32 : vector<16x1xf32>
      %34 = math.rsqrt %33 : vector<16x1xf32>
      %35 = vector.broadcast %34 : vector<16x1xf32> to vector<16x256xf32>
      %36 = arith.mulf %31, %35 : vector<16x256xf32>
      %c0_21 = arith.constant 0 : index
      %c0_22 = arith.constant 0 : index
      %37 = vector.load %arg6[%c0_21, %c0_22] : memref<1x256xf32, #tpu.memory_space<vmem>>, vector<1x256xf32>
      %38 = vector.broadcast %37 : vector<1x256xf32> to vector<16x256xf32>
      %39 = arith.mulf %36, %38 : vector<16x256xf32>
      %c0_23 = arith.constant 0 : index
      %c0_24 = arith.constant 0 : index
      %40 = vector.load %arg7[%c0_23, %c0_24] : memref<1x256xf32, #tpu.memory_space<vmem>>, vector<1x256xf32>
      %41 = vector.broadcast %40 : vector<1x256xf32> to vector<16x256xf32>
      %42 = arith.addf %39, %41 : vector<16x256xf32>
      %43 = arith.truncf %42 : vector<16x256xf32> to vector<16x256xbf16>
      %c0_25 = arith.constant 0 : index
      %c0_26 = arith.constant 0 : index
      %44 = vector.load %arg8[%c0_25, %c0_26] : memref<16x256xbf16, #tpu.memory_space<vmem>>, vector<16x256xbf16>
      tpu.vector_store %arg8[%c0_25, %c0_26], %43 {strides = array<i32>} : memref<16x256xbf16, #tpu.memory_space<vmem>>, vector<16x256xbf16>,
    } else {
    }
    return
  }
  func.func @transform_0(%arg0: i32, %arg1: i32) -> (i32, i32) {
    %c0_i32 = arith.constant 0 : i32
    return %arg0, %arg1 : i32, i32
  }
  func.func @transform_1(%arg0: i32, %arg1: i32) -> (i32, i32) {
    %c0_i32 = arith.constant 0 : i32
    %c0_i32_0 = arith.constant 0 : i32
    return %arg1, %c0_i32 : i32, i32
  }
  func.func @transform_2(%arg0: i32, %arg1: i32) -> (i32, i32) {
    %c0_i32 = arith.constant 0 : i32
    %c0_i32_0 = arith.constant 0 : i32
    %c0_i32_1 = arith.constant 0 : i32
    return %c0_i32, %c0_i32_0 : i32, i32
  }
  func.func @transform_3(%arg0: i32, %arg1: i32) -> (i32, i32) {
    %c0_i32 = arith.constant 0 : i32
    %c0_i32_0 = arith.constant 0 : i32
    return %arg0, %c0_i32 : i32, i32
  }
  func.func @transform_4(%arg0: i32, %arg1: i32) -> (i32, i32) {
    %c0_i32 = arith.constant 0 : i32
    %c0_i32_0 = arith.constant 0 : i32
    %c0_i32_1 = arith.constant 0 : i32
    return %c0_i32, %c0_i32_0 : i32, i32
  }
  func.func @transform_5(%arg0: i32, %arg1: i32) -> (i32, i32) {
    %c0_i32 = arith.constant 0 : i32
    %c0_i32_0 = arith.constant 0 : i32
    %c0_i32_1 = arith.constant 0 : i32
    return %c0_i32, %c0_i32_0 : i32, i32
  }
  func.func @transform_6(%arg0: i32, %arg1: i32) -> (i32, i32) {
    %c0_i32 = arith.constant 0 : i32
    %c0_i32_0 = arith.constant 0 : i32
    return %arg0, %c0_i32 : i32, i32
  }
}

module attributes {stable_mosaic.version = 11 : i64} {
  func.func @_linear_kernel(%arg0: i32, %arg1: i32, %arg2: i32, %arg3: memref<16x256xbf16, #tpu.memory_space<vmem>>, %arg4: memref<256x512xbf16, #tpu.memory_space<vmem>>, %arg5: memref<1x512xf32, #tpu.memory_space<vmem>>, %arg6: memref<16x512xbf16, #tpu.memory_space<vmem>>, %arg7: memref<16x512xf32, #tpu.memory_space<vmem>>) attributes {dimension_semantics = [#tpu.dimension_semantics<parallel>, #tpu.dimension_semantics<parallel>, #tpu.dimension_semantics<arbitrary>], iteration_bounds = array<i64: 1, 1, 1>, scalar_prefetch = 0 : i64, scratch_operands = 1 : i64, tpu.core_type = #tpu.core_type<tc>, window_params = [{transform_indices = @transform_0, window_bounds = array<i64: 16, 256>}, {transform_indices = @transform_1, window_bounds = array<i64: 256, 512>}, {transform_indices = @transform_2, window_bounds = array<i64: 1, 512>}, {transform_indices = @transform_3, window_bounds = array<i64: 16, 512>}]} {
    %c0_i32 = arith.constant 0 : i32
    %0 = arith.cmpi eq, %arg2, %c0_i32 : i32
    %1 = arith.extui %0 : i1 to i32
    %c0_i32_0 = arith.constant 0 : i32
    %2 = arith.cmpi ne, %1, %c0_i32_0 : i32
    scf.if %2 {
      %cst_10 = arith.constant 0.000000e+00 : f32
      %12 = vector.broadcast %cst_10 : f32 to vector<16x512xf32>
      %c0_11 = arith.constant 0 : index
      %c0_12 = arith.constant 0 : index
      %13 = vector.load %arg7[%c0_11, %c0_12] : memref<16x512xf32, #tpu.memory_space<vmem>>, vector<16x512xf32>
      tpu.vector_store %arg7[%c0_11, %c0_12], %12 {strides = array<i32>} : memref<16x512xf32, #tpu.memory_space<vmem>>, vector<16x512xf32>,
    } else {
    }
    %c0 = arith.constant 0 : index
    %c0_1 = arith.constant 0 : index
    %3 = vector.load %arg7[%c0, %c0_1] : memref<16x512xf32, #tpu.memory_space<vmem>>, vector<16x512xf32>
    %c0_2 = arith.constant 0 : index
    %c0_3 = arith.constant 0 : index
    %4 = vector.load %arg3[%c0_2, %c0_3] : memref<16x256xbf16, #tpu.memory_space<vmem>>, vector<16x256xbf16>
    %c0_4 = arith.constant 0 : index
    %c0_5 = arith.constant 0 : index
    %5 = vector.load %arg4[%c0_4, %c0_5] : memref<256x512xbf16, #tpu.memory_space<vmem>>, vector<256x512xbf16>
    %cst = arith.constant dense<0.000000e+00> : vector<16x512xf32>
    %6 = tpu.matmul %4, %5, %cst {dimension_numbers = #tpu.dot_dimension_numbers<[1], [0], [0], [1], [0, 0, 1, 1], [], []>} : vector<16x256xbf16>, vector<256x512xbf16>, vector<16x512xf32> -> vector<16x512xf32>
    %7 = arith.addf %3, %6 : vector<16x512xf32>
    %c0_6 = arith.constant 0 : index
    %c0_7 = arith.constant 0 : index
    %8 = vector.load %arg7[%c0_6, %c0_7] : memref<16x512xf32, #tpu.memory_space<vmem>>, vector<16x512xf32>
    tpu.vector_store %arg7[%c0_6, %c0_7], %7 {strides = array<i32>} : memref<16x512xf32, #tpu.memory_space<vmem>>, vector<16x512xf32>,
    %c0_i32_8 = arith.constant 0 : i32
    %9 = arith.cmpi eq, %arg2, %c0_i32_8 : i32
    %10 = arith.extui %9 : i1 to i32
    %c0_i32_9 = arith.constant 0 : i32
    %11 = arith.cmpi ne, %10, %c0_i32_9 : i32
    scf.if %11 {
      %c0_10 = arith.constant 0 : index
      %c0_11 = arith.constant 0 : index
      %12 = vector.load %arg7[%c0_10, %c0_11] : memref<16x512xf32, #tpu.memory_space<vmem>>, vector<16x512xf32>
      %c0_12 = arith.constant 0 : index
      %c0_13 = arith.constant 0 : index
      %13 = vector.load %arg5[%c0_12, %c0_13] : memref<1x512xf32, #tpu.memory_space<vmem>>, vector<1x512xf32>
      %14 = vector.broadcast %13 : vector<1x512xf32> to vector<16x512xf32>
      %15 = arith.addf %12, %14 : vector<16x512xf32>
      %16 = arith.mulf %15, %15 : vector<16x512xf32>
      %17 = arith.mulf %15, %16 : vector<16x512xf32>
      %cst_14 = arith.constant 4.471500e-02 : f32
      %18 = vector.broadcast %cst_14 : f32 to vector<16x512xf32>
      %19 = arith.mulf %18, %17 : vector<16x512xf32>
      %20 = arith.addf %15, %19 : vector<16x512xf32>
      %cst_15 = arith.constant 0.797884583 : f32
      %21 = vector.broadcast %cst_15 : f32 to vector<16x512xf32>
      %22 = arith.mulf %21, %20 : vector<16x512xf32>
      %23 = math.tanh %22 : vector<16x512xf32>
      %cst_16 = arith.constant 1.000000e+00 : f32
      %24 = vector.broadcast %cst_16 : f32 to vector<16x512xf32>
      %25 = arith.addf %24, %23 : vector<16x512xf32>
      %cst_17 = arith.constant 5.000000e-01 : f32
      %26 = vector.broadcast %cst_17 : f32 to vector<16x512xf32>
      %27 = arith.mulf %26, %25 : vector<16x512xf32>
      %28 = arith.mulf %15, %27 : vector<16x512xf32>
      %29 = arith.truncf %28 : vector<16x512xf32> to vector<16x512xbf16>
      %c0_18 = arith.constant 0 : index
      %c0_19 = arith.constant 0 : index
      %30 = vector.load %arg6[%c0_18, %c0_19] : memref<16x512xbf16, #tpu.memory_space<vmem>>, vector<16x512xbf16>
      tpu.vector_store %arg6[%c0_18, %c0_19], %29 {strides = array<i32>} : memref<16x512xbf16, #tpu.memory_space<vmem>>, vector<16x512xbf16>,
    } else {
    }
    return
  }
  func.func @transform_0(%arg0: i32, %arg1: i32, %arg2: i32) -> (i32, i32) {
    %c0_i32 = arith.constant 0 : i32
    return %arg0, %arg2 : i32, i32
  }
  func.func @transform_1(%arg0: i32, %arg1: i32, %arg2: i32) -> (i32, i32) {
    %c0_i32 = arith.constant 0 : i32
    return %arg2, %arg1 : i32, i32
  }
  func.func @transform_2(%arg0: i32, %arg1: i32, %arg2: i32) -> (i32, i32) {
    %c0_i32 = arith.constant 0 : i32
    %c0_i32_0 = arith.constant 0 : i32
    return %c0_i32, %arg1 : i32, i32
  }
  func.func @transform_3(%arg0: i32, %arg1: i32, %arg2: i32) -> (i32, i32) {
    %c0_i32 = arith.constant 0 : i32
    return %arg0, %arg1 : i32, i32
  }
}

module attributes {stable_mosaic.version = 11 : i64} {
  func.func @_linear_res_ln_kernel(%arg0: i32, %arg1: i32, %arg2: memref<16x512xbf16, #tpu.memory_space<vmem>>, %arg3: memref<512x256xbf16, #tpu.memory_space<vmem>>, %arg4: memref<1x256xf32, #tpu.memory_space<vmem>>, %arg5: memref<16x256xbf16, #tpu.memory_space<vmem>>, %arg6: memref<1x256xf32, #tpu.memory_space<vmem>>, %arg7: memref<1x256xf32, #tpu.memory_space<vmem>>, %arg8: memref<16x256xbf16, #tpu.memory_space<vmem>>, %arg9: memref<16x256xf32, #tpu.memory_space<vmem>>) attributes {dimension_semantics = [#tpu.dimension_semantics<parallel>, #tpu.dimension_semantics<arbitrary>], iteration_bounds = array<i64: 1, 1>, scalar_prefetch = 0 : i64, scratch_operands = 1 : i64, tpu.core_type = #tpu.core_type<tc>, window_params = [{transform_indices = @transform_0, window_bounds = array<i64: 16, 512>}, {transform_indices = @transform_1, window_bounds = array<i64: 512, 256>}, {pipeline_mode = #tpu.pipeline_mode<synchronous>, transform_indices = @transform_2, window_bounds = array<i64: 1, 256>}, {transform_indices = @transform_3, window_bounds = array<i64: 16, 256>}, {pipeline_mode = #tpu.pipeline_mode<synchronous>, transform_indices = @transform_4, window_bounds = array<i64: 1, 256>}, {pipeline_mode = #tpu.pipeline_mode<synchronous>, transform_indices = @transform_5, window_bounds = array<i64: 1, 256>}, {transform_indices = @transform_6, window_bounds = array<i64: 16, 256>}]} {
    %c0_i32 = arith.constant 0 : i32
    %0 = arith.cmpi eq, %arg1, %c0_i32 : i32
    %1 = arith.extui %0 : i1 to i32
    %c0_i32_0 = arith.constant 0 : i32
    %2 = arith.cmpi ne, %1, %c0_i32_0 : i32
    scf.if %2 {
      %cst_10 = arith.constant 0.000000e+00 : f32
      %12 = vector.broadcast %cst_10 : f32 to vector<16x256xf32>
      %c0_11 = arith.constant 0 : index
      %c0_12 = arith.constant 0 : index
      %13 = vector.load %arg9[%c0_11, %c0_12] : memref<16x256xf32, #tpu.memory_space<vmem>>, vector<16x256xf32>
      tpu.vector_store %arg9[%c0_11, %c0_12], %12 {strides = array<i32>} : memref<16x256xf32, #tpu.memory_space<vmem>>, vector<16x256xf32>,
    } else {
    }
    %c0 = arith.constant 0 : index
    %c0_1 = arith.constant 0 : index
    %3 = vector.load %arg9[%c0, %c0_1] : memref<16x256xf32, #tpu.memory_space<vmem>>, vector<16x256xf32>
    %c0_2 = arith.constant 0 : index
    %c0_3 = arith.constant 0 : index
    %4 = vector.load %arg2[%c0_2, %c0_3] : memref<16x512xbf16, #tpu.memory_space<vmem>>, vector<16x512xbf16>
    %c0_4 = arith.constant 0 : index
    %c0_5 = arith.constant 0 : index
    %5 = vector.load %arg3[%c0_4, %c0_5] : memref<512x256xbf16, #tpu.memory_space<vmem>>, vector<512x256xbf16>
    %cst = arith.constant dense<0.000000e+00> : vector<16x256xf32>
    %6 = tpu.matmul %4, %5, %cst {dimension_numbers = #tpu.dot_dimension_numbers<[1], [0], [0], [1], [0, 0, 1, 1], [], []>} : vector<16x512xbf16>, vector<512x256xbf16>, vector<16x256xf32> -> vector<16x256xf32>
    %7 = arith.addf %3, %6 : vector<16x256xf32>
    %c0_6 = arith.constant 0 : index
    %c0_7 = arith.constant 0 : index
    %8 = vector.load %arg9[%c0_6, %c0_7] : memref<16x256xf32, #tpu.memory_space<vmem>>, vector<16x256xf32>
    tpu.vector_store %arg9[%c0_6, %c0_7], %7 {strides = array<i32>} : memref<16x256xf32, #tpu.memory_space<vmem>>, vector<16x256xf32>,
    %c0_i32_8 = arith.constant 0 : i32
    %9 = arith.cmpi eq, %arg1, %c0_i32_8 : i32
    %10 = arith.extui %9 : i1 to i32
    %c0_i32_9 = arith.constant 0 : i32
    %11 = arith.cmpi ne, %10, %c0_i32_9 : i32
    scf.if %11 {
      %c0_10 = arith.constant 0 : index
      %c0_11 = arith.constant 0 : index
      %12 = vector.load %arg9[%c0_10, %c0_11] : memref<16x256xf32, #tpu.memory_space<vmem>>, vector<16x256xf32>
      %c0_12 = arith.constant 0 : index
      %c0_13 = arith.constant 0 : index
      %13 = vector.load %arg4[%c0_12, %c0_13] : memref<1x256xf32, #tpu.memory_space<vmem>>, vector<1x256xf32>
      %14 = vector.broadcast %13 : vector<1x256xf32> to vector<16x256xf32>
      %15 = arith.addf %12, %14 : vector<16x256xf32>
      %c0_14 = arith.constant 0 : index
      %c0_15 = arith.constant 0 : index
      %16 = vector.load %arg5[%c0_14, %c0_15] : memref<16x256xbf16, #tpu.memory_space<vmem>>, vector<16x256xbf16>
      %17 = arith.extf %16 : vector<16x256xbf16> to vector<16x256xf32>
      %18 = arith.addf %15, %17 : vector<16x256xf32>
      %cst_16 = arith.constant dense<0.000000e+00> : vector<16xf32>
      %19 = vector.multi_reduction <add>, %18, %cst_16 [1] : vector<16x256xf32> to vector<16xf32>
      %20 = vector.shape_cast %19 : vector<16xf32> to vector<16x1xf32>
      %cst_17 = arith.constant 2.560000e+02 : f32
      %21 = vector.broadcast %cst_17 : f32 to vector<16x1xf32>
      %22 = arith.divf %20, %21 : vector<16x1xf32>
      %23 = vector.broadcast %22 : vector<16x1xf32> to vector<16x256xf32>
      %24 = arith.subf %18, %23 : vector<16x256xf32>
      %25 = arith.mulf %24, %24 : vector<16x256xf32>
      %cst_18 = arith.constant dense<0.000000e+00> : vector<16xf32>
      %26 = vector.multi_reduction <add>, %25, %cst_18 [1] : vector<16x256xf32> to vector<16xf32>
      %27 = vector.shape_cast %26 : vector<16xf32> to vector<16x1xf32>
      %cst_19 = arith.constant 2.560000e+02 : f32
      %28 = vector.broadcast %cst_19 : f32 to vector<16x1xf32>
      %29 = arith.divf %27, %28 : vector<16x1xf32>
      %30 = vector.broadcast %22 : vector<16x1xf32> to vector<16x256xf32>
      %31 = arith.subf %18, %30 : vector<16x256xf32>
      %cst_20 = arith.constant 9.99999974E-6 : f32
      %32 = vector.broadcast %cst_20 : f32 to vector<16x1xf32>
      %33 = arith.addf %29, %32 : vector<16x1xf32>
      %34 = math.rsqrt %33 : vector<16x1xf32>
      %35 = vector.broadcast %34 : vector<16x1xf32> to vector<16x256xf32>
      %36 = arith.mulf %31, %35 : vector<16x256xf32>
      %c0_21 = arith.constant 0 : index
      %c0_22 = arith.constant 0 : index
      %37 = vector.load %arg6[%c0_21, %c0_22] : memref<1x256xf32, #tpu.memory_space<vmem>>, vector<1x256xf32>
      %38 = vector.broadcast %37 : vector<1x256xf32> to vector<16x256xf32>
      %39 = arith.mulf %36, %38 : vector<16x256xf32>
      %c0_23 = arith.constant 0 : index
      %c0_24 = arith.constant 0 : index
      %40 = vector.load %arg7[%c0_23, %c0_24] : memref<1x256xf32, #tpu.memory_space<vmem>>, vector<1x256xf32>
      %41 = vector.broadcast %40 : vector<1x256xf32> to vector<16x256xf32>
      %42 = arith.addf %39, %41 : vector<16x256xf32>
      %43 = arith.truncf %42 : vector<16x256xf32> to vector<16x256xbf16>
      %c0_25 = arith.constant 0 : index
      %c0_26 = arith.constant 0 : index
      %44 = vector.load %arg8[%c0_25, %c0_26] : memref<16x256xbf16, #tpu.memory_space<vmem>>, vector<16x256xbf16>
      tpu.vector_store %arg8[%c0_25, %c0_26], %43 {strides = array<i32>} : memref<16x256xbf16, #tpu.memory_space<vmem>>, vector<16x256xbf16>,
    } else {
    }
    return
  }
  func.func @transform_0(%arg0: i32, %arg1: i32) -> (i32, i32) {
    %c0_i32 = arith.constant 0 : i32
    return %arg0, %arg1 : i32, i32
  }
  func.func @transform_1(%arg0: i32, %arg1: i32) -> (i32, i32) {
    %c0_i32 = arith.constant 0 : i32
    %c0_i32_0 = arith.constant 0 : i32
    return %arg1, %c0_i32 : i32, i32
  }
  func.func @transform_2(%arg0: i32, %arg1: i32) -> (i32, i32) {
    %c0_i32 = arith.constant 0 : i32
    %c0_i32_0 = arith.constant 0 : i32
    %c0_i32_1 = arith.constant 0 : i32
    return %c0_i32, %c0_i32_0 : i32, i32
  }
  func.func @transform_3(%arg0: i32, %arg1: i32) -> (i32, i32) {
    %c0_i32 = arith.constant 0 : i32
    %c0_i32_0 = arith.constant 0 : i32
    return %arg0, %c0_i32 : i32, i32
  }
  func.func @transform_4(%arg0: i32, %arg1: i32) -> (i32, i32) {
    %c0_i32 = arith.constant 0 : i32
    %c0_i32_0 = arith.constant 0 : i32
    %c0_i32_1 = arith.constant 0 : i32
    return %c0_i32, %c0_i32_0 : i32, i32
  }
  func.func @transform_5(%arg0: i32, %arg1: i32) -> (i32, i32) {
    %c0_i32 = arith.constant 0 : i32
    %c0_i32_0 = arith.constant 0 : i32
    %c0_i32_1 = arith.constant 0 : i32
    return %c0_i32, %c0_i32_0 : i32, i32
  }
  func.func @transform_6(%arg0: i32, %arg1: i32) -> (i32, i32) {
    %c0_i32 = arith.constant 0 : i32
    %c0_i32_0 = arith.constant 0 : i32
    return %arg0, %c0_i32 : i32, i32
  }
}

module attributes {stable_mosaic.version = 11 : i64} {
  func.func @_linear_kernel(%arg0: i32, %arg1: i32, %arg2: i32, %arg3: memref<16x256xbf16, #tpu.memory_space<vmem>>, %arg4: memref<256x384xbf16, #tpu.memory_space<vmem>>, %arg5: memref<1x384xf32, #tpu.memory_space<vmem>>, %arg6: memref<16x384xbf16, #tpu.memory_space<vmem>>, %arg7: memref<16x384xf32, #tpu.memory_space<vmem>>) attributes {dimension_semantics = [#tpu.dimension_semantics<parallel>, #tpu.dimension_semantics<parallel>, #tpu.dimension_semantics<arbitrary>], iteration_bounds = array<i64: 1, 2, 1>, scalar_prefetch = 0 : i64, scratch_operands = 1 : i64, tpu.core_type = #tpu.core_type<tc>, window_params = [{transform_indices = @transform_0, window_bounds = array<i64: 16, 256>}, {transform_indices = @transform_1, window_bounds = array<i64: 256, 384>}, {transform_indices = @transform_2, window_bounds = array<i64: 1, 384>}, {transform_indices = @transform_3, window_bounds = array<i64: 16, 384>}]} {
    %c0_i32 = arith.constant 0 : i32
    %0 = arith.cmpi eq, %arg2, %c0_i32 : i32
    %1 = arith.extui %0 : i1 to i32
    %c0_i32_0 = arith.constant 0 : i32
    %2 = arith.cmpi ne, %1, %c0_i32_0 : i32
    scf.if %2 {
      %cst_10 = arith.constant 0.000000e+00 : f32
      %12 = vector.broadcast %cst_10 : f32 to vector<16x384xf32>
      %c0_11 = arith.constant 0 : index
      %c0_12 = arith.constant 0 : index
      %13 = vector.load %arg7[%c0_11, %c0_12] : memref<16x384xf32, #tpu.memory_space<vmem>>, vector<16x384xf32>
      tpu.vector_store %arg7[%c0_11, %c0_12], %12 {strides = array<i32>} : memref<16x384xf32, #tpu.memory_space<vmem>>, vector<16x384xf32>,
    } else {
    }
    %c0 = arith.constant 0 : index
    %c0_1 = arith.constant 0 : index
    %3 = vector.load %arg7[%c0, %c0_1] : memref<16x384xf32, #tpu.memory_space<vmem>>, vector<16x384xf32>
    %c0_2 = arith.constant 0 : index
    %c0_3 = arith.constant 0 : index
    %4 = vector.load %arg3[%c0_2, %c0_3] : memref<16x256xbf16, #tpu.memory_space<vmem>>, vector<16x256xbf16>
    %c0_4 = arith.constant 0 : index
    %c0_5 = arith.constant 0 : index
    %5 = vector.load %arg4[%c0_4, %c0_5] : memref<256x384xbf16, #tpu.memory_space<vmem>>, vector<256x384xbf16>
    %cst = arith.constant dense<0.000000e+00> : vector<16x384xf32>
    %6 = tpu.matmul %4, %5, %cst {dimension_numbers = #tpu.dot_dimension_numbers<[1], [0], [0], [1], [0, 0, 1, 1], [], []>} : vector<16x256xbf16>, vector<256x384xbf16>, vector<16x384xf32> -> vector<16x384xf32>
    %7 = arith.addf %3, %6 : vector<16x384xf32>
    %c0_6 = arith.constant 0 : index
    %c0_7 = arith.constant 0 : index
    %8 = vector.load %arg7[%c0_6, %c0_7] : memref<16x384xf32, #tpu.memory_space<vmem>>, vector<16x384xf32>
    tpu.vector_store %arg7[%c0_6, %c0_7], %7 {strides = array<i32>} : memref<16x384xf32, #tpu.memory_space<vmem>>, vector<16x384xf32>,
    %c0_i32_8 = arith.constant 0 : i32
    %9 = arith.cmpi eq, %arg2, %c0_i32_8 : i32
    %10 = arith.extui %9 : i1 to i32
    %c0_i32_9 = arith.constant 0 : i32
    %11 = arith.cmpi ne, %10, %c0_i32_9 : i32
    scf.if %11 {
      %c0_10 = arith.constant 0 : index
      %c0_11 = arith.constant 0 : index
      %12 = vector.load %arg7[%c0_10, %c0_11] : memref<16x384xf32, #tpu.memory_space<vmem>>, vector<16x384xf32>
      %c0_12 = arith.constant 0 : index
      %c0_13 = arith.constant 0 : index
      %13 = vector.load %arg5[%c0_12, %c0_13] : memref<1x384xf32, #tpu.memory_space<vmem>>, vector<1x384xf32>
      %14 = vector.broadcast %13 : vector<1x384xf32> to vector<16x384xf32>
      %15 = arith.addf %12, %14 : vector<16x384xf32>
      %16 = arith.truncf %15 : vector<16x384xf32> to vector<16x384xbf16>
      %c0_14 = arith.constant 0 : index
      %c0_15 = arith.constant 0 : index
      %17 = vector.load %arg6[%c0_14, %c0_15] : memref<16x384xbf16, #tpu.memory_space<vmem>>, vector<16x384xbf16>
      tpu.vector_store %arg6[%c0_14, %c0_15], %16 {strides = array<i32>} : memref<16x384xbf16, #tpu.memory_space<vmem>>, vector<16x384xbf16>,
    } else {
    }
    return
  }
  func.func @transform_0(%arg0: i32, %arg1: i32, %arg2: i32) -> (i32, i32) {
    %c0_i32 = arith.constant 0 : i32
    return %arg0, %arg2 : i32, i32
  }
  func.func @transform_1(%arg0: i32, %arg1: i32, %arg2: i32) -> (i32, i32) {
    %c0_i32 = arith.constant 0 : i32
    return %arg2, %arg1 : i32, i32
  }
  func.func @transform_2(%arg0: i32, %arg1: i32, %arg2: i32) -> (i32, i32) {
    %c0_i32 = arith.constant 0 : i32
    %c0_i32_0 = arith.constant 0 : i32
    return %c0_i32, %arg1 : i32, i32
  }
  func.func @transform_3(%arg0: i32, %arg1: i32, %arg2: i32) -> (i32, i32) {
    %c0_i32 = arith.constant 0 : i32
    return %arg0, %arg1 : i32, i32
  }
}

</mosaic_0001>

<llo_original>
// kernel: table_model_forward.13
$region0: #{table_model_forward.13}
  #allocation0 [shape = 'u32[]', space=smem, size = 0x4, offset = 0x4, fixed_abs, tag = 'smem constant byte address 0x4 - core index']
  #allocation1 [shape = 'u32[144,128]{1,0:T(1,128)}', space=vmem, size = 0x12000, scoped, tag = 'internal scratch']
  %s0 = inlined_call_operand.vmem [shape: bf16[2,8,768], index: 0, kind: input, shape index: {}, may-alias: {0,1,2}]
  %s1 = inlined_call_operand.vmem [shape: bf16[2,8,768], index: 1, kind: input, shape index: {}, may-alias: {0,1,2}]
  %s2 = inlined_call_operand.vmem [shape: bf16[2,8,768], index: 2, kind: input, shape index: {}, may-alias: {0,1,2}]
  %s3 = inlined_call_operand.vmem [shape: bf16[2,8,256], index: 3, kind: output, shape index: {}]
  %s4 = sld [smem:[#allocation0]]
  $region45: #{table_model_forward.13} parent=0
    _
  %s6 = ssub.s32 1, %s4
  %s7 = scalar_select 0, %s6, %s4
  loop: start=0, step=1, limit=6
  $region2: #{table_model_forward.13} parent=0 // loop_pre_header
    _
  $region3: #{table_model_forward.13} parent=0 // loop_header
    %s9 = sphi 0, %s13
    %p10 = scmp.ge.s32.totalorder %s9, 6
    %s16 = sphi 0, %s35
    %s17 = sphi 0, %s31
    %s18 = sphi 0, %s27
    %s19 = sphi 0, %s16
    %s20 = sphi 0, %s17
    %s21 = sphi 0, %s18
    %s22 = sphi 0, %s19
    %s23 = sphi 0, %s20
    %s24 = sphi 0, %s21
    %s42 = sphi 0, %s44
    %s45 = sphi 0, %s42
    %s46 = sphi 0, %s45
    %s62 = sphi 0, %s46
    %s72 = sphi 0, %s74
    %s75 = sphi 0, %s72
    %s76 = sphi 0, %s75
    %s92 = sphi 0, %s76
    %s102 = sphi 0, %s104
    %s105 = sphi 0, %s102
    %s106 = sphi 0, %s105
    %s122 = sphi 0, %s106
    %s132 = sphi 0, %s134
    %s135 = sphi 0, %s132
    %s136 = sphi 0, %s135
    %s152 = sphi 0, %s136
  $region4: #{table_model_forward.13} parent=0 // loop_header_branch
    %12 = sbr.rel (%p10) target = $region8
  $region5: #{table_model_forward.13} parent=0 // loop_body
    %s14 = ssub.s32 %s9, 1
    %s15 = ssub.s32 %s9, 2
    %s25 = sadd.s32 1, %s18
    %p26 = scmp.ge.s32.totalorder %s25, 1
    %s27 = scalar_select %p26, 0, %s25
    %s28 = sadd.s32 1, %s17
    %s29 = scalar_select %p26, %s28, %s17
    %p30 = scmp.ge.s32.totalorder %s29, 2
    %s31 = scalar_select %p30, 0, %s29
    %s32 = sadd.s32 1, %s16
    %s33 = scalar_select %p30, %s32, %s16
    %p34 = scmp.ge.s32.totalorder %s33, 2
    %s35 = scalar_select %p34, 0, %s33
    %s36 = ssub.s32 %s16, %s35
    %s37 = ssub.s32 %s18, %s27
    %s38 = sor.u32 %s36, %s37
    %s39 = ssub.s32 %s17, %s31
    %s40 = sor.u32 %s38, %s39
    %p41 = scmp.eq.s32.totalorder %s40, 0
    %s43 = sadd.s32 %s42, 1
    %s44 = scalar_select %p41, %s42, %s43
    %p47 = pneg %p41
    %p48 = scmp.eq.s32.totalorder %s9, 3
    %p49 = por %p47, %p48
    %p50 = scmp.ne.s32.totalorder %s42, %s45
    %p51 = scmp.eq.s32.totalorder %s9, 0
    %p52 = por %p50, %p51
    %p53 = scmp.ne.s32.totalorder %s42, %s45
    %p54 = scmp.eq.s32.totalorder %s14, 3
    %p55 = por %p53, %p54
    %p56 = scmp.ne.s32.totalorder %s45, %s46
    %p57 = scmp.eq.s32.totalorder %s14, 0
    %p58 = por %p56, %p57
    %p59 = scmp.ne.s32.totalorder %s45, %s46
    %p60 = scmp.eq.s32.totalorder %s15, 3
    %p61 = por %p59, %p60
    %p63 = scmp.ne.s32.totalorder %s46, %s62
    %p64 = scmp.eq.s32.totalorder %s15, 0
    %p65 = por %p63, %p64
    %s66 = sadd.s32 %s17, 2
    %s67 = sadd.s32 %s31, 2
    %s68 = ssub.s32 %s16, %s35
    %s69 = ssub.s32 %s66, %s67
    %s70 = sor.u32 %s68, %s69
    %p71 = scmp.eq.s32.totalorder %s70, 0
    %s73 = sadd.s32 %s72, 1
    %s74 = scalar_select %p71, %s72, %s73
    %p77 = pneg %p71
    %p78 = scmp.eq.s32.totalorder %s9, 3
    %p79 = por %p77, %p78
    %p80 = scmp.ne.s32.totalorder %s72, %s75
    %p81 = scmp.eq.s32.totalorder %s9, 0
    %p82 = por %p80, %p81
    %p83 = scmp.ne.s32.totalorder %s72, %s75
    %p84 = scmp.eq.s32.totalorder %s14, 3
    %p85 = por %p83, %p84
    %p86 = scmp.ne.s32.totalorder %s75, %s76
    %p87 = scmp.eq.s32.totalorder %s14, 0
    %p88 = por %p86, %p87
    %p89 = scmp.ne.s32.totalorder %s75, %s76
    %p90 = scmp.eq.s32.totalorder %s15, 3
    %p91 = por %p89, %p90
    %p93 = scmp.ne.s32.totalorder %s76, %s92
    %p94 = scmp.eq.s32.totalorder %s15, 0
    %p95 = por %p93, %p94
    %s96 = sadd.s32 %s17, 4
    %s97 = sadd.s32 %s31, 4
    %s98 = ssub.s32 %s16, %s35
    %s99 = ssub.s32 %s96, %s97
    %s100 = sor.u32 %s98, %s99
    %p101 = scmp.eq.s32.totalorder %s100, 0
    %s103 = sadd.s32 %s102, 1
    %s104 = scalar_select %p101, %s102, %s103
    %p107 = pneg %p101
    %p108 = scmp.eq.s32.totalorder %s9, 3
    %p109 = por %p107, %p108
    %p110 = scmp.ne.s32.totalorder %s102, %s105
    %p111 = scmp.eq.s32.totalorder %s9, 0
    %p112 = por %p110, %p111
    %p113 = scmp.ne.s32.totalorder %s102, %s105
    %p114 = scmp.eq.s32.totalorder %s14, 3
    %p115 = por %p113, %p114
    %p116 = scmp.ne.s32.totalorder %s105, %s106
    %p117 = scmp.eq.s32.totalorder %s14, 0
    %p118 = por %p116, %p117
    %p119 = scmp.ne.s32.totalorder %s105, %s106
    %p120 = scmp.eq.s32.totalorder %s15, 3
    %p121 = por %p119, %p120
    %p123 = scmp.ne.s32.totalorder %s106, %s122
    %p124 = scmp.eq.s32.totalorder %s15, 0
    %p125 = por %p123, %p124
    %s126 = ssub.s32 %s16, %s35
    %s127 = ssub.s32 %s18, %s27
    %s128 = sor.u32 %s126, %s127
    %s129 = ssub.s32 %s17, %s31
    %s130 = sor.u32 %s128, %s129
    %p131 = scmp.eq.s32.totalorder %s130, 0
    %s133 = sadd.s32 %s132, 1
    %s134 = scalar_select %p131, %s132, %s133
    %p137 = pneg %p131
    %p138 = scmp.eq.s32.totalorder %s9, 3
    %p139 = por %p137, %p138
    %p140 = scmp.ne.s32.totalorder %s132, %s135
    %p141 = scmp.eq.s32.totalorder %s9, 0
    %p142 = por %p140, %p141
    %p143 = scmp.ne.s32.totalorder %s132, %s135
    %p144 = scmp.eq.s32.totalorder %s14, 3
    %p145 = por %p143, %p144
    %p146 = scmp.ne.s32.totalorder %s135, %s136
    %p147 = scmp.eq.s32.totalorder %s14, 0
    %p148 = por %p146, %p147
    %p149 = scmp.ne.s32.totalorder %s135, %s136
    %p150 = scmp.eq.s32.totalorder %s15, 3
    %p151 = por %p149, %p150
    %p153 = scmp.ne.s32.totalorder %s136, %s152
    %p154 = scmp.eq.s32.totalorder %s15, 0
    %p155 = por %p153, %p154
    %p156 = scmp.le.s32.totalorder 1, %s9
    %p157 = scmp.lt.s32.totalorder %s9, 5
    %p158 = pnand %p156, %p157
    %p159 = pneg %p158
    // Predicated region
    $region9: #{table_model_forward.13} parent=5 // pred_check
      _
    $region10: #{table_model_forward.13} parent=5 // pred_check_branch
      %161 = sbr.rel (%p158) target = $region12
    $region11: #{table_model_forward.13} parent=5 // pred_region
      %s162 = ssub.s32 %s9, 1
    $region12: #{table_model_forward.13} parent=5 // pred_fallthru
      _
    %p163 = scmp.lt.s32.totalorder %s9, 4
    // Predicated region
    $region13: #{table_model_forward.13} parent=5 // pred_check
      %p164 = pneg %p163
    $region14: #{table_model_forward.13} parent=5 // pred_check_branch
      %166 = sbr.rel (%p164) target = $region16
    $region15: #{table_model_forward.13} parent=5 // pred_region
      // Predicated region
      $region17: #{table_model_forward.13} parent=15 // pred_check
        %p167 = pneg %p52
      $region18: #{table_model_forward.13} parent=15 // pred_check_branch
        %169 = sbr.rel (%p167) target = $region20
      $region19: #{table_model_forward.13} parent=15 // pred_region
        %p170 = scmp.lt.s32.totalorder %s16, 1
        %s171 = scalar_select %p170, %s16, 1
        %p172 = scmp.lt.s32.totalorder %s18, 0
        %s173 = scalar_select %p172, %s18, 0
        %p174 = scmp.lt.s32.totalorder %s17, 5
        %s175 = scalar_select %p174, %s17, 5
        %s176 = smul.addr %s173, 6
        %s177 = sadd.s32 %s175, %s176
        %s178 = smul.addr %s171, 6
        %s179 = sadd.s32 %s177, %s178
        %s180 = smul.addr %s179, 4
        %s181 = scalar_lea.vmem %s0, %s180
      $region20: #{table_model_forward.13} parent=15 // pred_fallthru
        _
      // Predicated region
      $region21: #{table_model_forward.13} parent=15 // pred_check
        %p182 = pneg %p82
      $region22: #{table_model_forward.13} parent=15 // pred_check_branch
        %184 = sbr.rel (%p182) target = $region24
      $region23: #{table_model_forward.13} parent=15 // pred_region
        %s185 = sadd.s32 %s17, 2
        %p186 = scmp.lt.s32.totalorder %s16, 1
        %s187 = scalar_select %p186, %s16, 1
        %p188 = scmp.lt.s32.totalorder %s185, 5
        %s189 = scalar_select %p188, %s185, 5
        %s190 = smul.addr %s187, 6
        %s191 = sadd.s32 %s189, %s190
        %s192 = smul.addr %s191, 4
        %s193 = scalar_lea.vmem %s1, %s192
        %s194 = sadd.s32 %s17, 2
      $region24: #{table_model_forward.13} parent=15 // pred_fallthru
        _
      // Predicated region
      $region25: #{table_model_forward.13} parent=15 // pred_check
        %p195 = pneg %p112
      $region26: #{table_model_forward.13} parent=15 // pred_check_branch
        %197 = sbr.rel (%p195) target = $region28
      $region27: #{table_model_forward.13} parent=15 // pred_region
        %s198 = sadd.s32 %s17, 4
        %p199 = scmp.lt.s32.totalorder %s16, 1
        %s200 = scalar_select %p199, %s16, 1
        %p201 = scmp.lt.s32.totalorder %s198, 5
        %s202 = scalar_select %p201, %s198, 5
        %s203 = smul.addr %s200, 6
        %s204 = sadd.s32 %s202, %s203
        %s205 = smul.addr %s204, 4
        %s206 = scalar_lea.vmem %s2, %s205
        %s207 = sadd.s32 %s17, 4
      $region28: #{table_model_forward.13} parent=15 // pred_fallthru
        _
    $region16: #{table_model_forward.13} parent=5 // pred_fallthru
      _
    %p208 = scmp.le.s32.totalorder 1, %s9
    %p209 = scmp.lt.s32.totalorder %s9, 5
    %p210 = pnand %p208, %p209
    %p211 = pneg %p210
    // Predicated region
    $region29: #{table_model_forward.13} parent=5 // pred_check
      _
    $region30: #{table_model_forward.13} parent=5 // pred_check_branch
      %213 = sbr.rel (%p210) target = $region32
    $region31: #{table_model_forward.13} parent=5 // pred_region
      %s214 = ssub.s32 %s9, 1
      %p215 = scmp.lt.s32.totalorder %s19, 1
      %s216 = scalar_select %p215, %s19, 1
      %p217 = scmp.lt.s32.totalorder %s21, 0
      %s218 = scalar_select %p217, %s21, 0
      %p219 = scmp.lt.s32.totalorder %s20, 5
      %s220 = scalar_select %p219, %s20, 5
      %s221 = smul.addr %s218, 6
      %s222 = sadd.s32 %s220, %s221
      %s223 = smul.addr %s216, 6
      %s224 = sadd.s32 %s222, %s223
      %s225 = smul.addr %s224, 4
      %s226 = scalar_lea.vmem %s0, %s225
      %p227 = pneg %p58
      %p228 = pneg %p55
      %s229 = sadd.s32 %s20, 2
      %p230 = scmp.lt.s32.totalorder %s19, 1
      %s231 = scalar_select %p230, %s19, 1
      %p232 = scmp.lt.s32.totalorder %s229, 5
      %s233 = scalar_select %p232, %s229, 5
      %s234 = smul.addr %s231, 6
      %s235 = sadd.s32 %s233, %s234
      %s236 = smul.addr %s235, 4
      %s237 = scalar_lea.vmem %s1, %s236
      %p238 = pneg %p88
      %p239 = pneg %p85
      %s240 = sadd.s32 %s20, 4
      %p241 = scmp.lt.s32.totalorder %s19, 1
      %s242 = scalar_select %p241, %s19, 1
      %p243 = scmp.lt.s32.totalorder %s240, 5
      %s244 = scalar_select %p243, %s240, 5
      %s245 = smul.addr %s242, 6
      %s246 = sadd.s32 %s244, %s245
      %s247 = smul.addr %s246, 4
      %s248 = scalar_lea.vmem %s2, %s247
      %p249 = pneg %p118
      %p250 = pneg %p115
      %p251 = pneg %p148
      %p252 = pneg %p145
      %p253 = scmp.lt.s32.totalorder %s19, 1
      %s254 = scalar_select %p253, %s19, 1
      %p255 = scmp.lt.s32.totalorder %s21, 0
      %s256 = scalar_select %p255, %s21, 0
      %p257 = scmp.lt.s32.totalorder %s20, 1
      %s258 = scalar_select %p257, %s20, 1
      %s259 = smul.addr %s256, 2
      %s260 = sadd.s32 %s258, %s259
      %s261 = smul.addr %s254, 2
      %s262 = sadd.s32 %s260, %s261
      %s263 = smul.addr %s262, 4
      %s264 = scalar_lea.vmem %s3, %s263
      %p265 = scmp.lt.s32.totalorder %s19, 1
      %s266 = scalar_select %p265, %s19, 1
      %p267 = scmp.lt.s32.totalorder %s21, 0
      %s268 = scalar_select %p267, %s21, 0
      %p269 = scmp.lt.s32.totalorder %s20, 5
      %s270 = scalar_select %p269, %s20, 5
      %s271 = smul.addr %s268, 6
      %s272 = sadd.s32 %s270, %s271
      %s273 = smul.addr %s266, 6
      %s274 = sadd.s32 %s272, %s273
      %s275 = smul.addr %s274, 4
      %s276 = scalar_lea.vmem %s0, %s275
      %s277 = sadd.s32 %s20, 2
      %p278 = scmp.lt.s32.totalorder %s19, 1
      %s279 = scalar_select %p278, %s19, 1
      %p280 = scmp.lt.s32.totalorder %s277, 5
      %s281 = scalar_select %p280, %s277, 5
      %s282 = smul.addr %s279, 6
      %s283 = sadd.s32 %s281, %s282
      %s284 = smul.addr %s283, 4
      %s285 = scalar_lea.vmem %s1, %s284
      %s286 = sadd.s32 %s20, 2
      %s287 = sadd.s32 %s20, 4
      %p288 = scmp.lt.s32.totalorder %s19, 1
      %s289 = scalar_select %p288, %s19, 1
      %p290 = scmp.lt.s32.totalorder %s287, 5
      %s291 = scalar_select %p290, %s287, 5
      %s292 = smul.addr %s289, 6
      %s293 = sadd.s32 %s291, %s292
      %s294 = smul.addr %s293, 4
      %s295 = scalar_lea.vmem %s2, %s294
      %s296 = sadd.s32 %s20, 4
      %p297 = scmp.lt.s32.totalorder %s19, 1
      %s298 = scalar_select %p297, %s19, 1
      %p299 = scmp.lt.s32.totalorder %s21, 0
      %s300 = scalar_select %p299, %s21, 0
      %p301 = scmp.lt.s32.totalorder %s20, 1
      %s302 = scalar_select %p301, %s20, 1
      %s303 = smul.addr %s300, 2
      %s304 = sadd.s32 %s302, %s303
      %s305 = smul.addr %s298, 2
      %s306 = sadd.s32 %s304, %s305
      %s307 = smul.addr %s306, 4
      %s308 = scalar_lea.vmem %s3, %s307
      %v310 = vld [vmem:[%s276] sm:$0xf]
      %v311 = vld [vmem:[%s285] sm:$0xf]
      %v312 = vld [vmem:[%s295] sm:$0xf]
      %313 = vmatprep.subr.bf16.mxu0 0
      %314 = vmatpush1.bf16.xpose.msra.mxu0 %v311
      %315 = vmatprep.subr.bf16.mxu0 0
      %316 = vmatpush1.bf16.xpose.msra.mxu0 0
      %317 = vmatprep.subr.bf16.mxu0 0
      %318 = vmatpush1.bf16.xpose.msra.mxu0 0
      %319 = vmatprep.subr.bf16.mxu0 0
      %320 = vmatpush1.bf16.xpose.msra.mxu0 0
      %321 = vmatprep.subr.bf16.mxu0 0
      %322 = vmatpush1.bf16.xpose.msra.mxu0 0
      %323 = vmatprep.subr.bf16.mxu0 0
      %324 = vmatpush1.bf16.xpose.msra.mxu0 0
      %325 = vmatprep.subr.bf16.mxu0 0
      %326 = vmatpush1.bf16.xpose.msra.mxu0 0
      %327 = vmatprep.subr.bf16.mxu0 0
      %328 = vmatpush1.bf16.xpose.msra.mxu0 0
      %329 = vmatprep.subr.bf16.mxu0 0
      %330 = vmatpush1.bf16.xpose.msra.mxu0 0
      %331 = vmatprep.subr.bf16.mxu0 0
      %332 = vmatpush1.bf16.xpose.msra.mxu0 0
      %333 = vmatprep.subr.bf16.mxu0 0
      %334 = vmatpush1.bf16.xpose.msra.mxu0 0
      %335 = vmatprep.subr.bf16.mxu0 0
      %336 = vmatpush1.bf16.xpose.msra.mxu0 0
      %337 = vmatprep.subr.bf16.mxu0 0
      %338 = vmatpush1.bf16.xpose.msra.mxu0 0
      %339 = vmatprep.subr.bf16.mxu0 0
      %340 = vmatpush1.bf16.xpose.msra.mxu0 0
      %341 = vmatprep.subr.bf16.mxu0 0
      %342 = vmatpush1.bf16.xpose.msra.mxu0 0
      %343 = vmatprep.subr.bf16.mxu0 0
      %344 = vmatpush1.bf16.xpose.msra.mxu0 0
      %345 = vmatprep.mubr.bf16.mxu0 0
      %346 = vmatmul.mubr.bf16.gmra.mrb[0].mxu0 %v310
      %v347 = vpop.f32.mrb[0].mxu0
      %v348 = vadd.f32 0.0, %v347
      %v349 = vpop.f32.mrb[0].mxu0
      %v350 = vpop.f32.mrb[0].mxu0
      %v351 = vpop.f32.mrb[0].mxu0
      %352 = vdwg.mxu0
      %vm353 = vcmask 64512
      %v354 = vsel %vm353, %v348, -inf
      %355 = vmax.xlane.f32.xlu0 %v354
      %v356 = vpop.xlane.xlu0 %355
      %v357 = vsub.f32 %v348, %v356
      %v358 = vmul.f32 %v357, 1.442695
      %v359 = vpow.pop %v358
      %v360 = vsel %vm353, %v359, 0.0
      %361 = vadd.xlane.f32.xlu0 %v360
      %v362 = vpop.xlane.xlu0 %361
      %v363 = vrcp.pop %v362
      %v364 = vmul.f32 %v359, %v363
      %v365 = vpack.c.bf16 %v364, %v364
      %v367 = vsel %vm353, %v365, 0
      %vm369 = vcmask 1043456
      %v371 = vsel %vm369, %v312, 0
      %373 = vmatprep.subr.bf16.mxu0 0
      %374 = vmatpush1.bf16.msra.mxu0 %v371
      %375 = vmatprep.subr.bf16.mxu0 0
      %376 = vmatpush1.bf16.msra.mxu0 0
      %377 = vmatprep.subr.bf16.mxu0 0
      %378 = vmatpush1.bf16.msra.mxu0 0
      %379 = vmatprep.subr.bf16.mxu0 0
      %380 = vmatpush1.bf16.msra.mxu0 0
      %381 = vmatprep.subr.bf16.mxu0 0
      %382 = vmatpush1.bf16.msra.mxu0 0
      %383 = vmatprep.subr.bf16.mxu0 0
      %384 = vmatpush1.bf16.msra.mxu0 0
      %385 = vmatprep.subr.bf16.mxu0 0
      %386 = vmatpush1.bf16.msra.mxu0 0
      %387 = vmatprep.subr.bf16.mxu0 0
      %388 = vmatpush1.bf16.msra.mxu0 0
      %389 = vmatprep.subr.bf16.mxu0 0
      %390 = vmatpush1.bf16.msra.mxu0 0
      %391 = vmatprep.subr.bf16.mxu0 0
      %392 = vmatpush1.bf16.msra.mxu0 0
      %393 = vmatprep.subr.bf16.mxu0 0
      %394 = vmatpush1.bf16.msra.mxu0 0
      %395 = vmatprep.subr.bf16.mxu0 0
      %396 = vmatpush1.bf16.msra.mxu0 0
      %397 = vmatprep.subr.bf16.mxu0 0
      %398 = vmatpush1.bf16.msra.mxu0 0
      %399 = vmatprep.subr.bf16.mxu0 0
      %400 = vmatpush1.bf16.msra.mxu0 0
      %401 = vmatprep.subr.bf16.mxu0 0
      %402 = vmatpush1.bf16.msra.mxu0 0
      %403 = vmatprep.subr.bf16.mxu0 0
      %404 = vmatpush1.bf16.msra.mxu0 0
      %405 = vmatprep.mubr.bf16.mxu0 0
      %406 = vmatmul.mubr.bf16.gmra.mrb[0].mxu0 %v367
      %v407 = vpop.f32.mrb[0].mxu0
      %v408 = vadd.f32 0.0, %v407
      %v409 = vpop.f32.mrb[0].mxu0
      %v410 = vpop.f32.mrb[0].mxu0
      %v411 = vpop.f32.mrb[0].mxu0
      %412 = vdwg.mxu0
      %v413 = vpack.c.bf16 %v408, %v408
      %414 = vst [vmem:[%s308] sm:$0xf] %v413
      %p415 = scmp.lt.s32.totalorder %s19, 1
      %s416 = scalar_select %p415, %s19, 1
      %p417 = scmp.lt.s32.totalorder %s21, 0
      %s418 = scalar_select %p417, %s21, 0
      %p419 = scmp.lt.s32.totalorder %s20, 1
      %s420 = scalar_select %p419, %s20, 1
      %s421 = smul.addr %s418, 2
      %s422 = sadd.s32 %s420, %s421
      %s423 = smul.addr %s416, 2
      %s424 = sadd.s32 %s422, %s423
      %s425 = smul.addr %s424, 4
      %s426 = scalar_lea.vmem %s3, %s425
      // Predicated region
      $region33: #{table_model_forward.13} parent=31 // pred_check
        %p427 = pneg %p145
      $region34: #{table_model_forward.13} parent=31 // pred_check_branch
        %429 = sbr.rel (%p427) target = $region36
      $region35: #{table_model_forward.13} parent=31 // pred_region
        _
      $region36: #{table_model_forward.13} parent=31 // pred_fallthru
        _
    $region32: #{table_model_forward.13} parent=5 // pred_fallthru
      _
    %p430 = scmp.le.s32.totalorder 2, %s9
    // Predicated region
    $region37: #{table_model_forward.13} parent=5 // pred_check
      %p431 = pneg %p430
    $region38: #{table_model_forward.13} parent=5 // pred_check_branch
      %433 = sbr.rel (%p431) target = $region40
    $region39: #{table_model_forward.13} parent=5 // pred_region
      %s434 = ssub.s32 %s9, 2
      // Predicated region
      $region41: #{table_model_forward.13} parent=39 // pred_check
        %p435 = pneg %p151
      $region42: #{table_model_forward.13} parent=39 // pred_check_branch
        %437 = sbr.rel (%p435) target = $region44
      $region43: #{table_model_forward.13} parent=39 // pred_region
        %p438 = scmp.lt.s32.totalorder %s22, 1
        %s439 = scalar_select %p438, %s22, 1
        %p440 = scmp.lt.s32.totalorder %s24, 0
        %s441 = scalar_select %p440, %s24, 0
        %p442 = scmp.lt.s32.totalorder %s23, 1
        %s443 = scalar_select %p442, %s23, 1
        %s444 = smul.addr %s441, 2
        %s445 = sadd.s32 %s443, %s444
        %s446 = smul.addr %s439, 2
        %s447 = sadd.s32 %s445, %s446
        %s448 = smul.addr %s447, 4
        %s449 = scalar_lea.vmem %s3, %s448
      $region44: #{table_model_forward.13} parent=39 // pred_fallthru
        _
    $region40: #{table_model_forward.13} parent=5 // pred_fallthru
      _
  $region6: #{table_model_forward.13} parent=0 // loop_footer
    %s13 = sadd.s32 1, %s9
  $region7: #{table_model_forward.13} parent=0 // loop_footer_branch
    %8 = sbr.rel target = $region3
  $region8: #{table_model_forward.13} parent=0 // loop_exit
    _

// kernel: table_model_forward.11
$region0: #{table_model_forward.11}
  #allocation0 [shape = 'u32[]', space=smem, size = 0x4, offset = 0x4, fixed_abs, tag = 'smem constant byte address 0x4 - core index']
  #allocation1 [shape = 'u32[144,128]{1,0:T(1,128)}', space=vmem, size = 0x12000, scoped, tag = 'internal scratch']
  %s0 = inlined_call_operand.vmem [shape: bf16[16,256], index: 0, kind: input, shape index: {}]
  %s1 = inlined_call_operand.vmem [shape: f32[1,256], index: 1, kind: input, shape index: {}]
  %s2 = inlined_call_operand.vmem [shape: f32[1,256], index: 2, kind: input, shape index: {}]
  %s3 = inlined_call_operand.vmem [shape: bf16[16,256], index: 3, kind: output, shape index: {}]
  %s4 = sld [smem:[#allocation0]]
  $region22: #{table_model_forward.11} parent=0
    _
  %s6 = ssub.s32 1, %s4
  %s7 = scalar_select 0, %s6, %s4
  // Predicated region
  $region2: #{table_model_forward.11} parent=0 // pred_check
    _
  $region3: #{table_model_forward.11} parent=0 // pred_check_branch
    %9 = sbr.rel (0) target = $region5
  $region4: #{table_model_forward.11} parent=0 // pred_region
    _
  $region5: #{table_model_forward.11} parent=0 // pred_fallthru
    _
  // Predicated region
  $region6: #{table_model_forward.11} parent=0 // pred_check
    _
  $region7: #{table_model_forward.11} parent=0 // pred_check_branch
    %11 = sbr.rel (0) target = $region9
  $region8: #{table_model_forward.11} parent=0 // pred_region
    _
  $region9: #{table_model_forward.11} parent=0 // pred_fallthru
    _
  // Predicated region
  $region10: #{table_model_forward.11} parent=0 // pred_check
    _
  $region11: #{table_model_forward.11} parent=0 // pred_check_branch
    %13 = sbr.rel (0) target = $region13
  $region12: #{table_model_forward.11} parent=0 // pred_region
    _
  $region13: #{table_model_forward.11} parent=0 // pred_fallthru
    _
  %v14 = vld [vmem:[%s0] sm:$0xff]
  %v15 = vld [vmem:[%s0 + $0x8] sm:$0xff]
  %v16 = vunpack.c.l.bf16 %v14
  %v17 = vunpack.c.h.bf16 %v14
  %v18 = vunpack.c.l.bf16 %v15
  %v19 = vunpack.c.h.bf16 %v15
  %v20 = vadd.f32 %v16, %v17
  %21 = vadd.xlane.f32.xlu0 %v20
  %v22 = vpop.xlane.xlu0 %21
  %v23 = vadd.f32 %v18, %v19
  %24 = vadd.xlane.f32.xlu0 %v23
  %v25 = vpop.xlane.xlu0 %24
  %v26 = vrcp.pop 256.0
  %v27 = vmul.f32 %v22, %v26
  %v28 = vmul.f32 %v25, %v26
  %v29 = vsub.f32 %v16, %v27
  %v30 = vsub.f32 %v17, %v27
  %v31 = vsub.f32 %v18, %v28
  %v32 = vsub.f32 %v19, %v28
  %v33 = vmul.f32 %v29, %v29
  %v34 = vmul.f32 %v30, %v30
  %v35 = vmul.f32 %v31, %v31
  %v36 = vmul.f32 %v32, %v32
  %v37 = vadd.f32 %v33, %v34
  %38 = vadd.xlane.f32.xlu0 %v37
  %v39 = vpop.xlane.xlu0 %38
  %v40 = vadd.f32 %v35, %v36
  %41 = vadd.xlane.f32.xlu0 %v40
  %v42 = vpop.xlane.xlu0 %41
  %v43 = vmul.f32 %v39, %v26
  %v44 = vmul.f32 %v42, %v26
  %v45 = vadd.f32 %v43, 1e-05
  %v46 = vadd.f32 %v44, 1e-05
  %v47 = vrsqrt.pop %v45
  %v48 = vrsqrt.pop %v46
  %v49 = vmul.f32 %v29, %v47
  %v50 = vmul.f32 %v30, %v47
  %v51 = vmul.f32 %v31, %v48
  %v52 = vmul.f32 %v32, %v48
  %v53 = vld [vmem:[%s1] sm:$0x3]
  %v55 = vlaneseq
  %v56 = vshrl.u32 %v55, 7
  %v57 = vsub.s32 0, %v56
  %v58 = vrot.slane %v53, %v57
  %v59 = vlaneseq
  %v60 = vshrl.u32 %v59, 7
  %v61 = vsub.s32 1, %v60
  %v62 = vrot.slane %v53, %v61
  %v65 = vmul.f32 %v49, %v58
  %v66 = vmul.f32 %v50, %v62
  %v67 = vmul.f32 %v51, %v58
  %v68 = vmul.f32 %v52, %v62
  %v69 = vld [vmem:[%s2] sm:$0x3]
  %v71 = vlaneseq
  %v72 = vshrl.u32 %v71, 7
  %v73 = vsub.s32 0, %v72
  %v74 = vrot.slane %v69, %v73
  %v75 = vlaneseq
  %v76 = vshrl.u32 %v75, 7
  %v77 = vsub.s32 1, %v76
  %v78 = vrot.slane %v69, %v77
  %v81 = vadd.f32 %v65, %v74
  %v82 = vadd.f32 %v66, %v78
  %v83 = vadd.f32 %v67, %v74
  %v84 = vadd.f32 %v68, %v78
  %v85 = vpack.c.bf16 %v83, %v81
  %v86 = vpack.c.bf16 %v84, %v82
  %v89 = vunpack.c.l.b16 %v85
  %v90 = vunpack.c.l.b16 %v86
  %v91 = vunpack.c.h.b16 %v85
  %v92 = vunpack.c.h.b16 %v86
  %v93 = vpack.c.b16 %v90, %v89
  %v94 = vpack.c.b16 %v92, %v91
  %97 = vst [vmem:[%s3] sm:$0xff] %v93
  %98 = vst [vmem:[%s3 + $0x8] sm:$0xff] %v94
  // Predicated region
  $region14: #{table_model_forward.11} parent=0 // pred_check
    _
  $region15: #{table_model_forward.11} parent=0 // pred_check_branch
    %100 = sbr.rel (0) target = $region17
  $region16: #{table_model_forward.11} parent=0 // pred_region
    _
  $region17: #{table_model_forward.11} parent=0 // pred_fallthru
    _
  // Predicated region
  $region18: #{table_model_forward.11} parent=0 // pred_check
    _
  $region19: #{table_model_forward.11} parent=0 // pred_check_branch
    %102 = sbr.rel (0) target = $region21
  $region20: #{table_model_forward.11} parent=0 // pred_region
    _
  $region21: #{table_model_forward.11} parent=0 // pred_fallthru
    _

// kernel: table_model_forward.14
$region0: #{table_model_forward.14}
  #allocation0 [shape = 'u32[]', space=smem, size = 0x4, offset = 0x4, fixed_abs, tag = 'smem constant byte address 0x4 - core index']
  #allocation1 [shape = 'u32[144,128]{1,0:T(1,128)}', space=vmem, size = 0x12000, scoped, tag = 'internal scratch']
  #allocation2 [shape = 'f32[16,256]{1,0:T(8,128)}', space=vmem, size = 0x4000, scoped, tag = 'scratch operand']
  %s0 = inlined_call_operand.vmem [shape: bf16[16,256], index: 0, kind: input, shape index: {}]
  %s1 = inlined_call_operand.vmem [shape: bf16[256,256], index: 1, kind: input, shape index: {}]
  %s2 = inlined_call_operand.vmem [shape: f32[1,256], index: 2, kind: input, shape index: {}]
  %s3 = inlined_call_operand.vmem [shape: bf16[16,256], index: 3, kind: input, shape index: {}]
  %s4 = inlined_call_operand.vmem [shape: f32[1,256], index: 4, kind: input, shape index: {}]
  %s5 = inlined_call_operand.vmem [shape: f32[1,256], index: 5, kind: input, shape index: {}]
  %s6 = inlined_call_operand.vmem [shape: bf16[16,256], index: 6, kind: output, shape index: {}]
  %s7 = sld [smem:[#allocation0]]
  $region42: #{table_model_forward.14} parent=0
    _
  %s9 = ssub.s32 1, %s7
  %s10 = scalar_select 0, %s9, %s7
  // Predicated region
  $region2: #{table_model_forward.14} parent=0 // pred_check
    _
  $region3: #{table_model_forward.14} parent=0 // pred_check_branch
    %12 = sbr.rel (0) target = $region5
  $region4: #{table_model_forward.14} parent=0 // pred_region
    _
  $region5: #{table_model_forward.14} parent=0 // pred_fallthru
    _
  // Predicated region
  $region6: #{table_model_forward.14} parent=0 // pred_check
    _
  $region7: #{table_model_forward.14} parent=0 // pred_check_branch
    %14 = sbr.rel (0) target = $region9
  $region8: #{table_model_forward.14} parent=0 // pred_region
    _
  $region9: #{table_model_forward.14} parent=0 // pred_fallthru
    _
  // Predicated region
  $region10: #{table_model_forward.14} parent=0 // pred_check
    _
  $region11: #{table_model_forward.14} parent=0 // pred_check_branch
    %16 = sbr.rel (0) target = $region13
  $region12: #{table_model_forward.14} parent=0 // pred_region
    _
  $region13: #{table_model_forward.14} parent=0 // pred_fallthru
    _
  // Predicated region
  $region14: #{table_model_forward.14} parent=0 // pred_check
    _
  $region15: #{table_model_forward.14} parent=0 // pred_check_branch
    %18 = sbr.rel (0) target = $region17
  $region16: #{table_model_forward.14} parent=0 // pred_region
    _
  $region17: #{table_model_forward.14} parent=0 // pred_fallthru
    _
  // Predicated region
  $region18: #{table_model_forward.14} parent=0 // pred_check
    _
  $region19: #{table_model_forward.14} parent=0 // pred_check_branch
    %20 = sbr.rel (0) target = $region21
  $region20: #{table_model_forward.14} parent=0 // pred_region
    _
  $region21: #{table_model_forward.14} parent=0 // pred_fallthru
    _
  // Predicated region
  $region22: #{table_model_forward.14} parent=0 // pred_check
    _
  $region23: #{table_model_forward.14} parent=0 // pred_check_branch
    %22 = sbr.rel (0) target = $region25
  $region24: #{table_model_forward.14} parent=0 // pred_region
    _
  $region25: #{table_model_forward.14} parent=0 // pred_fallthru
    _
  %p23 = scmp.eq.s32.totalorder 0, 0
  // Predicated region
  $region26: #{table_model_forward.14} parent=0 // pred_check
    %p24 = pneg %p23
  $region27: #{table_model_forward.14} parent=0 // pred_check_branch
    %26 = sbr.rel (%p24) target = $region29
  $region28: #{table_model_forward.14} parent=0 // pred_region
    %27 = vst [vmem:[#allocation2] sm:$0xff] 0.0
    %28 = vst [vmem:[#allocation2 + $0x8] sm:$0xff] 0.0
    %29 = vst [vmem:[#allocation2 + $0x10] sm:$0xff] 0.0
    %30 = vst [vmem:[#allocation2 + $0x18] sm:$0xff] 0.0
  $region29: #{table_model_forward.14} parent=0 // pred_fallthru
    _
  %v31 = vld [vmem:[#allocation2] sm:$0xff]
  %v32 = vld [vmem:[#allocation2 + $0x8] sm:$0xff]
  %v33 = vld [vmem:[#allocation2 + $0x10] sm:$0xff]
  %v34 = vld [vmem:[#allocation2 + $0x18] sm:$0xff]
  %v35 = vld [vmem:[%s0] sm:$0xff]
  %v36 = vld [vmem:[%s0 + $0x8] sm:$0xff]
  %v37 = vld [vmem:[%s1] sm:$0xff]
  %v38 = vld [vmem:[%s1 + $0x8] sm:$0xff]
  %v39 = vld [vmem:[%s1 + $0x10] sm:$0xff]
  %v40 = vld [vmem:[%s1 + $0x18] sm:$0xff]
  %v41 = vld [vmem:[%s1 + $0x20] sm:$0xff]
  %v42 = vld [vmem:[%s1 + $0x28] sm:$0xff]
  %v43 = vld [vmem:[%s1 + $0x30] sm:$0xff]
  %v44 = vld [vmem:[%s1 + $0x38] sm:$0xff]
  %v45 = vld [vmem:[%s1 + $0x40] sm:$0xff]
  %v46 = vld [vmem:[%s1 + $0x48] sm:$0xff]
  %v47 = vld [vmem:[%s1 + $0x50] sm:$0xff]
  %v48 = vld [vmem:[%s1 + $0x58] sm:$0xff]
  %v49 = vld [vmem:[%s1 + $0x60] sm:$0xff]
  %v50 = vld [vmem:[%s1 + $0x68] sm:$0xff]
  %v51 = vld [vmem:[%s1 + $0x70] sm:$0xff]
  %v52 = vld [vmem:[%s1 + $0x78] sm:$0xff]
  %v53 = vld [vmem:[%s1 + $0x80] sm:$0xff]
  %v54 = vld [vmem:[%s1 + $0x88] sm:$0xff]
  %v55 = vld [vmem:[%s1 + $0x90] sm:$0xff]
  %v56 = vld [vmem:[%s1 + $0x98] sm:$0xff]
  %v57 = vld [vmem:[%s1 + $0xa0] sm:$0xff]
  %v58 = vld [vmem:[%s1 + $0xa8] sm:$0xff]
  %v59 = vld [vmem:[%s1 + $0xb0] sm:$0xff]
  %v60 = vld [vmem:[%s1 + $0xb8] sm:$0xff]
  %v61 = vld [vmem:[%s1 + $0xc0] sm:$0xff]
  %v62 = vld [vmem:[%s1 + $0xc8] sm:$0xff]
  %v63 = vld [vmem:[%s1 + $0xd0] sm:$0xff]
  %v64 = vld [vmem:[%s1 + $0xd8] sm:$0xff]
  %v65 = vld [vmem:[%s1 + $0xe0] sm:$0xff]
  %v66 = vld [vmem:[%s1 + $0xe8] sm:$0xff]
  %v67 = vld [vmem:[%s1 + $0xf0] sm:$0xff]
  %v68 = vld [vmem:[%s1 + $0xf8] sm:$0xff]
  %v71 = vunpack.c.l.b16 %v35
  %v72 = vunpack.c.h.b16 %v35
  %v73 = vunpack.c.l.b16 %v36
  %v74 = vunpack.c.h.b16 %v36
  %v75 = vpack.c.b16 %v73, %v71
  %v76 = vpack.c.b16 %v74, %v72
  %v111 = vunpack.c.l.b16 %v37
  %v112 = vunpack.c.h.b16 %v37
  %v113 = vunpack.c.l.b16 %v38
  %v114 = vunpack.c.h.b16 %v38
  %v115 = vunpack.c.l.b16 %v39
  %v116 = vunpack.c.h.b16 %v39
  %v117 = vunpack.c.l.b16 %v40
  %v118 = vunpack.c.h.b16 %v40
  %v119 = vunpack.c.l.b16 %v41
  %v120 = vunpack.c.h.b16 %v41
  %v121 = vunpack.c.l.b16 %v42
  %v122 = vunpack.c.h.b16 %v42
  %v123 = vunpack.c.l.b16 %v43
  %v124 = vunpack.c.h.b16 %v43
  %v125 = vunpack.c.l.b16 %v44
  %v126 = vunpack.c.h.b16 %v44
  %v127 = vunpack.c.l.b16 %v45
  %v128 = vunpack.c.h.b16 %v45
  %v129 = vunpack.c.l.b16 %v46
  %v130 = vunpack.c.h.b16 %v46
  %v131 = vunpack.c.l.b16 %v47
  %v132 = vunpack.c.h.b16 %v47
  %v133 = vunpack.c.l.b16 %v48
  %v134 = vunpack.c.h.b16 %v48
  %v135 = vunpack.c.l.b16 %v49
  %v136 = vunpack.c.h.b16 %v49
  %v137 = vunpack.c.l.b16 %v50
  %v138 = vunpack.c.h.b16 %v50
  %v139 = vunpack.c.l.b16 %v51
  %v140 = vunpack.c.h.b16 %v51
  %v141 = vunpack.c.l.b16 %v52
  %v142 = vunpack.c.h.b16 %v52
  %v143 = vunpack.c.l.b16 %v53
  %v144 = vunpack.c.h.b16 %v53
  %v145 = vunpack.c.l.b16 %v54
  %v146 = vunpack.c.h.b16 %v54
  %v147 = vunpack.c.l.b16 %v55
  %v148 = vunpack.c.h.b16 %v55
  %v149 = vunpack.c.l.b16 %v56
  %v150 = vunpack.c.h.b16 %v56
  %v151 = vunpack.c.l.b16 %v57
  %v152 = vunpack.c.h.b16 %v57
  %v153 = vunpack.c.l.b16 %v58
  %v154 = vunpack.c.h.b16 %v58
  %v155 = vunpack.c.l.b16 %v59
  %v156 = vunpack.c.h.b16 %v59
  %v157 = vunpack.c.l.b16 %v60
  %v158 = vunpack.c.h.b16 %v60
  %v159 = vunpack.c.l.b16 %v61
  %v160 = vunpack.c.h.b16 %v61
  %v161 = vunpack.c.l.b16 %v62
  %v162 = vunpack.c.h.b16 %v62
  %v163 = vunpack.c.l.b16 %v63
  %v164 = vunpack.c.h.b16 %v63
  %v165 = vunpack.c.l.b16 %v64
  %v166 = vunpack.c.h.b16 %v64
  %v167 = vunpack.c.l.b16 %v65
  %v168 = vunpack.c.h.b16 %v65
  %v169 = vunpack.c.l.b16 %v66
  %v170 = vunpack.c.h.b16 %v66
  %v171 = vunpack.c.l.b16 %v67
  %v172 = vunpack.c.h.b16 %v67
  %v173 = vunpack.c.l.b16 %v68
  %v174 = vunpack.c.h.b16 %v68
  %v175 = vpack.c.b16 %v113, %v111
  %v176 = vpack.c.b16 %v114, %v112
  %v177 = vpack.c.b16 %v117, %v115
  %v178 = vpack.c.b16 %v118, %v116
  %v179 = vpack.c.b16 %v121, %v119
  %v180 = vpack.c.b16 %v122, %v120
  %v181 = vpack.c.b16 %v125, %v123
  %v182 = vpack.c.b16 %v126, %v124
  %v183 = vpack.c.b16 %v129, %v127
  %v184 = vpack.c.b16 %v130, %v128
  %v185 = vpack.c.b16 %v133, %v131
  %v186 = vpack.c.b16 %v134, %v132
  %v187 = vpack.c.b16 %v137, %v135
  %v188 = vpack.c.b16 %v138, %v136
  %v189 = vpack.c.b16 %v141, %v139
  %v190 = vpack.c.b16 %v142, %v140
  %v191 = vpack.c.b16 %v145, %v143
  %v192 = vpack.c.b16 %v146, %v144
  %v193 = vpack.c.b16 %v149, %v147
  %v194 = vpack.c.b16 %v150, %v148
  %v195 = vpack.c.b16 %v153, %v151
  %v196 = vpack.c.b16 %v154, %v152
  %v197 = vpack.c.b16 %v157, %v155
  %v198 = vpack.c.b16 %v158, %v156
  %v199 = vpack.c.b16 %v161, %v159
  %v200 = vpack.c.b16 %v162, %v160
  %v201 = vpack.c.b16 %v165, %v163
  %v202 = vpack.c.b16 %v166, %v164
  %v203 = vpack.c.b16 %v169, %v167
  %v204 = vpack.c.b16 %v170, %v168
  %v205 = vpack.c.b16 %v173, %v171
  %v206 = vpack.c.b16 %v174, %v172
  %239 = vmatprep.subr.bf16.mxu0 %v176
  %240 = vmatpush1.bf16.msra.mxu0 %v175
  %241 = vmatprep.subr.bf16.mxu0 %v178
  %242 = vmatpush1.bf16.msra.mxu0 %v177
  %243 = vmatprep.subr.bf16.mxu0 %v180
  %244 = vmatpush1.bf16.msra.mxu0 %v179
  %245 = vmatprep.subr.bf16.mxu0 %v182
  %246 = vmatpush1.bf16.msra.mxu0 %v181
  %247 = vmatprep.subr.bf16.mxu0 %v184
  %248 = vmatpush1.bf16.msra.mxu0 %v183
  %249 = vmatprep.subr.bf16.mxu0 %v186
  %250 = vmatpush1.bf16.msra.mxu0 %v185
  %251 = vmatprep.subr.bf16.mxu0 %v188
  %252 = vmatpush1.bf16.msra.mxu0 %v187
  %253 = vmatprep.subr.bf16.mxu0 %v190
  %254 = vmatpush1.bf16.msra.mxu0 %v189
  %255 = vmatprep.subr.bf16.mxu0 %v192
  %256 = vmatpush1.bf16.msra.mxu0 %v191
  %257 = vmatprep.subr.bf16.mxu0 %v194
  %258 = vmatpush1.bf16.msra.mxu0 %v193
  %259 = vmatprep.subr.bf16.mxu0 %v196
  %260 = vmatpush1.bf16.msra.mxu0 %v195
  %261 = vmatprep.subr.bf16.mxu0 %v198
  %262 = vmatpush1.bf16.msra.mxu0 %v197
  %263 = vmatprep.subr.bf16.mxu0 %v200
  %264 = vmatpush1.bf16.msra.mxu0 %v199
  %265 = vmatprep.subr.bf16.mxu0 %v202
  %266 = vmatpush1.bf16.msra.mxu0 %v201
  %267 = vmatprep.subr.bf16.mxu0 %v204
  %268 = vmatpush1.bf16.msra.mxu0 %v203
  %269 = vmatprep.subr.bf16.mxu0 %v206
  %270 = vmatpush1.bf16.msra.mxu0 %v205
  %271 = vmatprep.mubr.bf16.mxu0 %v76
  %272 = vmatmul.mubr.bf16.gmra.mrb[0].mxu0 %v75
  %v273 = vpop.f32.mrb[0].mxu0
  %v274 = vadd.f32 0.0, %v273
  %v275 = vpop.f32.mrb[0].mxu0
  %v276 = vadd.f32 0.0, %v275
  %v277 = vpop.f32.mrb[0].mxu0
  %v278 = vadd.f32 0.0, %v277
  %v279 = vpop.f32.mrb[0].mxu0
  %v280 = vadd.f32 0.0, %v279
  %281 = vdwg.mxu0
  %v282 = vadd.f32 %v31, %v274
  %v283 = vadd.f32 %v32, %v276
  %v284 = vadd.f32 %v33, %v278
  %v285 = vadd.f32 %v34, %v280
  %286 = vst [vmem:[#allocation2] sm:$0xff] %v282
  %287 = vst [vmem:[#allocation2 + $0x8] sm:$0xff] %v283
  %288 = vst [vmem:[#allocation2 + $0x10] sm:$0xff] %v284
  %289 = vst [vmem:[#allocation2 + $0x18] sm:$0xff] %v285
  // Predicated region
  $region30: #{table_model_forward.14} parent=0 // pred_check
    %p290 = pneg %p23
  $region31: #{table_model_forward.14} parent=0 // pred_check_branch
    %292 = sbr.rel (%p290) target = $region33
  $region32: #{table_model_forward.14} parent=0 // pred_region
    %v293 = vld [vmem:[#allocation2] sm:$0xff]
    %v294 = vld [vmem:[#allocation2 + $0x8] sm:$0xff]
    %v295 = vld [vmem:[#allocation2 + $0x10] sm:$0xff]
    %v296 = vld [vmem:[#allocation2 + $0x18] sm:$0xff]
    %v297 = vld [vmem:[%s2] sm:$0x3]
    %v299 = vlaneseq
    %v300 = vshrl.u32 %v299, 7
    %v301 = vsub.s32 0, %v300
    %v302 = vrot.slane %v297, %v301
    %v303 = vlaneseq
    %v304 = vshrl.u32 %v303, 7
    %v305 = vsub.s32 1, %v304
    %v306 = vrot.slane %v297, %v305
    %v309 = vadd.f32 %v293, %v302
    %v310 = vadd.f32 %v294, %v306
    %v311 = vadd.f32 %v295, %v302
    %v312 = vadd.f32 %v296, %v306
    %v313 = vld [vmem:[%s3] sm:$0xff]
    %v314 = vld [vmem:[%s3 + $0x8] sm:$0xff]
    %v315 = vunpack.c.l.bf16 %v313
    %v316 = vunpack.c.h.bf16 %v313
    %v317 = vunpack.c.l.bf16 %v314
    %v318 = vunpack.c.h.bf16 %v314
    %v319 = vadd.f32 %v309, %v315
    %v320 = vadd.f32 %v310, %v316
    %v321 = vadd.f32 %v311, %v317
    %v322 = vadd.f32 %v312, %v318
    %v323 = vadd.f32 %v319, %v320
    %324 = vadd.xlane.f32.xlu0 %v323
    %v325 = vpop.xlane.xlu0 %324
    %v326 = vadd.f32 %v321, %v322
    %327 = vadd.xlane.f32.xlu0 %v326
    %v328 = vpop.xlane.xlu0 %327
    %v329 = vrcp.pop 256.0
    %v330 = vmul.f32 %v325, %v329
    %v331 = vmul.f32 %v328, %v329
    %v332 = vsub.f32 %v319, %v330
    %v333 = vsub.f32 %v320, %v330
    %v334 = vsub.f32 %v321, %v331
    %v335 = vsub.f32 %v322, %v331
    %v336 = vmul.f32 %v332, %v332
    %v337 = vmul.f32 %v333, %v333
    %v338 = vmul.f32 %v334, %v334
    %v339 = vmul.f32 %v335, %v335
    %v340 = vadd.f32 %v336, %v337
    %341 = vadd.xlane.f32.xlu0 %v340
    %v342 = vpop.xlane.xlu0 %341
    %v343 = vadd.f32 %v338, %v339
    %344 = vadd.xlane.f32.xlu0 %v343
    %v345 = vpop.xlane.xlu0 %344
    %v346 = vmul.f32 %v342, %v329
    %v347 = vmul.f32 %v345, %v329
    %v348 = vadd.f32 %v346, 1e-05
    %v349 = vadd.f32 %v347, 1e-05
    %v350 = vrsqrt.pop %v348
    %v351 = vrsqrt.pop %v349
    %v352 = vmul.f32 %v332, %v350
    %v353 = vmul.f32 %v333, %v350
    %v354 = vmul.f32 %v334, %v351
    %v355 = vmul.f32 %v335, %v351
    %v356 = vld [vmem:[%s4] sm:$0x3]
    %v358 = vlaneseq
    %v359 = vshrl.u32 %v358, 7
    %v360 = vsub.s32 0, %v359
    %v361 = vrot.slane %v356, %v360
    %v362 = vlaneseq
    %v363 = vshrl.u32 %v362, 7
    %v364 = vsub.s32 1, %v363
    %v365 = vrot.slane %v356, %v364
    %v368 = vmul.f32 %v352, %v361
    %v369 = vmul.f32 %v353, %v365
    %v370 = vmul.f32 %v354, %v361
    %v371 = vmul.f32 %v355, %v365
    %v372 = vld [vmem:[%s5] sm:$0x3]
    %v374 = vlaneseq
    %v375 = vshrl.u32 %v374, 7
    %v376 = vsub.s32 0, %v375
    %v377 = vrot.slane %v372, %v376
    %v378 = vlaneseq
    %v379 = vshrl.u32 %v378, 7
    %v380 = vsub.s32 1, %v379
    %v381 = vrot.slane %v372, %v380
    %v384 = vadd.f32 %v368, %v377
    %v385 = vadd.f32 %v369, %v381
    %v386 = vadd.f32 %v370, %v377
    %v387 = vadd.f32 %v371, %v381
    %v388 = vpack.c.bf16 %v386, %v384
    %v389 = vpack.c.bf16 %v387, %v385
    %v392 = vunpack.c.l.b16 %v388
    %v393 = vunpack.c.l.b16 %v389
    %v394 = vunpack.c.h.b16 %v388
    %v395 = vunpack.c.h.b16 %v389
    %v396 = vpack.c.b16 %v393, %v392
    %v397 = vpack.c.b16 %v395, %v394
    %400 = vst [vmem:[%s6] sm:$0xff] %v396
    %401 = vst [vmem:[%s6 + $0x8] sm:$0xff] %v397
  $region33: #{table_model_forward.14} parent=0 // pred_fallthru
    _
  // Predicated region
  $region34: #{table_model_forward.14} parent=0 // pred_check
    _
  $region35: #{table_model_forward.14} parent=0 // pred_check_branch
    %403 = sbr.rel (0) target = $region37
  $region36: #{table_model_forward.14} parent=0 // pred_region
    _
  $region37: #{table_model_forward.14} parent=0 // pred_fallthru
    _
  // Predicated region
  $region38: #{table_model_forward.14} parent=0 // pred_check
    _
  $region39: #{table_model_forward.14} parent=0 // pred_check_branch
    %405 = sbr.rel (0) target = $region41
  $region40: #{table_model_forward.14} parent=0 // pred_region
    _
  $region41: #{table_model_forward.14} parent=0 // pred_fallthru
    _

// kernel: table_model_forward.12
$region0: #{table_model_forward.12}
  #allocation0 [shape = 'u32[]', space=smem, size = 0x4, offset = 0x4, fixed_abs, tag = 'smem constant byte address 0x4 - core index']
  #allocation1 [shape = 'u32[144,128]{1,0:T(1,128)}', space=vmem, size = 0x12000, scoped, tag = 'internal scratch']
  #allocation2 [shape = 'f32[16,384]{1,0:T(8,128)}', space=vmem, size = 0x6000, scoped, tag = 'scratch operand']
  %s0 = inlined_call_operand.vmem [shape: bf16[16,256], index: 0, kind: input, shape index: {}]
  %s1 = inlined_call_operand.hbm [shape: bf16[256,768], index: 1, kind: input, shape index: {}]
  %s2 = inlined_call_operand.vmem [shape: f32[1,768], index: 2, kind: input, shape index: {}]
  %s3 = inlined_call_operand.vmem [shape: bf16[16,768], index: 3, kind: output, shape index: {}]
  %s4 = sld [smem:[#allocation0]]
  $region79: #{table_model_forward.12} parent=0
    _
  %s6 = ssub.s32 1, %s4
  %s7 = scalar_select 0, %s6, %s4
  $region1: #{table_model_forward.12} parent=0
    #allocation3 [shape = 'u8[393216]{0}', space=vmem, size = 0x60000, scoped, tag = 'input window, operand 1']
    #allocation4 [shape = 's32[2]{0}', space=sflag, size = 0x8, scoped, tag = 'scoped memory for table_model_forward.12']
    #allocation5 [shape = 'u8[24576]{0}', space=vmem, size = 0x6000, scoped, tag = 'output window, operand 0']
    %8 = vsyncpa [#allocation4], 0
    %s9 = scalar_lea.sflag [#allocation4], 1
    %10 = vsyncpa %s9, 0
    loop: start=0, step=1, limit=4
    $region2: #{table_model_forward.12} parent=1 // loop_pre_header
      _
    $region3: #{table_model_forward.12} parent=1 // loop_header
      %s12 = sphi 0, %s16
      %p13 = scmp.ge.s32.totalorder %s12, 4
      %s19 = sphi 0, %s38
      %s20 = sphi 0, %s34
      %s21 = sphi 0, %s30
      %s22 = sphi 0, %s19
      %s23 = sphi 0, %s20
      %s24 = sphi 0, %s21
      %s25 = sphi 0, %s22
      %s26 = sphi 0, %s23
      %s27 = sphi 0, %s24
      %s43 = sphi 0, %s45
      %s46 = sphi 0, %s43
      %s47 = sphi 0, %s46
      %s63 = sphi 0, %s47
      %s71 = sphi 0, %s73
      %s74 = sphi 0, %s71
      %s75 = sphi 0, %s74
      %s91 = sphi 0, %s75
      %s97 = sphi 0, %s99
      %s100 = sphi 0, %s97
      %s101 = sphi 0, %s100
      %s117 = sphi 0, %s101
      %s125 = sphi 0, %s127
      %s128 = sphi 0, %s125
      %s129 = sphi 0, %s128
      %s145 = sphi 0, %s129
    $region4: #{table_model_forward.12} parent=1 // loop_header_branch
      %15 = sbr.rel (%p13) target = $region8
    $region5: #{table_model_forward.12} parent=1 // loop_body
      %s17 = ssub.s32 %s12, 1
      %s18 = ssub.s32 %s12, 2
      %s28 = sadd.s32 1, %s21
      %p29 = scmp.ge.s32.totalorder %s28, 1
      %s30 = scalar_select %p29, 0, %s28
      %s31 = sadd.s32 1, %s20
      %s32 = scalar_select %p29, %s31, %s20
      %p33 = scmp.ge.s32.totalorder %s32, 2
      %s34 = scalar_select %p33, 0, %s32
      %s35 = sadd.s32 1, %s19
      %s36 = scalar_select %p33, %s35, %s19
      %p37 = scmp.ge.s32.totalorder %s36, 1
      %s38 = scalar_select %p37, 0, %s36
      %s39 = ssub.s32 %s19, %s38
      %s40 = ssub.s32 %s21, %s30
      %s41 = sor.u32 %s39, %s40
      %p42 = scmp.eq.s32.totalorder %s41, 0
      %s44 = sadd.s32 %s43, 1
      %s45 = scalar_select %p42, %s43, %s44
      %p48 = pneg %p42
      %p49 = scmp.eq.s32.totalorder %s12, 1
      %p50 = por %p48, %p49
      %p51 = scmp.ne.s32.totalorder %s43, %s46
      %p52 = scmp.eq.s32.totalorder %s12, 0
      %p53 = por %p51, %p52
      %p54 = scmp.ne.s32.totalorder %s43, %s46
      %p55 = scmp.eq.s32.totalorder %s17, 1
      %p56 = por %p54, %p55
      %p57 = scmp.ne.s32.totalorder %s46, %s47
      %p58 = scmp.eq.s32.totalorder %s17, 0
      %p59 = por %p57, %p58
      %p60 = scmp.ne.s32.totalorder %s46, %s47
      %p61 = scmp.eq.s32.totalorder %s18, 1
      %p62 = por %p60, %p61
      %p64 = scmp.ne.s32.totalorder %s47, %s63
      %p65 = scmp.eq.s32.totalorder %s18, 0
      %p66 = por %p64, %p65
      %s67 = ssub.s32 %s21, %s30
      %s68 = ssub.s32 %s20, %s34
      %s69 = sor.u32 %s67, %s68
      %p70 = scmp.eq.s32.totalorder %s69, 0
      %s72 = sadd.s32 %s71, 1
      %s73 = scalar_select %p70, %s71, %s72
      %p76 = pneg %p70
      %p77 = scmp.eq.s32.totalorder %s12, 1
      %p78 = por %p76, %p77
      %p79 = scmp.ne.s32.totalorder %s71, %s74
      %p80 = scmp.eq.s32.totalorder %s12, 0
      %p81 = por %p79, %p80
      %p82 = scmp.ne.s32.totalorder %s71, %s74
      %p83 = scmp.eq.s32.totalorder %s17, 1
      %p84 = por %p82, %p83
      %p85 = scmp.ne.s32.totalorder %s74, %s75
      %p86 = scmp.eq.s32.totalorder %s17, 0
      %p87 = por %p85, %p86
      %p88 = scmp.ne.s32.totalorder %s74, %s75
      %p89 = scmp.eq.s32.totalorder %s18, 1
      %p90 = por %p88, %p89
      %p92 = scmp.ne.s32.totalorder %s75, %s91
      %p93 = scmp.eq.s32.totalorder %s18, 0
      %p94 = por %p92, %p93
      %s95 = ssub.s32 %s20, %s34
      %p96 = scmp.eq.s32.totalorder %s95, 0
      %s98 = sadd.s32 %s97, 1
      %s99 = scalar_select %p96, %s97, %s98
      %p102 = pneg %p96
      %p103 = scmp.eq.s32.totalorder %s12, 1
      %p104 = por %p102, %p103
      %p105 = scmp.ne.s32.totalorder %s97, %s100
      %p106 = scmp.eq.s32.totalorder %s12, 0
      %p107 = por %p105, %p106
      %p108 = scmp.ne.s32.totalorder %s97, %s100
      %p109 = scmp.eq.s32.totalorder %s17, 1
      %p110 = por %p108, %p109
      %p111 = scmp.ne.s32.totalorder %s100, %s101
      %p112 = scmp.eq.s32.totalorder %s17, 0
      %p113 = por %p111, %p112
      %p114 = scmp.ne.s32.totalorder %s100, %s101
      %p115 = scmp.eq.s32.totalorder %s18, 1
      %p116 = por %p114, %p115
      %p118 = scmp.ne.s32.totalorder %s101, %s117
      %p119 = scmp.eq.s32.totalorder %s18, 0
      %p120 = por %p118, %p119
      %s121 = ssub.s32 %s19, %s38
      %s122 = ssub.s32 %s20, %s34
      %s123 = sor.u32 %s121, %s122
      %p124 = scmp.eq.s32.totalorder %s123, 0
      %s126 = sadd.s32 %s125, 1
      %s127 = scalar_select %p124, %s125, %s126
      %p130 = pneg %p124
      %p131 = scmp.eq.s32.totalorder %s12, 1
      %p132 = por %p130, %p131
      %p133 = scmp.ne.s32.totalorder %s125, %s128
      %p134 = scmp.eq.s32.totalorder %s12, 0
      %p135 = por %p133, %p134
      %p136 = scmp.ne.s32.totalorder %s125, %s128
      %p137 = scmp.eq.s32.totalorder %s17, 1
      %p138 = por %p136, %p137
      %p139 = scmp.ne.s32.totalorder %s128, %s129
      %p140 = scmp.eq.s32.totalorder %s17, 0
      %p141 = por %p139, %p140
      %p142 = scmp.ne.s32.totalorder %s128, %s129
      %p143 = scmp.eq.s32.totalorder %s18, 1
      %p144 = por %p142, %p143
      %p146 = scmp.ne.s32.totalorder %s129, %s145
      %p147 = scmp.eq.s32.totalorder %s18, 0
      %p148 = por %p146, %p147
      %p149 = scmp.le.s32.totalorder 1, %s12
      %p150 = scmp.lt.s32.totalorder %s12, 3
      %p151 = pnand %p149, %p150
      %p152 = pneg %p151
      // Predicated region
      $region9: #{table_model_forward.12} parent=5 // pred_check
        _
      $region10: #{table_model_forward.12} parent=5 // pred_check_branch
        %154 = sbr.rel (%p151) target = $region12
      $region11: #{table_model_forward.12} parent=5 // pred_region
        %s155 = ssub.s32 %s12, 1
        // Predicated region
        $region13: #{table_model_forward.12} parent=11 // pred_check
          %p156 = pneg %p59
        $region14: #{table_model_forward.12} parent=11 // pred_check_branch
          %158 = sbr.rel (%p156) target = $region16
        $region15: #{table_model_forward.12} parent=11 // pred_region
          %s159 = smul.u32 2, %s22
          %s160 = smul.u32 2, %s24
          %p161 = scmp.lt.s32.totalorder %s159, 1
          %s162 = scalar_select %p161, %s159, 1
          %p163 = scmp.lt.s32.totalorder %s160, 1
          %s164 = scalar_select %p163, %s160, 1
          %s165 = smul.addr %s162, 2
          %s166 = sadd.s32 %s164, %s165
          %s167 = smul.addr %s166, 4
          %s168 = scalar_lea.vmem %s0, %s167
          %s169 = smul.u32 2, %s22
          %s170 = smul.u32 2, %s24
        $region16: #{table_model_forward.12} parent=11 // pred_fallthru
          _
      $region12: #{table_model_forward.12} parent=5 // pred_fallthru
        _
      %p171 = scmp.lt.s32.totalorder %s12, 2
      // Predicated region
      $region17: #{table_model_forward.12} parent=5 // pred_check
        %p172 = pneg %p171
      $region18: #{table_model_forward.12} parent=5 // pred_check_branch
        %174 = sbr.rel (%p172) target = $region20
      $region19: #{table_model_forward.12} parent=5 // pred_region
        // Predicated region
        $region21: #{table_model_forward.12} parent=19 // pred_check
          %p175 = pneg %p81
        $region22: #{table_model_forward.12} parent=19 // pred_check_branch
          %177 = sbr.rel (%p175) target = $region24
        $region23: #{table_model_forward.12} parent=19 // pred_region
          %s178 = sand.u32 %s71, 1
          %s179 = scalar_lea.sflag [#allocation4], %s178
          %s180 = sand.u32 %s71, 1
          %s181 = smul.addr %s180, 384
          %s182 = scalar_lea.vmem [#allocation3], %s181
          %s183 = smul.u32 32, %s21
          %s184 = smul.u32 3, %s20
          %s186 = ssub.s32 6144, 6144
          %187 = vsyncadd %s179, %s186
          %s188 = smul.addr %s183, 6
          %s189 = sadd.s32 %s184, %s188
          %s190 = smul.addr %s189, 64
          %s191 = scalar_lea.hbm %s1, %s190
          %s192 = sshll.u32 %s182, 4
          %s193 = int_to_ptr.vmem [resolvable:$true] %s192
          %198 = dma.hbm_to_vmem [thread:$0]  %s191, 6144, %s193, %s179, 384, 192, 12
        $region24: #{table_model_forward.12} parent=19 // pred_fallthru
          _
        // Predicated region
        $region25: #{table_model_forward.12} parent=19 // pred_check
          %p199 = pneg %p107
        $region26: #{table_model_forward.12} parent=19 // pred_check_branch
          %201 = sbr.rel (%p199) target = $region28
        $region27: #{table_model_forward.12} parent=19 // pred_region
          %s202 = smul.u32 3, %s20
          %p203 = scmp.lt.s32.totalorder %s202, 5
          %s204 = scalar_select %p203, %s202, 5
          %s205 = scalar_lea.vmem %s2, %s204
          %s206 = smul.u32 3, %s20
        $region28: #{table_model_forward.12} parent=19 // pred_fallthru
          _
      $region20: #{table_model_forward.12} parent=5 // pred_fallthru
        _
      %p207 = scmp.le.s32.totalorder 1, %s12
      %p208 = scmp.lt.s32.totalorder %s12, 3
      %p209 = pnand %p207, %p208
      %p210 = pneg %p209
      // Predicated region
      $region29: #{table_model_forward.12} parent=5 // pred_check
        _
      $region30: #{table_model_forward.12} parent=5 // pred_check_branch
        %212 = sbr.rel (%p209) target = $region32
      $region31: #{table_model_forward.12} parent=5 // pred_region
        %s213 = ssub.s32 %s12, 1
        %s214 = sand.u32 %s74, 1
        %s215 = scalar_lea.sflag [#allocation4], %s214
        %s216 = sand.u32 %s74, 1
        %s217 = smul.addr %s216, 384
        %s218 = scalar_lea.vmem [#allocation3], %s217
        // Predicated region
        $region33: #{table_model_forward.12} parent=31 // pred_check
          %p219 = pneg %p87
        $region34: #{table_model_forward.12} parent=31 // pred_check_branch
          %221 = sbr.rel (%p219) target = $region36
        $region35: #{table_model_forward.12} parent=31 // pred_region
          %222 = dma.done %s215, 6144
        $region36: #{table_model_forward.12} parent=31 // pred_fallthru
          _
        %s223 = smul.u32 2, %s22
        %s224 = smul.u32 2, %s24
        %p225 = scmp.lt.s32.totalorder %s223, 1
        %s226 = scalar_select %p225, %s223, 1
        %p227 = scmp.lt.s32.totalorder %s224, 1
        %s228 = scalar_select %p227, %s224, 1
        %s229 = smul.addr %s226, 2
        %s230 = sadd.s32 %s228, %s229
        %s231 = smul.addr %s230, 4
        %s232 = scalar_lea.vmem %s0, %s231
        %p233 = pneg %p59
        %p234 = pneg %p56
        %s235 = sand.u32 %s74, 1
        %s236 = scalar_lea.sflag [#allocation4], %s235
        %s237 = sand.u32 %s74, 1
        %s238 = smul.addr %s237, 384
        %s239 = scalar_lea.vmem [#allocation3], %s238
        %p240 = pneg %p87
        %p241 = pneg %p84
        %s242 = smul.u32 3, %s23
        %p243 = scmp.lt.s32.totalorder %s242, 5
        %s244 = scalar_select %p243, %s242, 5
        %s245 = scalar_lea.vmem %s2, %s244
        %p246 = pneg %p113
        %p247 = pneg %p110
        %p248 = pneg %p141
        %p249 = pneg %p138
        %s250 = sand.u32 %s128, 1
        %s251 = sand.u32 %s128, 1
        %s252 = smul.addr %s251, 24
        %s253 = scalar_lea.vmem [#allocation5], %s252
        %s254 = smul.u32 2, %s22
        %s255 = smul.u32 2, %s24
        %p256 = scmp.lt.s32.totalorder %s254, 1
        %s257 = scalar_select %p256, %s254, 1
        %p258 = scmp.lt.s32.totalorder %s255, 1
        %s259 = scalar_select %p258, %s255, 1
        %s260 = smul.addr %s257, 2
        %s261 = sadd.s32 %s259, %s260
        %s262 = smul.addr %s261, 4
        %s263 = scalar_lea.vmem %s0, %s262
        %s264 = smul.u32 2, %s22
        %s265 = smul.u32 2, %s24
        %s266 = smul.u32 32, %s24
        %s267 = smul.u32 3, %s23
        %s268 = smul.u32 3, %s23
        %p269 = scmp.lt.s32.totalorder %s268, 5
        %s270 = scalar_select %p269, %s268, 5
        %s271 = scalar_lea.vmem %s2, %s270
        %s272 = smul.u32 3, %s23
        %s273 = smul.u32 2, %s22
        %s274 = smul.u32 3, %s23
        %p276 = scmp.eq.s32.totalorder %s24, 0
        // Predicated region
        $region37: #{table_model_forward.12} parent=31 // pred_check
          %p277 = pneg %p276
        $region38: #{table_model_forward.12} parent=31 // pred_check_branch
          %279 = sbr.rel (%p277) target = $region40
        $region39: #{table_model_forward.12} parent=31 // pred_region
          %280 = vst [vmem:[#allocation2] sm:$0xff] 0.0
          %281 = vst [vmem:[#allocation2 + $0x8] sm:$0xff] 0.0
          %282 = vst [vmem:[#allocation2 + $0x10] sm:$0xff] 0.0
          %283 = vst [vmem:[#allocation2 + $0x18] sm:$0xff] 0.0
          %284 = vst [vmem:[#allocation2 + $0x20] sm:$0xff] 0.0
          %285 = vst [vmem:[#allocation2 + $0x28] sm:$0xff] 0.0
        $region40: #{table_model_forward.12} parent=31 // pred_fallthru
          _
        %v286 = vld [vmem:[#allocation2] sm:$0xff]
        %v287 = vld [vmem:[#allocation2 + $0x8] sm:$0xff]
        %v288 = vld [vmem:[#allocation2 + $0x10] sm:$0xff]
        %v289 = vld [vmem:[#allocation2 + $0x18] sm:$0xff]
        %v290 = vld [vmem:[#allocation2 + $0x20] sm:$0xff]
        %v291 = vld [vmem:[#allocation2 + $0x28] sm:$0xff]
        %v292 = vld [vmem:[%s263] sm:$0xff]
        %v293 = vld [vmem:[%s263 + $0x8] sm:$0xff]
        %v294 = vld [vmem:[%s218] sm:$0xff]
        %v295 = vld [vmem:[%s218 + $0x8] sm:$0xf]
        %v296 = vld [vmem:[%s218 + $0xc] sm:$0xff]
        %v297 = vld [vmem:[%s218 + $0x14] sm:$0xf]
        %v298 = vld [vmem:[%s218 + $0x18] sm:$0xff]
        %v299 = vld [vmem:[%s218 + $0x20] sm:$0xf]
        %v300 = vld [vmem:[%s218 + $0x24] sm:$0xff]
        %v301 = vld [vmem:[%s218 + $0x2c] sm:$0xf]
        %v302 = vld [vmem:[%s218 + $0x30] sm:$0xff]
        %v303 = vld [vmem:[%s218 + $0x38] sm:$0xf]
        %v304 = vld [vmem:[%s218 + $0x3c] sm:$0xff]
        %v305 = vld [vmem:[%s218 + $0x44] sm:$0xf]
        %v306 = vld [vmem:[%s218 + $0x48] sm:$0xff]
        %v307 = vld [vmem:[%s218 + $0x50] sm:$0xf]
        %v308 = vld [vmem:[%s218 + $0x54] sm:$0xff]
        %v309 = vld [vmem:[%s218 + $0x5c] sm:$0xf]
        %v310 = vld [vmem:[%s218 + $0x60] sm:$0xff]
        %v311 = vld [vmem:[%s218 + $0x68] sm:$0xf]
        %v312 = vld [vmem:[%s218 + $0x6c] sm:$0xff]
        %v313 = vld [vmem:[%s218 + $0x74] sm:$0xf]
        %v314 = vld [vmem:[%s218 + $0x78] sm:$0xff]
        %v315 = vld [vmem:[%s218 + $0x80] sm:$0xf]
        %v316 = vld [vmem:[%s218 + $0x84] sm:$0xff]
        %v317 = vld [vmem:[%s218 + $0x8c] sm:$0xf]
        %v318 = vld [vmem:[%s218 + $0x90] sm:$0xff]
        %v319 = vld [vmem:[%s218 + $0x98] sm:$0xf]
        %v320 = vld [vmem:[%s218 + $0x9c] sm:$0xff]
        %v321 = vld [vmem:[%s218 + $0xa4] sm:$0xf]
        %v322 = vld [vmem:[%s218 + $0xa8] sm:$0xff]
        %v323 = vld [vmem:[%s218 + $0xb0] sm:$0xf]
        %v324 = vld [vmem:[%s218 + $0xb4] sm:$0xff]
        %v325 = vld [vmem:[%s218 + $0xbc] sm:$0xf]
        %v326 = vld [vmem:[%s218 + $0xc0] sm:$0xff]
        %v327 = vld [vmem:[%s218 + $0xc8] sm:$0xf]
        %v328 = vld [vmem:[%s218 + $0xcc] sm:$0xff]
        %v329 = vld [vmem:[%s218 + $0xd4] sm:$0xf]
        %v330 = vld [vmem:[%s218 + $0xd8] sm:$0xff]
        %v331 = vld [vmem:[%s218 + $0xe0] sm:$0xf]
        %v332 = vld [vmem:[%s218 + $0xe4] sm:$0xff]
        %v333 = vld [vmem:[%s218 + $0xec] sm:$0xf]
        %v334 = vld [vmem:[%s218 + $0xf0] sm:$0xff]
        %v335 = vld [vmem:[%s218 + $0xf8] sm:$0xf]
        %v336 = vld [vmem:[%s218 + $0xfc] sm:$0xff]
        %v337 = vld [vmem:[%s218 + $0x104] sm:$0xf]
        %v338 = vld [vmem:[%s218 + $0x108] sm:$0xff]
        %v339 = vld [vmem:[%s218 + $0x110] sm:$0xf]
        %v340 = vld [vmem:[%s218 + $0x114] sm:$0xff]
        %v341 = vld [vmem:[%s218 + $0x11c] sm:$0xf]
        %v342 = vld [vmem:[%s218 + $0x120] sm:$0xff]
        %v343 = vld [vmem:[%s218 + $0x128] sm:$0xf]
        %v344 = vld [vmem:[%s218 + $0x12c] sm:$0xff]
        %v345 = vld [vmem:[%s218 + $0x134] sm:$0xf]
        %v346 = vld [vmem:[%s218 + $0x138] sm:$0xff]
        %v347 = vld [vmem:[%s218 + $0x140] sm:$0xf]
        %v348 = vld [vmem:[%s218 + $0x144] sm:$0xff]
        %v349 = vld [vmem:[%s218 + $0x14c] sm:$0xf]
        %v350 = vld [vmem:[%s218 + $0x150] sm:$0xff]
        %v351 = vld [vmem:[%s218 + $0x158] sm:$0xf]
        %v352 = vld [vmem:[%s218 + $0x15c] sm:$0xff]
        %v353 = vld [vmem:[%s218 + $0x164] sm:$0xf]
        %v354 = vld [vmem:[%s218 + $0x168] sm:$0xff]
        %v355 = vld [vmem:[%s218 + $0x170] sm:$0xf]
        %v356 = vld [vmem:[%s218 + $0x174] sm:$0xff]
        %v357 = vld [vmem:[%s218 + $0x17c] sm:$0xf]
        %v360 = vunpack.c.l.b16 %v292
        %v361 = vunpack.c.h.b16 %v292
        %v362 = vunpack.c.l.b16 %v293
        %v363 = vunpack.c.h.b16 %v293
        %v364 = vpack.c.b16 %v362, %v360
        %v365 = vpack.c.b16 %v363, %v361
        %v432 = vunpack.c.l.b16 %v294
        %v433 = vunpack.c.h.b16 %v294
        %v434 = vunpack.c.l.b16 %v295
        %v435 = vunpack.c.l.b16 %v296
        %v436 = vunpack.c.h.b16 %v296
        %v437 = vunpack.c.l.b16 %v297
        %v438 = vunpack.c.l.b16 %v298
        %v439 = vunpack.c.h.b16 %v298
        %v440 = vunpack.c.l.b16 %v299
        %v441 = vunpack.c.l.b16 %v300
        %v442 = vunpack.c.h.b16 %v300
        %v443 = vunpack.c.l.b16 %v301
        %v444 = vunpack.c.l.b16 %v302
        %v445 = vunpack.c.h.b16 %v302
        %v446 = vunpack.c.l.b16 %v303
        %v447 = vunpack.c.l.b16 %v304
        %v448 = vunpack.c.h.b16 %v304
        %v449 = vunpack.c.l.b16 %v305
        %v450 = vunpack.c.l.b16 %v306
        %v451 = vunpack.c.h.b16 %v306
        %v452 = vunpack.c.l.b16 %v307
        %v453 = vunpack.c.l.b16 %v308
        %v454 = vunpack.c.h.b16 %v308
        %v455 = vunpack.c.l.b16 %v309
        %v456 = vunpack.c.l.b16 %v310
        %v457 = vunpack.c.h.b16 %v310
        %v458 = vunpack.c.l.b16 %v311
        %v459 = vunpack.c.l.b16 %v312
        %v460 = vunpack.c.h.b16 %v312
        %v461 = vunpack.c.l.b16 %v313
        %v462 = vunpack.c.l.b16 %v314
        %v463 = vunpack.c.h.b16 %v314
        %v464 = vunpack.c.l.b16 %v315
        %v465 = vunpack.c.l.b16 %v316
        %v466 = vunpack.c.h.b16 %v316
        %v467 = vunpack.c.l.b16 %v317
        %v468 = vunpack.c.l.b16 %v318
        %v469 = vunpack.c.h.b16 %v318
        %v470 = vunpack.c.l.b16 %v319
        %v471 = vunpack.c.l.b16 %v320
        %v472 = vunpack.c.h.b16 %v320
        %v473 = vunpack.c.l.b16 %v321
        %v474 = vunpack.c.l.b16 %v322
        %v475 = vunpack.c.h.b16 %v322
        %v476 = vunpack.c.l.b16 %v323
        %v477 = vunpack.c.l.b16 %v324
        %v478 = vunpack.c.h.b16 %v324
        %v479 = vunpack.c.l.b16 %v325
        %v480 = vunpack.c.l.b16 %v326
        %v481 = vunpack.c.h.b16 %v326
        %v482 = vunpack.c.l.b16 %v327
        %v483 = vunpack.c.l.b16 %v328
        %v484 = vunpack.c.h.b16 %v328
        %v485 = vunpack.c.l.b16 %v329
        %v486 = vunpack.c.l.b16 %v330
        %v487 = vunpack.c.h.b16 %v330
        %v488 = vunpack.c.l.b16 %v331
        %v489 = vunpack.c.l.b16 %v332
        %v490 = vunpack.c.h.b16 %v332
        %v491 = vunpack.c.l.b16 %v333
        %v492 = vunpack.c.l.b16 %v334
        %v493 = vunpack.c.h.b16 %v334
        %v494 = vunpack.c.l.b16 %v335
        %v495 = vunpack.c.l.b16 %v336
        %v496 = vunpack.c.h.b16 %v336
        %v497 = vunpack.c.l.b16 %v337
        %v498 = vunpack.c.l.b16 %v338
        %v499 = vunpack.c.h.b16 %v338
        %v500 = vunpack.c.l.b16 %v339
        %v501 = vunpack.c.l.b16 %v340
        %v502 = vunpack.c.h.b16 %v340
        %v503 = vunpack.c.l.b16 %v341
        %v504 = vunpack.c.l.b16 %v342
        %v505 = vunpack.c.h.b16 %v342
        %v506 = vunpack.c.l.b16 %v343
        %v507 = vunpack.c.l.b16 %v344
        %v508 = vunpack.c.h.b16 %v344
        %v509 = vunpack.c.l.b16 %v345
        %v510 = vunpack.c.l.b16 %v346
        %v511 = vunpack.c.h.b16 %v346
        %v512 = vunpack.c.l.b16 %v347
        %v513 = vunpack.c.l.b16 %v348
        %v514 = vunpack.c.h.b16 %v348
        %v515 = vunpack.c.l.b16 %v349
        %v516 = vunpack.c.l.b16 %v350
        %v517 = vunpack.c.h.b16 %v350
        %v518 = vunpack.c.l.b16 %v351
        %v519 = vunpack.c.l.b16 %v352
        %v520 = vunpack.c.h.b16 %v352
        %v521 = vunpack.c.l.b16 %v353
        %v522 = vunpack.c.l.b16 %v354
        %v523 = vunpack.c.h.b16 %v354
        %v524 = vunpack.c.l.b16 %v355
        %v525 = vunpack.c.l.b16 %v356
        %v526 = vunpack.c.h.b16 %v356
        %v527 = vunpack.c.l.b16 %v357
        %v528 = vpack.c.b16 %v435, %v432
        %v529 = vpack.c.b16 %v436, %v433
        %v530 = vpack.c.b16 %v437, %v434
        %v531 = vpack.c.b16 %v441, %v438
        %v532 = vpack.c.b16 %v442, %v439
        %v533 = vpack.c.b16 %v443, %v440
        %v534 = vpack.c.b16 %v447, %v444
        %v535 = vpack.c.b16 %v448, %v445
        %v536 = vpack.c.b16 %v449, %v446
        %v537 = vpack.c.b16 %v453, %v450
        %v538 = vpack.c.b16 %v454, %v451
        %v539 = vpack.c.b16 %v455, %v452
        %v540 = vpack.c.b16 %v459, %v456
        %v541 = vpack.c.b16 %v460, %v457
        %v542 = vpack.c.b16 %v461, %v458
        %v543 = vpack.c.b16 %v465, %v462
        %v544 = vpack.c.b16 %v466, %v463
        %v545 = vpack.c.b16 %v467, %v464
        %v546 = vpack.c.b16 %v471, %v468
        %v547 = vpack.c.b16 %v472, %v469
        %v548 = vpack.c.b16 %v473, %v470
        %v549 = vpack.c.b16 %v477, %v474
        %v550 = vpack.c.b16 %v478, %v475
        %v551 = vpack.c.b16 %v479, %v476
        %v552 = vpack.c.b16 %v483, %v480
        %v553 = vpack.c.b16 %v484, %v481
        %v554 = vpack.c.b16 %v485, %v482
        %v555 = vpack.c.b16 %v489, %v486
        %v556 = vpack.c.b16 %v490, %v487
        %v557 = vpack.c.b16 %v491, %v488
        %v558 = vpack.c.b16 %v495, %v492
        %v559 = vpack.c.b16 %v496, %v493
        %v560 = vpack.c.b16 %v497, %v494
        %v561 = vpack.c.b16 %v501, %v498
        %v562 = vpack.c.b16 %v502, %v499
        %v563 = vpack.c.b16 %v503, %v500
        %v564 = vpack.c.b16 %v507, %v504
        %v565 = vpack.c.b16 %v508, %v505
        %v566 = vpack.c.b16 %v509, %v506
        %v567 = vpack.c.b16 %v513, %v510
        %v568 = vpack.c.b16 %v514, %v511
        %v569 = vpack.c.b16 %v515, %v512
        %v570 = vpack.c.b16 %v519, %v516
        %v571 = vpack.c.b16 %v520, %v517
        %v572 = vpack.c.b16 %v521, %v518
        %v573 = vpack.c.b16 %v525, %v522
        %v574 = vpack.c.b16 %v526, %v523
        %v575 = vpack.c.b16 %v527, %v524
        %624 = vmatprep.subr.bf16.mxu0 %v529
        %625 = vmatpush1.bf16.msra.mxu0 %v528
        %626 = vmatprep.subr.bf16.mxu0 %v532
        %627 = vmatpush1.bf16.msra.mxu0 %v531
        %628 = vmatprep.subr.bf16.mxu0 %v535
        %629 = vmatpush1.bf16.msra.mxu0 %v534
        %630 = vmatprep.subr.bf16.mxu0 %v538
        %631 = vmatpush1.bf16.msra.mxu0 %v537
        %632 = vmatprep.subr.bf16.mxu0 %v541
        %633 = vmatpush1.bf16.msra.mxu0 %v540
        %634 = vmatprep.subr.bf16.mxu0 %v544
        %635 = vmatpush1.bf16.msra.mxu0 %v543
        %636 = vmatprep.subr.bf16.mxu0 %v547
        %637 = vmatpush1.bf16.msra.mxu0 %v546
        %638 = vmatprep.subr.bf16.mxu0 %v550
        %639 = vmatpush1.bf16.msra.mxu0 %v549
        %640 = vmatprep.subr.bf16.mxu0 %v553
        %641 = vmatpush1.bf16.msra.mxu0 %v552
        %642 = vmatprep.subr.bf16.mxu0 %v556
        %643 = vmatpush1.bf16.msra.mxu0 %v555
        %644 = vmatprep.subr.bf16.mxu0 %v559
        %645 = vmatpush1.bf16.msra.mxu0 %v558
        %646 = vmatprep.subr.bf16.mxu0 %v562
        %647 = vmatpush1.bf16.msra.mxu0 %v561
        %648 = vmatprep.subr.bf16.mxu0 %v565
        %649 = vmatpush1.bf16.msra.mxu0 %v564
        %650 = vmatprep.subr.bf16.mxu0 %v568
        %651 = vmatpush1.bf16.msra.mxu0 %v567
        %652 = vmatprep.subr.bf16.mxu0 %v571
        %653 = vmatpush1.bf16.msra.mxu0 %v570
        %654 = vmatprep.subr.bf16.mxu0 %v574
        %655 = vmatpush1.bf16.msra.mxu0 %v573
        %656 = vmatprep.mubr.bf16.mxu0 %v365
        %657 = vmatmul.mubr.bf16.gmra.mrb[0].mxu0 %v364
        %v658 = vpop.f32.mrb[0].mxu0
        %v659 = vadd.f32 0.0, %v658
        %v660 = vpop.f32.mrb[0].mxu0
        %v661 = vadd.f32 0.0, %v660
        %v662 = vpop.f32.mrb[0].mxu0
        %v663 = vadd.f32 0.0, %v662
        %v664 = vpop.f32.mrb[0].mxu0
        %v665 = vadd.f32 0.0, %v664
        %666 = vdwg.mxu0
        %667 = vmatprep.subr.bf16.mxu0 0
        %668 = vmatpush1.bf16.msra.mxu0 %v530
        %669 = vmatprep.subr.bf16.mxu0 0
        %670 = vmatpush1.bf16.msra.mxu0 %v533
        %671 = vmatprep.subr.bf16.mxu0 0
        %672 = vmatpush1.bf16.msra.mxu0 %v536
        %673 = vmatprep.subr.bf16.mxu0 0
        %674 = vmatpush1.bf16.msra.mxu0 %v539
        %675 = vmatprep.subr.bf16.mxu0 0
        %676 = vmatpush1.bf16.msra.mxu0 %v542
        %677 = vmatprep.subr.bf16.mxu0 0
        %678 = vmatpush1.bf16.msra.mxu0 %v545
        %679 = vmatprep.subr.bf16.mxu0 0
        %680 = vmatpush1.bf16.msra.mxu0 %v548
        %681 = vmatprep.subr.bf16.mxu0 0
        %682 = vmatpush1.bf16.msra.mxu0 %v551
        %683 = vmatprep.subr.bf16.mxu0 0
        %684 = vmatpush1.bf16.msra.mxu0 %v554
        %685 = vmatprep.subr.bf16.mxu0 0
        %686 = vmatpush1.bf16.msra.mxu0 %v557
        %687 = vmatprep.subr.bf16.mxu0 0
        %688 = vmatpush1.bf16.msra.mxu0 %v560
        %689 = vmatprep.subr.bf16.mxu0 0
        %690 = vmatpush1.bf16.msra.mxu0 %v563
        %691 = vmatprep.subr.bf16.mxu0 0
        %692 = vmatpush1.bf16.msra.mxu0 %v566
        %693 = vmatprep.subr.bf16.mxu0 0
        %694 = vmatpush1.bf16.msra.mxu0 %v569
        %695 = vmatprep.subr.bf16.mxu0 0
        %696 = vmatpush1.bf16.msra.mxu0 %v572
        %697 = vmatprep.subr.bf16.mxu0 0
        %698 = vmatpush1.bf16.msra.mxu0 %v575
        %699 = vmatprep.mubr.bf16.mxu0 %v365
        %700 = vmatmul.mubr.bf16.gmra.mrb[0].mxu0 %v364
        %v701 = vpop.f32.mrb[0].mxu0
        %v702 = vadd.f32 0.0, %v701
        %v703 = vpop.f32.mrb[0].mxu0
        %v704 = vpop.f32.mrb[0].mxu0
        %v705 = vadd.f32 0.0, %v704
        %v706 = vpop.f32.mrb[0].mxu0
        %707 = vdwg.mxu0
        %v708 = vadd.f32 %v286, %v659
        %v709 = vadd.f32 %v287, %v661
        %v710 = vadd.f32 %v288, %v702
        %v711 = vadd.f32 %v289, %v663
        %v712 = vadd.f32 %v290, %v665
        %v713 = vadd.f32 %v291, %v705
        %714 = vst [vmem:[#allocation2] sm:$0xff] %v708
        %715 = vst [vmem:[#allocation2 + $0x8] sm:$0xff] %v709
        %716 = vst [vmem:[#allocation2 + $0x10] sm:$0xff] %v710
        %717 = vst [vmem:[#allocation2 + $0x18] sm:$0xff] %v711
        %718 = vst [vmem:[#allocation2 + $0x20] sm:$0xff] %v712
        %719 = vst [vmem:[#allocation2 + $0x28] sm:$0xff] %v713
        // Predicated region
        $region41: #{table_model_forward.12} parent=31 // pred_check
          %p720 = pneg %p276
        $region42: #{table_model_forward.12} parent=31 // pred_check_branch
          %722 = sbr.rel (%p720) target = $region44
        $region43: #{table_model_forward.12} parent=31 // pred_region
          %v723 = vld [vmem:[#allocation2] sm:$0xff]
          %v724 = vld [vmem:[#allocation2 + $0x8] sm:$0xff]
          %v725 = vld [vmem:[#allocation2 + $0x10] sm:$0xff]
          %v726 = vld [vmem:[#allocation2 + $0x18] sm:$0xff]
          %v727 = vld [vmem:[#allocation2 + $0x20] sm:$0xff]
          %v728 = vld [vmem:[#allocation2 + $0x28] sm:$0xff]
          %v729 = vld [vmem:[%s271] sm:$0x7]
          %v731 = vlaneseq
          %v732 = vshrl.u32 %v731, 7
          %v733 = vsub.s32 0, %v732
          %v734 = vrot.slane %v729, %v733
          %v735 = vlaneseq
          %v736 = vshrl.u32 %v735, 7
          %v737 = vsub.s32 1, %v736
          %v738 = vrot.slane %v729, %v737
          %v739 = vlaneseq
          %v740 = vshrl.u32 %v739, 7
          %v741 = vsub.s32 2, %v740
          %v742 = vrot.slane %v729, %v741
          %v746 = vadd.f32 %v723, %v734
          %v747 = vadd.f32 %v724, %v738
          %v748 = vadd.f32 %v725, %v742
          %v749 = vadd.f32 %v726, %v734
          %v750 = vadd.f32 %v727, %v738
          %v751 = vadd.f32 %v728, %v742
          %v752 = vpack.c.bf16 %v749, %v746
          %v753 = vpack.c.bf16 %v750, %v747
          %v754 = vpack.c.bf16 %v751, %v748
          %v758 = vunpack.c.l.b16 %v752
          %v759 = vunpack.c.l.b16 %v753
          %v760 = vunpack.c.l.b16 %v754
          %v761 = vunpack.c.h.b16 %v752
          %v762 = vunpack.c.h.b16 %v753
          %v763 = vunpack.c.h.b16 %v754
          %v764 = vpack.c.b16 %v759, %v758
          %v765 = vpack.c.b16 %v760, %v760
          %v766 = vpack.c.b16 %v762, %v761
          %v767 = vpack.c.b16 %v763, %v763
          %772 = vst [vmem:[%s253] sm:$0xff] %v764
          %773 = vst [vmem:[%s253 + $0x8] sm:$0xf] %v765
          %774 = vst [vmem:[%s253 + $0xc] sm:$0xff] %v766
          %775 = vst [vmem:[%s253 + $0x14] sm:$0xf] %v767
        $region44: #{table_model_forward.12} parent=31 // pred_fallthru
          _
        %s776 = sand.u32 %s128, 1
        %s777 = sand.u32 %s128, 1
        %s778 = smul.addr %s777, 24
        %s779 = scalar_lea.vmem [#allocation5], %s778
        // Predicated region
        $region45: #{table_model_forward.12} parent=31 // pred_check
          %p780 = pneg %p138
        $region46: #{table_model_forward.12} parent=31 // pred_check_branch
          %782 = sbr.rel (%p780) target = $region48
        $region47: #{table_model_forward.12} parent=31 // pred_region
          %s783 = smul.u32 2, %s22
          %s784 = smul.u32 3, %s23
          %s785 = smul.addr %s783, 6
          %s786 = sadd.s32 %s784, %s785
          %s787 = smul.addr %s786, 4
          %s788 = scalar_lea.vmem %s3, %s787
          // Predicated region
          $region49: #{table_model_forward.12} parent=47 // pred_check
            _
          $region50: #{table_model_forward.12} parent=47 // pred_check_branch
            %790 = sbr.rel (0) target = $region52
          $region51: #{table_model_forward.12} parent=47 // pred_region
            // Predicated region
            $region53: #{table_model_forward.12} parent=51 // pred_check
              _
            $region54: #{table_model_forward.12} parent=51 // pred_check_branch
              %792 = sbr.rel (0) target = $region56
            $region55: #{table_model_forward.12} parent=51 // pred_region
              %s793 = scalar_lea.vmem %s779, 8 [#allocation5]
              %s794 = scalar_lea.vmem %s788, 8
              loop: start=0, step=1, limit=1
              $region57: #{table_model_forward.12} parent=55 // loop_pre_header
                _
              $region58: #{table_model_forward.12} parent=55 // loop_header
                %s796 = sphi 0, %s800
                %p797 = scmp.ge.s32.totalorder %s796, 1
                %s801 = sphi %s779, %s779
                %s802 = sphi %s788, %s788
              $region59: #{table_model_forward.12} parent=55 // loop_header_branch
                %799 = sbr.rel (%p797) target = $region63
              $region60: #{table_model_forward.12} parent=55 // loop_body
                %v803 = vld [vmem:[%s801] sm:$0xff]
                %804 = vst [vmem:[%s802] sm:$0xff] %v803
                %v805 = vld [vmem:[%s801 + $0xc] sm:$0xff]
                %806 = vst [vmem:[%s802 + $0x18] sm:$0xff] %v805
              $region61: #{table_model_forward.12} parent=55 // loop_footer
                %s800 = sadd.s32 1, %s796
              $region62: #{table_model_forward.12} parent=55 // loop_footer_branch
                %795 = sbr.rel target = $region58
              $region63: #{table_model_forward.12} parent=55 // loop_exit
                _
              loop: start=0, step=1, limit=1
              $region64: #{table_model_forward.12} parent=55 // loop_pre_header
                _
              $region65: #{table_model_forward.12} parent=55 // loop_header
                %s809 = sphi 0, %s813
                %p810 = scmp.ge.s32.totalorder %s809, 1
                %s814 = sphi %s793, %s793
                %s815 = sphi %s794, %s794
              $region66: #{table_model_forward.12} parent=55 // loop_header_branch
                %812 = sbr.rel (%p810) target = $region70
              $region67: #{table_model_forward.12} parent=55 // loop_body
                %v816 = vld [vmem:[%s814] sm:$0xf]
                %817 = vst [vmem:[%s815] sm:$0xf] %v816
                %v818 = vld [vmem:[%s814 + $0xc] sm:$0xf]
                %819 = vst [vmem:[%s815 + $0x18] sm:$0xf] %v818
              $region68: #{table_model_forward.12} parent=55 // loop_footer
                %s813 = sadd.s32 1, %s809
              $region69: #{table_model_forward.12} parent=55 // loop_footer_branch
                %808 = sbr.rel target = $region65
              $region70: #{table_model_forward.12} parent=55 // loop_exit
                _
            $region56: #{table_model_forward.12} parent=51 // pred_fallthru
              _
          $region52: #{table_model_forward.12} parent=47 // pred_fallthru
            _
          %820 = vnop
        $region48: #{table_model_forward.12} parent=31 // pred_fallthru
          _
      $region32: #{table_model_forward.12} parent=5 // pred_fallthru
        _
      %p821 = scmp.le.s32.totalorder 2, %s12
      // Predicated region
      $region71: #{table_model_forward.12} parent=5 // pred_check
        %p822 = pneg %p821
      $region72: #{table_model_forward.12} parent=5 // pred_check_branch
        %824 = sbr.rel (%p822) target = $region74
      $region73: #{table_model_forward.12} parent=5 // pred_region
        %s825 = ssub.s32 %s12, 2
        // Predicated region
        $region75: #{table_model_forward.12} parent=73 // pred_check
          %p826 = pneg %p144
        $region76: #{table_model_forward.12} parent=73 // pred_check_branch
          %828 = sbr.rel (%p826) target = $region78
        $region77: #{table_model_forward.12} parent=73 // pred_region
          %s829 = sand.u32 %s129, 1
          %s830 = sand.u32 %s129, 1
          %s831 = smul.addr %s830, 24
          %s832 = scalar_lea.vmem [#allocation5], %s831
        $region78: #{table_model_forward.12} parent=73 // pred_fallthru
          _
      $region74: #{table_model_forward.12} parent=5 // pred_fallthru
        _
    $region6: #{table_model_forward.12} parent=1 // loop_footer
      %s16 = sadd.s32 1, %s12
    $region7: #{table_model_forward.12} parent=1 // loop_footer_branch
      %11 = sbr.rel target = $region3
    $region8: #{table_model_forward.12} parent=1 // loop_exit
      _
    %833 = vsyncpa [#allocation4], 1
    %s834 = scalar_lea.sflag [#allocation4], 1
    %835 = vsyncpa %s834, 1

// kernel: table_model_forward.16
$region0: #{table_model_forward.16}
  #allocation0 [shape = 'u32[]', space=smem, size = 0x4, offset = 0x4, fixed_abs, tag = 'smem constant byte address 0x4 - core index']
  #allocation1 [shape = 'u32[144,128]{1,0:T(1,128)}', space=vmem, size = 0x12000, scoped, tag = 'internal scratch']
  #allocation2 [shape = 'f32[16,256]{1,0:T(8,128)}', space=vmem, size = 0x4000, scoped, tag = 'scratch operand']
  %s0 = inlined_call_operand.vmem [shape: bf16[16,512], index: 0, kind: input, shape index: {}]
  %s1 = inlined_call_operand.vmem [shape: bf16[512,256], index: 1, kind: input, shape index: {}]
  %s2 = inlined_call_operand.vmem [shape: f32[1,256], index: 2, kind: input, shape index: {}]
  %s3 = inlined_call_operand.vmem [shape: bf16[16,256], index: 3, kind: input, shape index: {}]
  %s4 = inlined_call_operand.vmem [shape: f32[1,256], index: 4, kind: input, shape index: {}]
  %s5 = inlined_call_operand.vmem [shape: f32[1,256], index: 5, kind: input, shape index: {}]
  %s6 = inlined_call_operand.vmem [shape: bf16[16,256], index: 6, kind: output, shape index: {}]
  %s7 = sld [smem:[#allocation0]]
  $region42: #{table_model_forward.16} parent=0
    _
  %s9 = ssub.s32 1, %s7
  %s10 = scalar_select 0, %s9, %s7
  // Predicated region
  $region2: #{table_model_forward.16} parent=0 // pred_check
    _
  $region3: #{table_model_forward.16} parent=0 // pred_check_branch
    %12 = sbr.rel (0) target = $region5
  $region4: #{table_model_forward.16} parent=0 // pred_region
    _
  $region5: #{table_model_forward.16} parent=0 // pred_fallthru
    _
  // Predicated region
  $region6: #{table_model_forward.16} parent=0 // pred_check
    _
  $region7: #{table_model_forward.16} parent=0 // pred_check_branch
    %14 = sbr.rel (0) target = $region9
  $region8: #{table_model_forward.16} parent=0 // pred_region
    _
  $region9: #{table_model_forward.16} parent=0 // pred_fallthru
    _
  // Predicated region
  $region10: #{table_model_forward.16} parent=0 // pred_check
    _
  $region11: #{table_model_forward.16} parent=0 // pred_check_branch
    %16 = sbr.rel (0) target = $region13
  $region12: #{table_model_forward.16} parent=0 // pred_region
    _
  $region13: #{table_model_forward.16} parent=0 // pred_fallthru
    _
  // Predicated region
  $region14: #{table_model_forward.16} parent=0 // pred_check
    _
  $region15: #{table_model_forward.16} parent=0 // pred_check_branch
    %18 = sbr.rel (0) target = $region17
  $region16: #{table_model_forward.16} parent=0 // pred_region
    _
  $region17: #{table_model_forward.16} parent=0 // pred_fallthru
    _
  // Predicated region
  $region18: #{table_model_forward.16} parent=0 // pred_check
    _
  $region19: #{table_model_forward.16} parent=0 // pred_check_branch
    %20 = sbr.rel (0) target = $region21
  $region20: #{table_model_forward.16} parent=0 // pred_region
    _
  $region21: #{table_model_forward.16} parent=0 // pred_fallthru
    _
  // Predicated region
  $region22: #{table_model_forward.16} parent=0 // pred_check
    _
  $region23: #{table_model_forward.16} parent=0 // pred_check_branch
    %22 = sbr.rel (0) target = $region25
  $region24: #{table_model_forward.16} parent=0 // pred_region
    _
  $region25: #{table_model_forward.16} parent=0 // pred_fallthru
    _
  %p23 = scmp.eq.s32.totalorder 0, 0
  // Predicated region
  $region26: #{table_model_forward.16} parent=0 // pred_check
    %p24 = pneg %p23
  $region27: #{table_model_forward.16} parent=0 // pred_check_branch
    %26 = sbr.rel (%p24) target = $region29
  $region28: #{table_model_forward.16} parent=0 // pred_region
    %27 = vst [vmem:[#allocation2] sm:$0xff] 0.0
    %28 = vst [vmem:[#allocation2 + $0x8] sm:$0xff] 0.0
    %29 = vst [vmem:[#allocation2 + $0x10] sm:$0xff] 0.0
    %30 = vst [vmem:[#allocation2 + $0x18] sm:$0xff] 0.0
  $region29: #{table_model_forward.16} parent=0 // pred_fallthru
    _
  %v31 = vld [vmem:[#allocation2] sm:$0xff]
  %v32 = vld [vmem:[#allocation2 + $0x8] sm:$0xff]
  %v33 = vld [vmem:[#allocation2 + $0x10] sm:$0xff]
  %v34 = vld [vmem:[#allocation2 + $0x18] sm:$0xff]
  %v35 = vld [vmem:[%s0] sm:$0xff]
  %v36 = vld [vmem:[%s0 + $0x8] sm:$0xff]
  %v37 = vld [vmem:[%s0 + $0x10] sm:$0xff]
  %v38 = vld [vmem:[%s0 + $0x18] sm:$0xff]
  %v39 = vld [vmem:[%s1] sm:$0xff]
  %v40 = vld [vmem:[%s1 + $0x8] sm:$0xff]
  %v41 = vld [vmem:[%s1 + $0x10] sm:$0xff]
  %v42 = vld [vmem:[%s1 + $0x18] sm:$0xff]
  %v43 = vld [vmem:[%s1 + $0x20] sm:$0xff]
  %v44 = vld [vmem:[%s1 + $0x28] sm:$0xff]
  %v45 = vld [vmem:[%s1 + $0x30] sm:$0xff]
  %v46 = vld [vmem:[%s1 + $0x38] sm:$0xff]
  %v47 = vld [vmem:[%s1 + $0x40] sm:$0xff]
  %v48 = vld [vmem:[%s1 + $0x48] sm:$0xff]
  %v49 = vld [vmem:[%s1 + $0x50] sm:$0xff]
  %v50 = vld [vmem:[%s1 + $0x58] sm:$0xff]
  %v51 = vld [vmem:[%s1 + $0x60] sm:$0xff]
  %v52 = vld [vmem:[%s1 + $0x68] sm:$0xff]
  %v53 = vld [vmem:[%s1 + $0x70] sm:$0xff]
  %v54 = vld [vmem:[%s1 + $0x78] sm:$0xff]
  %v55 = vld [vmem:[%s1 + $0x80] sm:$0xff]
  %v56 = vld [vmem:[%s1 + $0x88] sm:$0xff]
  %v57 = vld [vmem:[%s1 + $0x90] sm:$0xff]
  %v58 = vld [vmem:[%s1 + $0x98] sm:$0xff]
  %v59 = vld [vmem:[%s1 + $0xa0] sm:$0xff]
  %v60 = vld [vmem:[%s1 + $0xa8] sm:$0xff]
  %v61 = vld [vmem:[%s1 + $0xb0] sm:$0xff]
  %v62 = vld [vmem:[%s1 + $0xb8] sm:$0xff]
  %v63 = vld [vmem:[%s1 + $0xc0] sm:$0xff]
  %v64 = vld [vmem:[%s1 + $0xc8] sm:$0xff]
  %v65 = vld [vmem:[%s1 + $0xd0] sm:$0xff]
  %v66 = vld [vmem:[%s1 + $0xd8] sm:$0xff]
  %v67 = vld [vmem:[%s1 + $0xe0] sm:$0xff]
  %v68 = vld [vmem:[%s1 + $0xe8] sm:$0xff]
  %v69 = vld [vmem:[%s1 + $0xf0] sm:$0xff]
  %v70 = vld [vmem:[%s1 + $0xf8] sm:$0xff]
  %v71 = vld [vmem:[%s1 + $0x100] sm:$0xff]
  %v72 = vld [vmem:[%s1 + $0x108] sm:$0xff]
  %v73 = vld [vmem:[%s1 + $0x110] sm:$0xff]
  %v74 = vld [vmem:[%s1 + $0x118] sm:$0xff]
  %v75 = vld [vmem:[%s1 + $0x120] sm:$0xff]
  %v76 = vld [vmem:[%s1 + $0x128] sm:$0xff]
  %v77 = vld [vmem:[%s1 + $0x130] sm:$0xff]
  %v78 = vld [vmem:[%s1 + $0x138] sm:$0xff]
  %v79 = vld [vmem:[%s1 + $0x140] sm:$0xff]
  %v80 = vld [vmem:[%s1 + $0x148] sm:$0xff]
  %v81 = vld [vmem:[%s1 + $0x150] sm:$0xff]
  %v82 = vld [vmem:[%s1 + $0x158] sm:$0xff]
  %v83 = vld [vmem:[%s1 + $0x160] sm:$0xff]
  %v84 = vld [vmem:[%s1 + $0x168] sm:$0xff]
  %v85 = vld [vmem:[%s1 + $0x170] sm:$0xff]
  %v86 = vld [vmem:[%s1 + $0x178] sm:$0xff]
  %v87 = vld [vmem:[%s1 + $0x180] sm:$0xff]
  %v88 = vld [vmem:[%s1 + $0x188] sm:$0xff]
  %v89 = vld [vmem:[%s1 + $0x190] sm:$0xff]
  %v90 = vld [vmem:[%s1 + $0x198] sm:$0xff]
  %v91 = vld [vmem:[%s1 + $0x1a0] sm:$0xff]
  %v92 = vld [vmem:[%s1 + $0x1a8] sm:$0xff]
  %v93 = vld [vmem:[%s1 + $0x1b0] sm:$0xff]
  %v94 = vld [vmem:[%s1 + $0x1b8] sm:$0xff]
  %v95 = vld [vmem:[%s1 + $0x1c0] sm:$0xff]
  %v96 = vld [vmem:[%s1 + $0x1c8] sm:$0xff]
  %v97 = vld [vmem:[%s1 + $0x1d0] sm:$0xff]
  %v98 = vld [vmem:[%s1 + $0x1d8] sm:$0xff]
  %v99 = vld [vmem:[%s1 + $0x1e0] sm:$0xff]
  %v100 = vld [vmem:[%s1 + $0x1e8] sm:$0xff]
  %v101 = vld [vmem:[%s1 + $0x1f0] sm:$0xff]
  %v102 = vld [vmem:[%s1 + $0x1f8] sm:$0xff]
  %v107 = vunpack.c.l.b16 %v35
  %v108 = vunpack.c.h.b16 %v35
  %v109 = vunpack.c.l.b16 %v36
  %v110 = vunpack.c.h.b16 %v36
  %v111 = vunpack.c.l.b16 %v37
  %v112 = vunpack.c.h.b16 %v37
  %v113 = vunpack.c.l.b16 %v38
  %v114 = vunpack.c.h.b16 %v38
  %v115 = vpack.c.b16 %v111, %v107
  %v116 = vpack.c.b16 %v112, %v108
  %v117 = vpack.c.b16 %v113, %v109
  %v118 = vpack.c.b16 %v114, %v110
  %v187 = vunpack.c.l.b16 %v39
  %v188 = vunpack.c.h.b16 %v39
  %v189 = vunpack.c.l.b16 %v40
  %v190 = vunpack.c.h.b16 %v40
  %v191 = vunpack.c.l.b16 %v41
  %v192 = vunpack.c.h.b16 %v41
  %v193 = vunpack.c.l.b16 %v42
  %v194 = vunpack.c.h.b16 %v42
  %v195 = vunpack.c.l.b16 %v43
  %v196 = vunpack.c.h.b16 %v43
  %v197 = vunpack.c.l.b16 %v44
  %v198 = vunpack.c.h.b16 %v44
  %v199 = vunpack.c.l.b16 %v45
  %v200 = vunpack.c.h.b16 %v45
  %v201 = vunpack.c.l.b16 %v46
  %v202 = vunpack.c.h.b16 %v46
  %v203 = vunpack.c.l.b16 %v47
  %v204 = vunpack.c.h.b16 %v47
  %v205 = vunpack.c.l.b16 %v48
  %v206 = vunpack.c.h.b16 %v48
  %v207 = vunpack.c.l.b16 %v49
  %v208 = vunpack.c.h.b16 %v49
  %v209 = vunpack.c.l.b16 %v50
  %v210 = vunpack.c.h.b16 %v50
  %v211 = vunpack.c.l.b16 %v51
  %v212 = vunpack.c.h.b16 %v51
  %v213 = vunpack.c.l.b16 %v52
  %v214 = vunpack.c.h.b16 %v52
  %v215 = vunpack.c.l.b16 %v53
  %v216 = vunpack.c.h.b16 %v53
  %v217 = vunpack.c.l.b16 %v54
  %v218 = vunpack.c.h.b16 %v54
  %v219 = vunpack.c.l.b16 %v55
  %v220 = vunpack.c.h.b16 %v55
  %v221 = vunpack.c.l.b16 %v56
  %v222 = vunpack.c.h.b16 %v56
  %v223 = vunpack.c.l.b16 %v57
  %v224 = vunpack.c.h.b16 %v57
  %v225 = vunpack.c.l.b16 %v58
  %v226 = vunpack.c.h.b16 %v58
  %v227 = vunpack.c.l.b16 %v59
  %v228 = vunpack.c.h.b16 %v59
  %v229 = vunpack.c.l.b16 %v60
  %v230 = vunpack.c.h.b16 %v60
  %v231 = vunpack.c.l.b16 %v61
  %v232 = vunpack.c.h.b16 %v61
  %v233 = vunpack.c.l.b16 %v62
  %v234 = vunpack.c.h.b16 %v62
  %v235 = vunpack.c.l.b16 %v63
  %v236 = vunpack.c.h.b16 %v63
  %v237 = vunpack.c.l.b16 %v64
  %v238 = vunpack.c.h.b16 %v64
  %v239 = vunpack.c.l.b16 %v65
  %v240 = vunpack.c.h.b16 %v65
  %v241 = vunpack.c.l.b16 %v66
  %v242 = vunpack.c.h.b16 %v66
  %v243 = vunpack.c.l.b16 %v67
  %v244 = vunpack.c.h.b16 %v67
  %v245 = vunpack.c.l.b16 %v68
  %v246 = vunpack.c.h.b16 %v68
  %v247 = vunpack.c.l.b16 %v69
  %v248 = vunpack.c.h.b16 %v69
  %v249 = vunpack.c.l.b16 %v70
  %v250 = vunpack.c.h.b16 %v70
  %v251 = vunpack.c.l.b16 %v71
  %v252 = vunpack.c.h.b16 %v71
  %v253 = vunpack.c.l.b16 %v72
  %v254 = vunpack.c.h.b16 %v72
  %v255 = vunpack.c.l.b16 %v73
  %v256 = vunpack.c.h.b16 %v73
  %v257 = vunpack.c.l.b16 %v74
  %v258 = vunpack.c.h.b16 %v74
  %v259 = vunpack.c.l.b16 %v75
  %v260 = vunpack.c.h.b16 %v75
  %v261 = vunpack.c.l.b16 %v76
  %v262 = vunpack.c.h.b16 %v76
  %v263 = vunpack.c.l.b16 %v77
  %v264 = vunpack.c.h.b16 %v77
  %v265 = vunpack.c.l.b16 %v78
  %v266 = vunpack.c.h.b16 %v78
  %v267 = vunpack.c.l.b16 %v79
  %v268 = vunpack.c.h.b16 %v79
  %v269 = vunpack.c.l.b16 %v80
  %v270 = vunpack.c.h.b16 %v80
  %v271 = vunpack.c.l.b16 %v81
  %v272 = vunpack.c.h.b16 %v81
  %v273 = vunpack.c.l.b16 %v82
  %v274 = vunpack.c.h.b16 %v82
  %v275 = vunpack.c.l.b16 %v83
  %v276 = vunpack.c.h.b16 %v83
  %v277 = vunpack.c.l.b16 %v84
  %v278 = vunpack.c.h.b16 %v84
  %v279 = vunpack.c.l.b16 %v85
  %v280 = vunpack.c.h.b16 %v85
  %v281 = vunpack.c.l.b16 %v86
  %v282 = vunpack.c.h.b16 %v86
  %v283 = vunpack.c.l.b16 %v87
  %v284 = vunpack.c.h.b16 %v87
  %v285 = vunpack.c.l.b16 %v88
  %v286 = vunpack.c.h.b16 %v88
  %v287 = vunpack.c.l.b16 %v89
  %v288 = vunpack.c.h.b16 %v89
  %v289 = vunpack.c.l.b16 %v90
  %v290 = vunpack.c.h.b16 %v90
  %v291 = vunpack.c.l.b16 %v91
  %v292 = vunpack.c.h.b16 %v91
  %v293 = vunpack.c.l.b16 %v92
  %v294 = vunpack.c.h.b16 %v92
  %v295 = vunpack.c.l.b16 %v93
  %v296 = vunpack.c.h.b16 %v93
  %v297 = vunpack.c.l.b16 %v94
  %v298 = vunpack.c.h.b16 %v94
  %v299 = vunpack.c.l.b16 %v95
  %v300 = vunpack.c.h.b16 %v95
  %v301 = vunpack.c.l.b16 %v96
  %v302 = vunpack.c.h.b16 %v96
  %v303 = vunpack.c.l.b16 %v97
  %v304 = vunpack.c.h.b16 %v97
  %v305 = vunpack.c.l.b16 %v98
  %v306 = vunpack.c.h.b16 %v98
  %v307 = vunpack.c.l.b16 %v99
  %v308 = vunpack.c.h.b16 %v99
  %v309 = vunpack.c.l.b16 %v100
  %v310 = vunpack.c.h.b16 %v100
  %v311 = vunpack.c.l.b16 %v101
  %v312 = vunpack.c.h.b16 %v101
  %v313 = vunpack.c.l.b16 %v102
  %v314 = vunpack.c.h.b16 %v102
  %v315 = vpack.c.b16 %v189, %v187
  %v316 = vpack.c.b16 %v190, %v188
  %v317 = vpack.c.b16 %v193, %v191
  %v318 = vpack.c.b16 %v194, %v192
  %v319 = vpack.c.b16 %v197, %v195
  %v320 = vpack.c.b16 %v198, %v196
  %v321 = vpack.c.b16 %v201, %v199
  %v322 = vpack.c.b16 %v202, %v200
  %v323 = vpack.c.b16 %v205, %v203
  %v324 = vpack.c.b16 %v206, %v204
  %v325 = vpack.c.b16 %v209, %v207
  %v326 = vpack.c.b16 %v210, %v208
  %v327 = vpack.c.b16 %v213, %v211
  %v328 = vpack.c.b16 %v214, %v212
  %v329 = vpack.c.b16 %v217, %v215
  %v330 = vpack.c.b16 %v218, %v216
  %v331 = vpack.c.b16 %v221, %v219
  %v332 = vpack.c.b16 %v222, %v220
  %v333 = vpack.c.b16 %v225, %v223
  %v334 = vpack.c.b16 %v226, %v224
  %v335 = vpack.c.b16 %v229, %v227
  %v336 = vpack.c.b16 %v230, %v228
  %v337 = vpack.c.b16 %v233, %v231
  %v338 = vpack.c.b16 %v234, %v232
  %v339 = vpack.c.b16 %v237, %v235
  %v340 = vpack.c.b16 %v238, %v236
  %v341 = vpack.c.b16 %v241, %v239
  %v342 = vpack.c.b16 %v242, %v240
  %v343 = vpack.c.b16 %v245, %v243
  %v344 = vpack.c.b16 %v246, %v244
  %v345 = vpack.c.b16 %v249, %v247
  %v346 = vpack.c.b16 %v250, %v248
  %v347 = vpack.c.b16 %v253, %v251
  %v348 = vpack.c.b16 %v254, %v252
  %v349 = vpack.c.b16 %v257, %v255
  %v350 = vpack.c.b16 %v258, %v256
  %v351 = vpack.c.b16 %v261, %v259
  %v352 = vpack.c.b16 %v262, %v260
  %v353 = vpack.c.b16 %v265, %v263
  %v354 = vpack.c.b16 %v266, %v264
  %v355 = vpack.c.b16 %v269, %v267
  %v356 = vpack.c.b16 %v270, %v268
  %v357 = vpack.c.b16 %v273, %v271
  %v358 = vpack.c.b16 %v274, %v272
  %v359 = vpack.c.b16 %v277, %v275
  %v360 = vpack.c.b16 %v278, %v276
  %v361 = vpack.c.b16 %v281, %v279
  %v362 = vpack.c.b16 %v282, %v280
  %v363 = vpack.c.b16 %v285, %v283
  %v364 = vpack.c.b16 %v286, %v284
  %v365 = vpack.c.b16 %v289, %v287
  %v366 = vpack.c.b16 %v290, %v288
  %v367 = vpack.c.b16 %v293, %v291
  %v368 = vpack.c.b16 %v294, %v292
  %v369 = vpack.c.b16 %v297, %v295
  %v370 = vpack.c.b16 %v298, %v296
  %v371 = vpack.c.b16 %v301, %v299
  %v372 = vpack.c.b16 %v302, %v300
  %v373 = vpack.c.b16 %v305, %v303
  %v374 = vpack.c.b16 %v306, %v304
  %v375 = vpack.c.b16 %v309, %v307
  %v376 = vpack.c.b16 %v310, %v308
  %v377 = vpack.c.b16 %v313, %v311
  %v378 = vpack.c.b16 %v314, %v312
  %443 = vmatprep.subr.bf16.mxu0 %v316
  %444 = vmatpush1.bf16.msra.mxu0 %v315
  %445 = vmatprep.subr.bf16.mxu0 %v318
  %446 = vmatpush1.bf16.msra.mxu0 %v317
  %447 = vmatprep.subr.bf16.mxu0 %v320
  %448 = vmatpush1.bf16.msra.mxu0 %v319
  %449 = vmatprep.subr.bf16.mxu0 %v322
  %450 = vmatpush1.bf16.msra.mxu0 %v321
  %451 = vmatprep.subr.bf16.mxu0 %v324
  %452 = vmatpush1.bf16.msra.mxu0 %v323
  %453 = vmatprep.subr.bf16.mxu0 %v326
  %454 = vmatpush1.bf16.msra.mxu0 %v325
  %455 = vmatprep.subr.bf16.mxu0 %v328
  %456 = vmatpush1.bf16.msra.mxu0 %v327
  %457 = vmatprep.subr.bf16.mxu0 %v330
  %458 = vmatpush1.bf16.msra.mxu0 %v329
  %459 = vmatprep.subr.bf16.mxu0 %v332
  %460 = vmatpush1.bf16.msra.mxu0 %v331
  %461 = vmatprep.subr.bf16.mxu0 %v334
  %462 = vmatpush1.bf16.msra.mxu0 %v333
  %463 = vmatprep.subr.bf16.mxu0 %v336
  %464 = vmatpush1.bf16.msra.mxu0 %v335
  %465 = vmatprep.subr.bf16.mxu0 %v338
  %466 = vmatpush1.bf16.msra.mxu0 %v337
  %467 = vmatprep.subr.bf16.mxu0 %v340
  %468 = vmatpush1.bf16.msra.mxu0 %v339
  %469 = vmatprep.subr.bf16.mxu0 %v342
  %470 = vmatpush1.bf16.msra.mxu0 %v341
  %471 = vmatprep.subr.bf16.mxu0 %v344
  %472 = vmatpush1.bf16.msra.mxu0 %v343
  %473 = vmatprep.subr.bf16.mxu0 %v346
  %474 = vmatpush1.bf16.msra.mxu0 %v345
  %475 = vmatprep.mubr.bf16.mxu0 %v116
  %476 = vmatmul.mubr.bf16.gmra.mrb[0].mxu0 %v115
  %v477 = vpop.f32.mrb[0].mxu0
  %v478 = vadd.f32 0.0, %v477
  %v479 = vpop.f32.mrb[0].mxu0
  %v480 = vadd.f32 0.0, %v479
  %v481 = vpop.f32.mrb[0].mxu0
  %v482 = vadd.f32 0.0, %v481
  %v483 = vpop.f32.mrb[0].mxu0
  %v484 = vadd.f32 0.0, %v483
  %485 = vdwg.mxu0
  %486 = vmatprep.subr.bf16.mxu0 %v348
  %487 = vmatpush1.bf16.msra.mxu0 %v347
  %488 = vmatprep.subr.bf16.mxu0 %v350
  %489 = vmatpush1.bf16.msra.mxu0 %v349
  %490 = vmatprep.subr.bf16.mxu0 %v352
  %491 = vmatpush1.bf16.msra.mxu0 %v351
  %492 = vmatprep.subr.bf16.mxu0 %v354
  %493 = vmatpush1.bf16.msra.mxu0 %v353
  %494 = vmatprep.subr.bf16.mxu0 %v356
  %495 = vmatpush1.bf16.msra.mxu0 %v355
  %496 = vmatprep.subr.bf16.mxu0 %v358
  %497 = vmatpush1.bf16.msra.mxu0 %v357
  %498 = vmatprep.subr.bf16.mxu0 %v360
  %499 = vmatpush1.bf16.msra.mxu0 %v359
  %500 = vmatprep.subr.bf16.mxu0 %v362
  %501 = vmatpush1.bf16.msra.mxu0 %v361
  %502 = vmatprep.subr.bf16.mxu0 %v364
  %503 = vmatpush1.bf16.msra.mxu0 %v363
  %504 = vmatprep.subr.bf16.mxu0 %v366
  %505 = vmatpush1.bf16.msra.mxu0 %v365
  %506 = vmatprep.subr.bf16.mxu0 %v368
  %507 = vmatpush1.bf16.msra.mxu0 %v367
  %508 = vmatprep.subr.bf16.mxu0 %v370
  %509 = vmatpush1.bf16.msra.mxu0 %v369
  %510 = vmatprep.subr.bf16.mxu0 %v372
  %511 = vmatpush1.bf16.msra.mxu0 %v371
  %512 = vmatprep.subr.bf16.mxu0 %v374
  %513 = vmatpush1.bf16.msra.mxu0 %v373
  %514 = vmatprep.subr.bf16.mxu0 %v376
  %515 = vmatpush1.bf16.msra.mxu0 %v375
  %516 = vmatprep.subr.bf16.mxu0 %v378
  %517 = vmatpush1.bf16.msra.mxu0 %v377
  %518 = vmatprep.mubr.bf16.mxu0 %v118
  %519 = vmatmul.mubr.bf16.gmra.mrb[0].mxu0 %v117
  %v520 = vpop.f32.mrb[0].mxu0
  %v521 = vadd.f32 %v478, %v520
  %v522 = vpop.f32.mrb[0].mxu0
  %v523 = vadd.f32 %v480, %v522
  %v524 = vpop.f32.mrb[0].mxu0
  %v525 = vadd.f32 %v482, %v524
  %v526 = vpop.f32.mrb[0].mxu0
  %v527 = vadd.f32 %v484, %v526
  %528 = vdwg.mxu0
  %v529 = vadd.f32 %v31, %v521
  %v530 = vadd.f32 %v32, %v523
  %v531 = vadd.f32 %v33, %v525
  %v532 = vadd.f32 %v34, %v527
  %533 = vst [vmem:[#allocation2] sm:$0xff] %v529
  %534 = vst [vmem:[#allocation2 + $0x8] sm:$0xff] %v530
  %535 = vst [vmem:[#allocation2 + $0x10] sm:$0xff] %v531
  %536 = vst [vmem:[#allocation2 + $0x18] sm:$0xff] %v532
  // Predicated region
  $region30: #{table_model_forward.16} parent=0 // pred_check
    %p537 = pneg %p23
  $region31: #{table_model_forward.16} parent=0 // pred_check_branch
    %539 = sbr.rel (%p537) target = $region33
  $region32: #{table_model_forward.16} parent=0 // pred_region
    %v540 = vld [vmem:[#allocation2] sm:$0xff]
    %v541 = vld [vmem:[#allocation2 + $0x8] sm:$0xff]
    %v542 = vld [vmem:[#allocation2 + $0x10] sm:$0xff]
    %v543 = vld [vmem:[#allocation2 + $0x18] sm:$0xff]
    %v544 = vld [vmem:[%s2] sm:$0x3]
    %v546 = vlaneseq
    %v547 = vshrl.u32 %v546, 7
    %v548 = vsub.s32 0, %v547
    %v549 = vrot.slane %v544, %v548
    %v550 = vlaneseq
    %v551 = vshrl.u32 %v550, 7
    %v552 = vsub.s32 1, %v551
    %v553 = vrot.slane %v544, %v552
    %v556 = vadd.f32 %v540, %v549
    %v557 = vadd.f32 %v541, %v553
    %v558 = vadd.f32 %v542, %v549
    %v559 = vadd.f32 %v543, %v553
    %v560 = vld [vmem:[%s3] sm:$0xff]
    %v561 = vld [vmem:[%s3 + $0x8] sm:$0xff]
    %v562 = vunpack.c.l.bf16 %v560
    %v563 = vunpack.c.h.bf16 %v560
    %v564 = vunpack.c.l.bf16 %v561
    %v565 = vunpack.c.h.bf16 %v561
    %v566 = vadd.f32 %v556, %v562
    %v567 = vadd.f32 %v557, %v563
    %v568 = vadd.f32 %v558, %v564
    %v569 = vadd.f32 %v559, %v565
    %v570 = vadd.f32 %v566, %v567
    %571 = vadd.xlane.f32.xlu0 %v570
    %v572 = vpop.xlane.xlu0 %571
    %v573 = vadd.f32 %v568, %v569
    %574 = vadd.xlane.f32.xlu0 %v573
    %v575 = vpop.xlane.xlu0 %574
    %v576 = vrcp.pop 256.0
    %v577 = vmul.f32 %v572, %v576
    %v578 = vmul.f32 %v575, %v576
    %v579 = vsub.f32 %v566, %v577
    %v580 = vsub.f32 %v567, %v577
    %v581 = vsub.f32 %v568, %v578
    %v582 = vsub.f32 %v569, %v578
    %v583 = vmul.f32 %v579, %v579
    %v584 = vmul.f32 %v580, %v580
    %v585 = vmul.f32 %v581, %v581
    %v586 = vmul.f32 %v582, %v582
    %v587 = vadd.f32 %v583, %v584
    %588 = vadd.xlane.f32.xlu0 %v587
    %v589 = vpop.xlane.xlu0 %588
    %v590 = vadd.f32 %v585, %v586
    %591 = vadd.xlane.f32.xlu0 %v590
    %v592 = vpop.xlane.xlu0 %591
    %v593 = vmul.f32 %v589, %v576
    %v594 = vmul.f32 %v592, %v576
    %v595 = vadd.f32 %v593, 1e-05
    %v596 = vadd.f32 %v594, 1e-05
    %v597 = vrsqrt.pop %v595
    %v598 = vrsqrt.pop %v596
    %v599 = vmul.f32 %v579, %v597
    %v600 = vmul.f32 %v580, %v597
    %v601 = vmul.f32 %v581, %v598
    %v602 = vmul.f32 %v582, %v598
    %v603 = vld [vmem:[%s4] sm:$0x3]
    %v605 = vlaneseq
    %v606 = vshrl.u32 %v605, 7
    %v607 = vsub.s32 0, %v606
    %v608 = vrot.slane %v603, %v607
    %v609 = vlaneseq
    %v610 = vshrl.u32 %v609, 7
    %v611 = vsub.s32 1, %v610
    %v612 = vrot.slane %v603, %v611
    %v615 = vmul.f32 %v599, %v608
    %v616 = vmul.f32 %v600, %v612
    %v617 = vmul.f32 %v601, %v608
    %v618 = vmul.f32 %v602, %v612
    %v619 = vld [vmem:[%s5] sm:$0x3]
    %v621 = vlaneseq
    %v622 = vshrl.u32 %v621, 7
    %v623 = vsub.s32 0, %v622
    %v624 = vrot.slane %v619, %v623
    %v625 = vlaneseq
    %v626 = vshrl.u32 %v625, 7
    %v627 = vsub.s32 1, %v626
    %v628 = vrot.slane %v619, %v627
    %v631 = vadd.f32 %v615, %v624
    %v632 = vadd.f32 %v616, %v628
    %v633 = vadd.f32 %v617, %v624
    %v634 = vadd.f32 %v618, %v628
    %v635 = vpack.c.bf16 %v633, %v631
    %v636 = vpack.c.bf16 %v634, %v632
    %v639 = vunpack.c.l.b16 %v635
    %v640 = vunpack.c.l.b16 %v636
    %v641 = vunpack.c.h.b16 %v635
    %v642 = vunpack.c.h.b16 %v636
    %v643 = vpack.c.b16 %v640, %v639
    %v644 = vpack.c.b16 %v642, %v641
    %647 = vst [vmem:[%s6] sm:$0xff] %v643
    %648 = vst [vmem:[%s6 + $0x8] sm:$0xff] %v644
  $region33: #{table_model_forward.16} parent=0 // pred_fallthru
    _
  // Predicated region
  $region34: #{table_model_forward.16} parent=0 // pred_check
    _
  $region35: #{table_model_forward.16} parent=0 // pred_check_branch
    %650 = sbr.rel (0) target = $region37
  $region36: #{table_model_forward.16} parent=0 // pred_region
    _
  $region37: #{table_model_forward.16} parent=0 // pred_fallthru
    _
  // Predicated region
  $region38: #{table_model_forward.16} parent=0 // pred_check
    _
  $region39: #{table_model_forward.16} parent=0 // pred_check_branch
    %652 = sbr.rel (0) target = $region41
  $region40: #{table_model_forward.16} parent=0 // pred_region
    _
  $region41: #{table_model_forward.16} parent=0 // pred_fallthru
    _

// kernel: table_model_forward.15
$region0: #{table_model_forward.15}
  #allocation0 [shape = 'u32[]', space=smem, size = 0x4, offset = 0x4, fixed_abs, tag = 'smem constant byte address 0x4 - core index']
  #allocation1 [shape = 'u32[144,128]{1,0:T(1,128)}', space=vmem, size = 0x12000, scoped, tag = 'internal scratch']
  #allocation2 [shape = 'f32[16,512]{1,0:T(8,128)}', space=vmem, size = 0x8000, scoped, tag = 'scratch operand']
  %s0 = inlined_call_operand.vmem [shape: bf16[16,256], index: 0, kind: input, shape index: {}]
  %s1 = inlined_call_operand.vmem [shape: bf16[256,512], index: 1, kind: input, shape index: {}]
  %s2 = inlined_call_operand.vmem [shape: f32[1,512], index: 2, kind: input, shape index: {}]
  %s3 = inlined_call_operand.vmem [shape: bf16[16,512], index: 3, kind: output, shape index: {}]
  %s4 = sld [smem:[#allocation0]]
  $region30: #{table_model_forward.15} parent=0
    _
  %s6 = ssub.s32 1, %s4
  %s7 = scalar_select 0, %s6, %s4
  // Predicated region
  $region2: #{table_model_forward.15} parent=0 // pred_check
    _
  $region3: #{table_model_forward.15} parent=0 // pred_check_branch
    %9 = sbr.rel (0) target = $region5
  $region4: #{table_model_forward.15} parent=0 // pred_region
    _
  $region5: #{table_model_forward.15} parent=0 // pred_fallthru
    _
  // Predicated region
  $region6: #{table_model_forward.15} parent=0 // pred_check
    _
  $region7: #{table_model_forward.15} parent=0 // pred_check_branch
    %11 = sbr.rel (0) target = $region9
  $region8: #{table_model_forward.15} parent=0 // pred_region
    _
  $region9: #{table_model_forward.15} parent=0 // pred_fallthru
    _
  // Predicated region
  $region10: #{table_model_forward.15} parent=0 // pred_check
    _
  $region11: #{table_model_forward.15} parent=0 // pred_check_branch
    %13 = sbr.rel (0) target = $region13
  $region12: #{table_model_forward.15} parent=0 // pred_region
    _
  $region13: #{table_model_forward.15} parent=0 // pred_fallthru
    _
  %p14 = scmp.eq.s32.totalorder 0, 0
  // Predicated region
  $region14: #{table_model_forward.15} parent=0 // pred_check
    %p15 = pneg %p14
  $region15: #{table_model_forward.15} parent=0 // pred_check_branch
    %17 = sbr.rel (%p15) target = $region17
  $region16: #{table_model_forward.15} parent=0 // pred_region
    %18 = vst [vmem:[#allocation2] sm:$0xff] 0.0
    %19 = vst [vmem:[#allocation2 + $0x8] sm:$0xff] 0.0
    %20 = vst [vmem:[#allocation2 + $0x10] sm:$0xff] 0.0
    %21 = vst [vmem:[#allocation2 + $0x18] sm:$0xff] 0.0
    %22 = vst [vmem:[#allocation2 + $0x20] sm:$0xff] 0.0
    %23 = vst [vmem:[#allocation2 + $0x28] sm:$0xff] 0.0
    %24 = vst [vmem:[#allocation2 + $0x30] sm:$0xff] 0.0
    %25 = vst [vmem:[#allocation2 + $0x38] sm:$0xff] 0.0
  $region17: #{table_model_forward.15} parent=0 // pred_fallthru
    _
  %v26 = vld [vmem:[#allocation2] sm:$0xff]
  %v27 = vld [vmem:[#allocation2 + $0x8] sm:$0xff]
  %v28 = vld [vmem:[#allocation2 + $0x10] sm:$0xff]
  %v29 = vld [vmem:[#allocation2 + $0x18] sm:$0xff]
  %v30 = vld [vmem:[#allocation2 + $0x20] sm:$0xff]
  %v31 = vld [vmem:[#allocation2 + $0x28] sm:$0xff]
  %v32 = vld [vmem:[#allocation2 + $0x30] sm:$0xff]
  %v33 = vld [vmem:[#allocation2 + $0x38] sm:$0xff]
  %v34 = vld [vmem:[%s0] sm:$0xff]
  %v35 = vld [vmem:[%s0 + $0x8] sm:$0xff]
  %v36 = vld [vmem:[%s1] sm:$0xff]
  %v37 = vld [vmem:[%s1 + $0x8] sm:$0xff]
  %v38 = vld [vmem:[%s1 + $0x10] sm:$0xff]
  %v39 = vld [vmem:[%s1 + $0x18] sm:$0xff]
  %v40 = vld [vmem:[%s1 + $0x20] sm:$0xff]
  %v41 = vld [vmem:[%s1 + $0x28] sm:$0xff]
  %v42 = vld [vmem:[%s1 + $0x30] sm:$0xff]
  %v43 = vld [vmem:[%s1 + $0x38] sm:$0xff]
  %v44 = vld [vmem:[%s1 + $0x40] sm:$0xff]
  %v45 = vld [vmem:[%s1 + $0x48] sm:$0xff]
  %v46 = vld [vmem:[%s1 + $0x50] sm:$0xff]
  %v47 = vld [vmem:[%s1 + $0x58] sm:$0xff]
  %v48 = vld [vmem:[%s1 + $0x60] sm:$0xff]
  %v49 = vld [vmem:[%s1 + $0x68] sm:$0xff]
  %v50 = vld [vmem:[%s1 + $0x70] sm:$0xff]
  %v51 = vld [vmem:[%s1 + $0x78] sm:$0xff]
  %v52 = vld [vmem:[%s1 + $0x80] sm:$0xff]
  %v53 = vld [vmem:[%s1 + $0x88] sm:$0xff]
  %v54 = vld [vmem:[%s1 + $0x90] sm:$0xff]
  %v55 = vld [vmem:[%s1 + $0x98] sm:$0xff]
  %v56 = vld [vmem:[%s1 + $0xa0] sm:$0xff]
  %v57 = vld [vmem:[%s1 + $0xa8] sm:$0xff]
  %v58 = vld [vmem:[%s1 + $0xb0] sm:$0xff]
  %v59 = vld [vmem:[%s1 + $0xb8] sm:$0xff]
  %v60 = vld [vmem:[%s1 + $0xc0] sm:$0xff]
  %v61 = vld [vmem:[%s1 + $0xc8] sm:$0xff]
  %v62 = vld [vmem:[%s1 + $0xd0] sm:$0xff]
  %v63 = vld [vmem:[%s1 + $0xd8] sm:$0xff]
  %v64 = vld [vmem:[%s1 + $0xe0] sm:$0xff]
  %v65 = vld [vmem:[%s1 + $0xe8] sm:$0xff]
  %v66 = vld [vmem:[%s1 + $0xf0] sm:$0xff]
  %v67 = vld [vmem:[%s1 + $0xf8] sm:$0xff]
  %v68 = vld [vmem:[%s1 + $0x100] sm:$0xff]
  %v69 = vld [vmem:[%s1 + $0x108] sm:$0xff]
  %v70 = vld [vmem:[%s1 + $0x110] sm:$0xff]
  %v71 = vld [vmem:[%s1 + $0x118] sm:$0xff]
  %v72 = vld [vmem:[%s1 + $0x120] sm:$0xff]
  %v73 = vld [vmem:[%s1 + $0x128] sm:$0xff]
  %v74 = vld [vmem:[%s1 + $0x130] sm:$0xff]
  %v75 = vld [vmem:[%s1 + $0x138] sm:$0xff]
  %v76 = vld [vmem:[%s1 + $0x140] sm:$0xff]
  %v77 = vld [vmem:[%s1 + $0x148] sm:$0xff]
  %v78 = vld [vmem:[%s1 + $0x150] sm:$0xff]
  %v79 = vld [vmem:[%s1 + $0x158] sm:$0xff]
  %v80 = vld [vmem:[%s1 + $0x160] sm:$0xff]
  %v81 = vld [vmem:[%s1 + $0x168] sm:$0xff]
  %v82 = vld [vmem:[%s1 + $0x170] sm:$0xff]
  %v83 = vld [vmem:[%s1 + $0x178] sm:$0xff]
  %v84 = vld [vmem:[%s1 + $0x180] sm:$0xff]
  %v85 = vld [vmem:[%s1 + $0x188] sm:$0xff]
  %v86 = vld [vmem:[%s1 + $0x190] sm:$0xff]
  %v87 = vld [vmem:[%s1 + $0x198] sm:$0xff]
  %v88 = vld [vmem:[%s1 + $0x1a0] sm:$0xff]
  %v89 = vld [vmem:[%s1 + $0x1a8] sm:$0xff]
  %v90 = vld [vmem:[%s1 + $0x1b0] sm:$0xff]
  %v91 = vld [vmem:[%s1 + $0x1b8] sm:$0xff]
  %v92 = vld [vmem:[%s1 + $0x1c0] sm:$0xff]
  %v93 = vld [vmem:[%s1 + $0x1c8] sm:$0xff]
  %v94 = vld [vmem:[%s1 + $0x1d0] sm:$0xff]
  %v95 = vld [vmem:[%s1 + $0x1d8] sm:$0xff]
  %v96 = vld [vmem:[%s1 + $0x1e0] sm:$0xff]
  %v97 = vld [vmem:[%s1 + $0x1e8] sm:$0xff]
  %v98 = vld [vmem:[%s1 + $0x1f0] sm:$0xff]
  %v99 = vld [vmem:[%s1 + $0x1f8] sm:$0xff]
  %v102 = vunpack.c.l.b16 %v34
  %v103 = vunpack.c.h.b16 %v34
  %v104 = vunpack.c.l.b16 %v35
  %v105 = vunpack.c.h.b16 %v35
  %v106 = vpack.c.b16 %v104, %v102
  %v107 = vpack.c.b16 %v105, %v103
  %v174 = vunpack.c.l.b16 %v36
  %v175 = vunpack.c.h.b16 %v36
  %v176 = vunpack.c.l.b16 %v37
  %v177 = vunpack.c.h.b16 %v37
  %v178 = vunpack.c.l.b16 %v38
  %v179 = vunpack.c.h.b16 %v38
  %v180 = vunpack.c.l.b16 %v39
  %v181 = vunpack.c.h.b16 %v39
  %v182 = vunpack.c.l.b16 %v40
  %v183 = vunpack.c.h.b16 %v40
  %v184 = vunpack.c.l.b16 %v41
  %v185 = vunpack.c.h.b16 %v41
  %v186 = vunpack.c.l.b16 %v42
  %v187 = vunpack.c.h.b16 %v42
  %v188 = vunpack.c.l.b16 %v43
  %v189 = vunpack.c.h.b16 %v43
  %v190 = vunpack.c.l.b16 %v44
  %v191 = vunpack.c.h.b16 %v44
  %v192 = vunpack.c.l.b16 %v45
  %v193 = vunpack.c.h.b16 %v45
  %v194 = vunpack.c.l.b16 %v46
  %v195 = vunpack.c.h.b16 %v46
  %v196 = vunpack.c.l.b16 %v47
  %v197 = vunpack.c.h.b16 %v47
  %v198 = vunpack.c.l.b16 %v48
  %v199 = vunpack.c.h.b16 %v48
  %v200 = vunpack.c.l.b16 %v49
  %v201 = vunpack.c.h.b16 %v49
  %v202 = vunpack.c.l.b16 %v50
  %v203 = vunpack.c.h.b16 %v50
  %v204 = vunpack.c.l.b16 %v51
  %v205 = vunpack.c.h.b16 %v51
  %v206 = vunpack.c.l.b16 %v52
  %v207 = vunpack.c.h.b16 %v52
  %v208 = vunpack.c.l.b16 %v53
  %v209 = vunpack.c.h.b16 %v53
  %v210 = vunpack.c.l.b16 %v54
  %v211 = vunpack.c.h.b16 %v54
  %v212 = vunpack.c.l.b16 %v55
  %v213 = vunpack.c.h.b16 %v55
  %v214 = vunpack.c.l.b16 %v56
  %v215 = vunpack.c.h.b16 %v56
  %v216 = vunpack.c.l.b16 %v57
  %v217 = vunpack.c.h.b16 %v57
  %v218 = vunpack.c.l.b16 %v58
  %v219 = vunpack.c.h.b16 %v58
  %v220 = vunpack.c.l.b16 %v59
  %v221 = vunpack.c.h.b16 %v59
  %v222 = vunpack.c.l.b16 %v60
  %v223 = vunpack.c.h.b16 %v60
  %v224 = vunpack.c.l.b16 %v61
  %v225 = vunpack.c.h.b16 %v61
  %v226 = vunpack.c.l.b16 %v62
  %v227 = vunpack.c.h.b16 %v62
  %v228 = vunpack.c.l.b16 %v63
  %v229 = vunpack.c.h.b16 %v63
  %v230 = vunpack.c.l.b16 %v64
  %v231 = vunpack.c.h.b16 %v64
  %v232 = vunpack.c.l.b16 %v65
  %v233 = vunpack.c.h.b16 %v65
  %v234 = vunpack.c.l.b16 %v66
  %v235 = vunpack.c.h.b16 %v66
  %v236 = vunpack.c.l.b16 %v67
  %v237 = vunpack.c.h.b16 %v67
  %v238 = vunpack.c.l.b16 %v68
  %v239 = vunpack.c.h.b16 %v68
  %v240 = vunpack.c.l.b16 %v69
  %v241 = vunpack.c.h.b16 %v69
  %v242 = vunpack.c.l.b16 %v70
  %v243 = vunpack.c.h.b16 %v70
  %v244 = vunpack.c.l.b16 %v71
  %v245 = vunpack.c.h.b16 %v71
  %v246 = vunpack.c.l.b16 %v72
  %v247 = vunpack.c.h.b16 %v72
  %v248 = vunpack.c.l.b16 %v73
  %v249 = vunpack.c.h.b16 %v73
  %v250 = vunpack.c.l.b16 %v74
  %v251 = vunpack.c.h.b16 %v74
  %v252 = vunpack.c.l.b16 %v75
  %v253 = vunpack.c.h.b16 %v75
  %v254 = vunpack.c.l.b16 %v76
  %v255 = vunpack.c.h.b16 %v76
  %v256 = vunpack.c.l.b16 %v77
  %v257 = vunpack.c.h.b16 %v77
  %v258 = vunpack.c.l.b16 %v78
  %v259 = vunpack.c.h.b16 %v78
  %v260 = vunpack.c.l.b16 %v79
  %v261 = vunpack.c.h.b16 %v79
  %v262 = vunpack.c.l.b16 %v80
  %v263 = vunpack.c.h.b16 %v80
  %v264 = vunpack.c.l.b16 %v81
  %v265 = vunpack.c.h.b16 %v81
  %v266 = vunpack.c.l.b16 %v82
  %v267 = vunpack.c.h.b16 %v82
  %v268 = vunpack.c.l.b16 %v83
  %v269 = vunpack.c.h.b16 %v83
  %v270 = vunpack.c.l.b16 %v84
  %v271 = vunpack.c.h.b16 %v84
  %v272 = vunpack.c.l.b16 %v85
  %v273 = vunpack.c.h.b16 %v85
  %v274 = vunpack.c.l.b16 %v86
  %v275 = vunpack.c.h.b16 %v86
  %v276 = vunpack.c.l.b16 %v87
  %v277 = vunpack.c.h.b16 %v87
  %v278 = vunpack.c.l.b16 %v88
  %v279 = vunpack.c.h.b16 %v88
  %v280 = vunpack.c.l.b16 %v89
  %v281 = vunpack.c.h.b16 %v89
  %v282 = vunpack.c.l.b16 %v90
  %v283 = vunpack.c.h.b16 %v90
  %v284 = vunpack.c.l.b16 %v91
  %v285 = vunpack.c.h.b16 %v91
  %v286 = vunpack.c.l.b16 %v92
  %v287 = vunpack.c.h.b16 %v92
  %v288 = vunpack.c.l.b16 %v93
  %v289 = vunpack.c.h.b16 %v93
  %v290 = vunpack.c.l.b16 %v94
  %v291 = vunpack.c.h.b16 %v94
  %v292 = vunpack.c.l.b16 %v95
  %v293 = vunpack.c.h.b16 %v95
  %v294 = vunpack.c.l.b16 %v96
  %v295 = vunpack.c.h.b16 %v96
  %v296 = vunpack.c.l.b16 %v97
  %v297 = vunpack.c.h.b16 %v97
  %v298 = vunpack.c.l.b16 %v98
  %v299 = vunpack.c.h.b16 %v98
  %v300 = vunpack.c.l.b16 %v99
  %v301 = vunpack.c.h.b16 %v99
  %v302 = vpack.c.b16 %v178, %v174
  %v303 = vpack.c.b16 %v179, %v175
  %v304 = vpack.c.b16 %v180, %v176
  %v305 = vpack.c.b16 %v181, %v177
  %v306 = vpack.c.b16 %v186, %v182
  %v307 = vpack.c.b16 %v187, %v183
  %v308 = vpack.c.b16 %v188, %v184
  %v309 = vpack.c.b16 %v189, %v185
  %v310 = vpack.c.b16 %v194, %v190
  %v311 = vpack.c.b16 %v195, %v191
  %v312 = vpack.c.b16 %v196, %v192
  %v313 = vpack.c.b16 %v197, %v193
  %v314 = vpack.c.b16 %v202, %v198
  %v315 = vpack.c.b16 %v203, %v199
  %v316 = vpack.c.b16 %v204, %v200
  %v317 = vpack.c.b16 %v205, %v201
  %v318 = vpack.c.b16 %v210, %v206
  %v319 = vpack.c.b16 %v211, %v207
  %v320 = vpack.c.b16 %v212, %v208
  %v321 = vpack.c.b16 %v213, %v209
  %v322 = vpack.c.b16 %v218, %v214
  %v323 = vpack.c.b16 %v219, %v215
  %v324 = vpack.c.b16 %v220, %v216
  %v325 = vpack.c.b16 %v221, %v217
  %v326 = vpack.c.b16 %v226, %v222
  %v327 = vpack.c.b16 %v227, %v223
  %v328 = vpack.c.b16 %v228, %v224
  %v329 = vpack.c.b16 %v229, %v225
  %v330 = vpack.c.b16 %v234, %v230
  %v331 = vpack.c.b16 %v235, %v231
  %v332 = vpack.c.b16 %v236, %v232
  %v333 = vpack.c.b16 %v237, %v233
  %v334 = vpack.c.b16 %v242, %v238
  %v335 = vpack.c.b16 %v243, %v239
  %v336 = vpack.c.b16 %v244, %v240
  %v337 = vpack.c.b16 %v245, %v241
  %v338 = vpack.c.b16 %v250, %v246
  %v339 = vpack.c.b16 %v251, %v247
  %v340 = vpack.c.b16 %v252, %v248
  %v341 = vpack.c.b16 %v253, %v249
  %v342 = vpack.c.b16 %v258, %v254
  %v343 = vpack.c.b16 %v259, %v255
  %v344 = vpack.c.b16 %v260, %v256
  %v345 = vpack.c.b16 %v261, %v257
  %v346 = vpack.c.b16 %v266, %v262
  %v347 = vpack.c.b16 %v267, %v263
  %v348 = vpack.c.b16 %v268, %v264
  %v349 = vpack.c.b16 %v269, %v265
  %v350 = vpack.c.b16 %v274, %v270
  %v351 = vpack.c.b16 %v275, %v271
  %v352 = vpack.c.b16 %v276, %v272
  %v353 = vpack.c.b16 %v277, %v273
  %v354 = vpack.c.b16 %v282, %v278
  %v355 = vpack.c.b16 %v283, %v279
  %v356 = vpack.c.b16 %v284, %v280
  %v357 = vpack.c.b16 %v285, %v281
  %v358 = vpack.c.b16 %v290, %v286
  %v359 = vpack.c.b16 %v291, %v287
  %v360 = vpack.c.b16 %v292, %v288
  %v361 = vpack.c.b16 %v293, %v289
  %v362 = vpack.c.b16 %v298, %v294
  %v363 = vpack.c.b16 %v299, %v295
  %v364 = vpack.c.b16 %v300, %v296
  %v365 = vpack.c.b16 %v301, %v297
  %430 = vmatprep.subr.bf16.mxu0 %v303
  %431 = vmatpush1.bf16.msra.mxu0 %v302
  %432 = vmatprep.subr.bf16.mxu0 %v307
  %433 = vmatpush1.bf16.msra.mxu0 %v306
  %434 = vmatprep.subr.bf16.mxu0 %v311
  %435 = vmatpush1.bf16.msra.mxu0 %v310
  %436 = vmatprep.subr.bf16.mxu0 %v315
  %437 = vmatpush1.bf16.msra.mxu0 %v314
  %438 = vmatprep.subr.bf16.mxu0 %v319
  %439 = vmatpush1.bf16.msra.mxu0 %v318
  %440 = vmatprep.subr.bf16.mxu0 %v323
  %441 = vmatpush1.bf16.msra.mxu0 %v322
  %442 = vmatprep.subr.bf16.mxu0 %v327
  %443 = vmatpush1.bf16.msra.mxu0 %v326
  %444 = vmatprep.subr.bf16.mxu0 %v331
  %445 = vmatpush1.bf16.msra.mxu0 %v330
  %446 = vmatprep.subr.bf16.mxu0 %v335
  %447 = vmatpush1.bf16.msra.mxu0 %v334
  %448 = vmatprep.subr.bf16.mxu0 %v339
  %449 = vmatpush1.bf16.msra.mxu0 %v338
  %450 = vmatprep.subr.bf16.mxu0 %v343
  %451 = vmatpush1.bf16.msra.mxu0 %v342
  %452 = vmatprep.subr.bf16.mxu0 %v347
  %453 = vmatpush1.bf16.msra.mxu0 %v346
  %454 = vmatprep.subr.bf16.mxu0 %v351
  %455 = vmatpush1.bf16.msra.mxu0 %v350
  %456 = vmatprep.subr.bf16.mxu0 %v355
  %457 = vmatpush1.bf16.msra.mxu0 %v354
  %458 = vmatprep.subr.bf16.mxu0 %v359
  %459 = vmatpush1.bf16.msra.mxu0 %v358
  %460 = vmatprep.subr.bf16.mxu0 %v363
  %461 = vmatpush1.bf16.msra.mxu0 %v362
  %462 = vmatprep.mubr.bf16.mxu0 %v107
  %463 = vmatmul.mubr.bf16.gmra.mrb[0].mxu0 %v106
  %v464 = vpop.f32.mrb[0].mxu0
  %v465 = vadd.f32 0.0, %v464
  %v466 = vpop.f32.mrb[0].mxu0
  %v467 = vadd.f32 0.0, %v466
  %v468 = vpop.f32.mrb[0].mxu0
  %v469 = vadd.f32 0.0, %v468
  %v470 = vpop.f32.mrb[0].mxu0
  %v471 = vadd.f32 0.0, %v470
  %472 = vdwg.mxu0
  %473 = vmatprep.subr.bf16.mxu0 %v305
  %474 = vmatpush1.bf16.msra.mxu0 %v304
  %475 = vmatprep.subr.bf16.mxu0 %v309
  %476 = vmatpush1.bf16.msra.mxu0 %v308
  %477 = vmatprep.subr.bf16.mxu0 %v313
  %478 = vmatpush1.bf16.msra.mxu0 %v312
  %479 = vmatprep.subr.bf16.mxu0 %v317
  %480 = vmatpush1.bf16.msra.mxu0 %v316
  %481 = vmatprep.subr.bf16.mxu0 %v321
  %482 = vmatpush1.bf16.msra.mxu0 %v320
  %483 = vmatprep.subr.bf16.mxu0 %v325
  %484 = vmatpush1.bf16.msra.mxu0 %v324
  %485 = vmatprep.subr.bf16.mxu0 %v329
  %486 = vmatpush1.bf16.msra.mxu0 %v328
  %487 = vmatprep.subr.bf16.mxu0 %v333
  %488 = vmatpush1.bf16.msra.mxu0 %v332
  %489 = vmatprep.subr.bf16.mxu0 %v337
  %490 = vmatpush1.bf16.msra.mxu0 %v336
  %491 = vmatprep.subr.bf16.mxu0 %v341
  %492 = vmatpush1.bf16.msra.mxu0 %v340
  %493 = vmatprep.subr.bf16.mxu0 %v345
  %494 = vmatpush1.bf16.msra.mxu0 %v344
  %495 = vmatprep.subr.bf16.mxu0 %v349
  %496 = vmatpush1.bf16.msra.mxu0 %v348
  %497 = vmatprep.subr.bf16.mxu0 %v353
  %498 = vmatpush1.bf16.msra.mxu0 %v352
  %499 = vmatprep.subr.bf16.mxu0 %v357
  %500 = vmatpush1.bf16.msra.mxu0 %v356
  %501 = vmatprep.subr.bf16.mxu0 %v361
  %502 = vmatpush1.bf16.msra.mxu0 %v360
  %503 = vmatprep.subr.bf16.mxu0 %v365
  %504 = vmatpush1.bf16.msra.mxu0 %v364
  %505 = vmatprep.mubr.bf16.mxu0 %v107
  %506 = vmatmul.mubr.bf16.gmra.mrb[0].mxu0 %v106
  %v507 = vpop.f32.mrb[0].mxu0
  %v508 = vadd.f32 0.0, %v507
  %v509 = vpop.f32.mrb[0].mxu0
  %v510 = vadd.f32 0.0, %v509
  %v511 = vpop.f32.mrb[0].mxu0
  %v512 = vadd.f32 0.0, %v511
  %v513 = vpop.f32.mrb[0].mxu0
  %v514 = vadd.f32 0.0, %v513
  %515 = vdwg.mxu0
  %v516 = vadd.f32 %v26, %v465
  %v517 = vadd.f32 %v27, %v467
  %v518 = vadd.f32 %v28, %v508
  %v519 = vadd.f32 %v29, %v510
  %v520 = vadd.f32 %v30, %v469
  %v521 = vadd.f32 %v31, %v471
  %v522 = vadd.f32 %v32, %v512
  %v523 = vadd.f32 %v33, %v514
  %524 = vst [vmem:[#allocation2] sm:$0xff] %v516
  %525 = vst [vmem:[#allocation2 + $0x8] sm:$0xff] %v517
  %526 = vst [vmem:[#allocation2 + $0x10] sm:$0xff] %v518
  %527 = vst [vmem:[#allocation2 + $0x18] sm:$0xff] %v519
  %528 = vst [vmem:[#allocation2 + $0x20] sm:$0xff] %v520
  %529 = vst [vmem:[#allocation2 + $0x28] sm:$0xff] %v521
  %530 = vst [vmem:[#allocation2 + $0x30] sm:$0xff] %v522
  %531 = vst [vmem:[#allocation2 + $0x38] sm:$0xff] %v523
  // Predicated region
  $region18: #{table_model_forward.15} parent=0 // pred_check
    %p532 = pneg %p14
  $region19: #{table_model_forward.15} parent=0 // pred_check_branch
    %534 = sbr.rel (%p532) target = $region21
  $region20: #{table_model_forward.15} parent=0 // pred_region
    %v535 = vld [vmem:[#allocation2] sm:$0xff]
    %v536 = vld [vmem:[#allocation2 + $0x8] sm:$0xff]
    %v537 = vld [vmem:[#allocation2 + $0x10] sm:$0xff]
    %v538 = vld [vmem:[#allocation2 + $0x18] sm:$0xff]
    %v539 = vld [vmem:[#allocation2 + $0x20] sm:$0xff]
    %v540 = vld [vmem:[#allocation2 + $0x28] sm:$0xff]
    %v541 = vld [vmem:[#allocation2 + $0x30] sm:$0xff]
    %v542 = vld [vmem:[#allocation2 + $0x38] sm:$0xff]
    %v543 = vld [vmem:[%s2] sm:$0xf]
    %v545 = vlaneseq
    %v546 = vshrl.u32 %v545, 7
    %v547 = vsub.s32 0, %v546
    %v548 = vrot.slane %v543, %v547
    %v549 = vlaneseq
    %v550 = vshrl.u32 %v549, 7
    %v551 = vsub.s32 1, %v550
    %v552 = vrot.slane %v543, %v551
    %v553 = vlaneseq
    %v554 = vshrl.u32 %v553, 7
    %v555 = vsub.s32 2, %v554
    %v556 = vrot.slane %v543, %v555
    %v557 = vlaneseq
    %v558 = vshrl.u32 %v557, 7
    %v559 = vsub.s32 3, %v558
    %v560 = vrot.slane %v543, %v559
    %v565 = vadd.f32 %v535, %v548
    %v566 = vadd.f32 %v536, %v552
    %v567 = vadd.f32 %v537, %v556
    %v568 = vadd.f32 %v538, %v560
    %v569 = vadd.f32 %v539, %v548
    %v570 = vadd.f32 %v540, %v552
    %v571 = vadd.f32 %v541, %v556
    %v572 = vadd.f32 %v542, %v560
    %v573 = vmul.f32 %v565, %v565
    %v574 = vmul.f32 %v566, %v566
    %v575 = vmul.f32 %v567, %v567
    %v576 = vmul.f32 %v568, %v568
    %v577 = vmul.f32 %v569, %v569
    %v578 = vmul.f32 %v570, %v570
    %v579 = vmul.f32 %v571, %v571
    %v580 = vmul.f32 %v572, %v572
    %v581 = vmul.f32 %v565, %v573
    %v582 = vmul.f32 %v566, %v574
    %v583 = vmul.f32 %v567, %v575
    %v584 = vmul.f32 %v568, %v576
    %v585 = vmul.f32 %v569, %v577
    %v586 = vmul.f32 %v570, %v578
    %v587 = vmul.f32 %v571, %v579
    %v588 = vmul.f32 %v572, %v580
    %v589 = vmul.f32 %v581, 0.044715
    %v590 = vmul.f32 %v582, 0.044715
    %v591 = vmul.f32 %v583, 0.044715
    %v592 = vmul.f32 %v584, 0.044715
    %v593 = vmul.f32 %v585, 0.044715
    %v594 = vmul.f32 %v586, 0.044715
    %v595 = vmul.f32 %v587, 0.044715
    %v596 = vmul.f32 %v588, 0.044715
    %v597 = vadd.f32 %v565, %v589
    %v598 = vadd.f32 %v566, %v590
    %v599 = vadd.f32 %v567, %v591
    %v600 = vadd.f32 %v568, %v592
    %v601 = vadd.f32 %v569, %v593
    %v602 = vadd.f32 %v570, %v594
    %v603 = vadd.f32 %v571, %v595
    %v604 = vadd.f32 %v572, %v596
    %v605 = vmul.f32 %v597, 0.7978846
    %v606 = vmul.f32 %v598, 0.7978846
    %v607 = vmul.f32 %v599, 0.7978846
    %v608 = vmul.f32 %v600, 0.7978846
    %v609 = vmul.f32 %v601, 0.7978846
    %v610 = vmul.f32 %v602, 0.7978846
    %v611 = vmul.f32 %v603, 0.7978846
    %v612 = vmul.f32 %v604, 0.7978846
    %v613 = vtanh.pop %v605
    %v614 = vtanh.pop %v606
    %v615 = vtanh.pop %v607
    %v616 = vtanh.pop %v608
    %v617 = vtanh.pop %v609
    %v618 = vtanh.pop %v610
    %v619 = vtanh.pop %v611
    %v620 = vtanh.pop %v612
    %v621 = vadd.f32 %v613, 1.0
    %v622 = vadd.f32 %v614, 1.0
    %v623 = vadd.f32 %v615, 1.0
    %v624 = vadd.f32 %v616, 1.0
    %v625 = vadd.f32 %v617, 1.0
    %v626 = vadd.f32 %v618, 1.0
    %v627 = vadd.f32 %v619, 1.0
    %v628 = vadd.f32 %v620, 1.0
    %v629 = vmul.f32 %v621, 0.5
    %v630 = vmul.f32 %v622, 0.5
    %v631 = vmul.f32 %v623, 0.5
    %v632 = vmul.f32 %v624, 0.5
    %v633 = vmul.f32 %v625, 0.5
    %v634 = vmul.f32 %v626, 0.5
    %v635 = vmul.f32 %v627, 0.5
    %v636 = vmul.f32 %v628, 0.5
    %v637 = vmul.f32 %v565, %v629
    %v638 = vmul.f32 %v566, %v630
    %v639 = vmul.f32 %v567, %v631
    %v640 = vmul.f32 %v568, %v632
    %v641 = vmul.f32 %v569, %v633
    %v642 = vmul.f32 %v570, %v634
    %v643 = vmul.f32 %v571, %v635
    %v644 = vmul.f32 %v572, %v636
    %v645 = vpack.c.bf16 %v641, %v637
    %v646 = vpack.c.bf16 %v642, %v638
    %v647 = vpack.c.bf16 %v643, %v639
    %v648 = vpack.c.bf16 %v644, %v640
    %v653 = vunpack.c.l.b16 %v645
    %v654 = vunpack.c.l.b16 %v646
    %v655 = vunpack.c.l.b16 %v647
    %v656 = vunpack.c.l.b16 %v648
    %v657 = vunpack.c.h.b16 %v645
    %v658 = vunpack.c.h.b16 %v646
    %v659 = vunpack.c.h.b16 %v647
    %v660 = vunpack.c.h.b16 %v648
    %v661 = vpack.c.b16 %v654, %v653
    %v662 = vpack.c.b16 %v656, %v655
    %v663 = vpack.c.b16 %v658, %v657
    %v664 = vpack.c.b16 %v660, %v659
    %669 = vst [vmem:[%s3] sm:$0xff] %v661
    %670 = vst [vmem:[%s3 + $0x8] sm:$0xff] %v662
    %671 = vst [vmem:[%s3 + $0x10] sm:$0xff] %v663
    %672 = vst [vmem:[%s3 + $0x18] sm:$0xff] %v664
  $region21: #{table_model_forward.15} parent=0 // pred_fallthru
    _
  // Predicated region
  $region22: #{table_model_forward.15} parent=0 // pred_check
    _
  $region23: #{table_model_forward.15} parent=0 // pred_check_branch
    %674 = sbr.rel (0) target = $region25
  $region24: #{table_model_forward.15} parent=0 // pred_region
    _
  $region25: #{table_model_forward.15} parent=0 // pred_fallthru
    _
  // Predicated region
  $region26: #{table_model_forward.15} parent=0 // pred_check
    _
  $region27: #{table_model_forward.15} parent=0 // pred_check_branch
    %676 = sbr.rel (0) target = $region29
  $region28: #{table_model_forward.15} parent=0 // pred_region
    _
  $region29: #{table_model_forward.15} parent=0 // pred_fallthru
    _

// kernel: table_model_forward.17
$region0: #{table_model_forward.17}
  #allocation0 [shape = 'u32[]', space=smem, size = 0x4, offset = 0x4, fixed_abs, tag = 'smem constant byte address 0x4 - core index']
  #allocation1 [shape = 'u32[144,128]{1,0:T(1,128)}', space=vmem, size = 0x12000, scoped, tag = 'internal scratch']
  #allocation2 [shape = 'f32[16,384]{1,0:T(8,128)}', space=vmem, size = 0x6000, scoped, tag = 'scratch operand']
  %s0 = inlined_call_operand.vmem [shape: bf16[16,256], index: 0, kind: input, shape index: {}]
  %s1 = inlined_call_operand.vmem [shape: bf16[256,768], index: 1, kind: input, shape index: {}]
  %s2 = inlined_call_operand.vmem [shape: f32[1,768], index: 2, kind: input, shape index: {}]
  %s3 = inlined_call_operand.vmem [shape: bf16[16,768], index: 3, kind: output, shape index: {}]
  %s4 = sld [smem:[#allocation0]]
  $region101: #{table_model_forward.17} parent=0
    _
  %s6 = ssub.s32 1, %s4
  %s7 = scalar_select 0, %s6, %s4
  $region1: #{table_model_forward.17} parent=0
    #allocation3 [shape = 'u8[393216]{0}', space=vmem, size = 0x60000, scoped, tag = 'input window, operand 1']
    #allocation4 [shape = 'u8[24576]{0}', space=vmem, size = 0x6000, scoped, tag = 'output window, operand 0']
    loop: start=0, step=1, limit=4
    $region2: #{table_model_forward.17} parent=1 // loop_pre_header
      _
    $region3: #{table_model_forward.17} parent=1 // loop_header
      %s9 = sphi 0, %s13
      %p10 = scmp.ge.s32.totalorder %s9, 4
      %s16 = sphi 0, %s35
      %s17 = sphi 0, %s31
      %s18 = sphi 0, %s27
      %s19 = sphi 0, %s16
      %s20 = sphi 0, %s17
      %s21 = sphi 0, %s18
      %s22 = sphi 0, %s19
      %s23 = sphi 0, %s20
      %s24 = sphi 0, %s21
      %s40 = sphi 0, %s42
      %s43 = sphi 0, %s40
      %s44 = sphi 0, %s43
      %s60 = sphi 0, %s44
      %s68 = sphi 0, %s70
      %s71 = sphi 0, %s68
      %s72 = sphi 0, %s71
      %s88 = sphi 0, %s72
      %s94 = sphi 0, %s96
      %s97 = sphi 0, %s94
      %s98 = sphi 0, %s97
      %s114 = sphi 0, %s98
      %s122 = sphi 0, %s124
      %s125 = sphi 0, %s122
      %s126 = sphi 0, %s125
      %s142 = sphi 0, %s126
    $region4: #{table_model_forward.17} parent=1 // loop_header_branch
      %12 = sbr.rel (%p10) target = $region8
    $region5: #{table_model_forward.17} parent=1 // loop_body
      %s14 = ssub.s32 %s9, 1
      %s15 = ssub.s32 %s9, 2
      %s25 = sadd.s32 1, %s18
      %p26 = scmp.ge.s32.totalorder %s25, 1
      %s27 = scalar_select %p26, 0, %s25
      %s28 = sadd.s32 1, %s17
      %s29 = scalar_select %p26, %s28, %s17
      %p30 = scmp.ge.s32.totalorder %s29, 2
      %s31 = scalar_select %p30, 0, %s29
      %s32 = sadd.s32 1, %s16
      %s33 = scalar_select %p30, %s32, %s16
      %p34 = scmp.ge.s32.totalorder %s33, 1
      %s35 = scalar_select %p34, 0, %s33
      %s36 = ssub.s32 %s16, %s35
      %s37 = ssub.s32 %s18, %s27
      %s38 = sor.u32 %s36, %s37
      %p39 = scmp.eq.s32.totalorder %s38, 0
      %s41 = sadd.s32 %s40, 1
      %s42 = scalar_select %p39, %s40, %s41
      %p45 = pneg %p39
      %p46 = scmp.eq.s32.totalorder %s9, 1
      %p47 = por %p45, %p46
      %p48 = scmp.ne.s32.totalorder %s40, %s43
      %p49 = scmp.eq.s32.totalorder %s9, 0
      %p50 = por %p48, %p49
      %p51 = scmp.ne.s32.totalorder %s40, %s43
      %p52 = scmp.eq.s32.totalorder %s14, 1
      %p53 = por %p51, %p52
      %p54 = scmp.ne.s32.totalorder %s43, %s44
      %p55 = scmp.eq.s32.totalorder %s14, 0
      %p56 = por %p54, %p55
      %p57 = scmp.ne.s32.totalorder %s43, %s44
      %p58 = scmp.eq.s32.totalorder %s15, 1
      %p59 = por %p57, %p58
      %p61 = scmp.ne.s32.totalorder %s44, %s60
      %p62 = scmp.eq.s32.totalorder %s15, 0
      %p63 = por %p61, %p62
      %s64 = ssub.s32 %s18, %s27
      %s65 = ssub.s32 %s17, %s31
      %s66 = sor.u32 %s64, %s65
      %p67 = scmp.eq.s32.totalorder %s66, 0
      %s69 = sadd.s32 %s68, 1
      %s70 = scalar_select %p67, %s68, %s69
      %p73 = pneg %p67
      %p74 = scmp.eq.s32.totalorder %s9, 1
      %p75 = por %p73, %p74
      %p76 = scmp.ne.s32.totalorder %s68, %s71
      %p77 = scmp.eq.s32.totalorder %s9, 0
      %p78 = por %p76, %p77
      %p79 = scmp.ne.s32.totalorder %s68, %s71
      %p80 = scmp.eq.s32.totalorder %s14, 1
      %p81 = por %p79, %p80
      %p82 = scmp.ne.s32.totalorder %s71, %s72
      %p83 = scmp.eq.s32.totalorder %s14, 0
      %p84 = por %p82, %p83
      %p85 = scmp.ne.s32.totalorder %s71, %s72
      %p86 = scmp.eq.s32.totalorder %s15, 1
      %p87 = por %p85, %p86
      %p89 = scmp.ne.s32.totalorder %s72, %s88
      %p90 = scmp.eq.s32.totalorder %s15, 0
      %p91 = por %p89, %p90
      %s92 = ssub.s32 %s17, %s31
      %p93 = scmp.eq.s32.totalorder %s92, 0
      %s95 = sadd.s32 %s94, 1
      %s96 = scalar_select %p93, %s94, %s95
      %p99 = pneg %p93
      %p100 = scmp.eq.s32.totalorder %s9, 1
      %p101 = por %p99, %p100
      %p102 = scmp.ne.s32.totalorder %s94, %s97
      %p103 = scmp.eq.s32.totalorder %s9, 0
      %p104 = por %p102, %p103
      %p105 = scmp.ne.s32.totalorder %s94, %s97
      %p106 = scmp.eq.s32.totalorder %s14, 1
      %p107 = por %p105, %p106
      %p108 = scmp.ne.s32.totalorder %s97, %s98
      %p109 = scmp.eq.s32.totalorder %s14, 0
      %p110 = por %p108, %p109
      %p111 = scmp.ne.s32.totalorder %s97, %s98
      %p112 = scmp.eq.s32.totalorder %s15, 1
      %p113 = por %p111, %p112
      %p115 = scmp.ne.s32.totalorder %s98, %s114
      %p116 = scmp.eq.s32.totalorder %s15, 0
      %p117 = por %p115, %p116
      %s118 = ssub.s32 %s16, %s35
      %s119 = ssub.s32 %s17, %s31
      %s120 = sor.u32 %s118, %s119
      %p121 = scmp.eq.s32.totalorder %s120, 0
      %s123 = sadd.s32 %s122, 1
      %s124 = scalar_select %p121, %s122, %s123
      %p127 = pneg %p121
      %p128 = scmp.eq.s32.totalorder %s9, 1
      %p129 = por %p127, %p128
      %p130 = scmp.ne.s32.totalorder %s122, %s125
      %p131 = scmp.eq.s32.totalorder %s9, 0
      %p132 = por %p130, %p131
      %p133 = scmp.ne.s32.totalorder %s122, %s125
      %p134 = scmp.eq.s32.totalorder %s14, 1
      %p135 = por %p133, %p134
      %p136 = scmp.ne.s32.totalorder %s125, %s126
      %p137 = scmp.eq.s32.totalorder %s14, 0
      %p138 = por %p136, %p137
      %p139 = scmp.ne.s32.totalorder %s125, %s126
      %p140 = scmp.eq.s32.totalorder %s15, 1
      %p141 = por %p139, %p140
      %p143 = scmp.ne.s32.totalorder %s126, %s142
      %p144 = scmp.eq.s32.totalorder %s15, 0
      %p145 = por %p143, %p144
      %p146 = scmp.le.s32.totalorder 1, %s9
      %p147 = scmp.lt.s32.totalorder %s9, 3
      %p148 = pnand %p146, %p147
      %p149 = pneg %p148
      // Predicated region
      $region9: #{table_model_forward.17} parent=5 // pred_check
        _
      $region10: #{table_model_forward.17} parent=5 // pred_check_branch
        %151 = sbr.rel (%p148) target = $region12
      $region11: #{table_model_forward.17} parent=5 // pred_region
        %s152 = ssub.s32 %s9, 1
        // Predicated region
        $region13: #{table_model_forward.17} parent=11 // pred_check
          %p153 = pneg %p56
        $region14: #{table_model_forward.17} parent=11 // pred_check_branch
          %155 = sbr.rel (%p153) target = $region16
        $region15: #{table_model_forward.17} parent=11 // pred_region
          %s156 = smul.u32 2, %s19
          %s157 = smul.u32 2, %s21
          %p158 = scmp.lt.s32.totalorder %s156, 1
          %s159 = scalar_select %p158, %s156, 1
          %p160 = scmp.lt.s32.totalorder %s157, 1
          %s161 = scalar_select %p160, %s157, 1
          %s162 = smul.addr %s159, 2
          %s163 = sadd.s32 %s161, %s162
          %s164 = smul.addr %s163, 4
          %s165 = scalar_lea.vmem %s0, %s164
          %s166 = smul.u32 2, %s19
          %s167 = smul.u32 2, %s21
        $region16: #{table_model_forward.17} parent=11 // pred_fallthru
          _
      $region12: #{table_model_forward.17} parent=5 // pred_fallthru
        _
      %p168 = scmp.lt.s32.totalorder %s9, 2
      // Predicated region
      $region17: #{table_model_forward.17} parent=5 // pred_check
        %p169 = pneg %p168
      $region18: #{table_model_forward.17} parent=5 // pred_check_branch
        %171 = sbr.rel (%p169) target = $region20
      $region19: #{table_model_forward.17} parent=5 // pred_region
        // Predicated region
        $region21: #{table_model_forward.17} parent=19 // pred_check
          %p172 = pneg %p78
        $region22: #{table_model_forward.17} parent=19 // pred_check_branch
          %174 = sbr.rel (%p172) target = $region24
        $region23: #{table_model_forward.17} parent=19 // pred_region
          %s175 = sand.u32 %s68, 1
          %s176 = sand.u32 %s68, 1
          %s177 = smul.addr %s176, 384
          %s178 = scalar_lea.vmem [#allocation3], %s177
          %s179 = smul.u32 32, %s18
          %s180 = smul.u32 3, %s17
          %s181 = smul.addr %s179, 6
          %s182 = sadd.s32 %s180, %s181
          %s183 = smul.addr %s182, 4
          %s184 = scalar_lea.vmem %s1, %s183
          // Predicated region
          $region25: #{table_model_forward.17} parent=23 // pred_check
            _
          $region26: #{table_model_forward.17} parent=23 // pred_check_branch
            %186 = sbr.rel (0) target = $region28
          $region27: #{table_model_forward.17} parent=23 // pred_region
            // Predicated region
            $region29: #{table_model_forward.17} parent=27 // pred_check
              _
            $region30: #{table_model_forward.17} parent=27 // pred_check_branch
              %188 = sbr.rel (0) target = $region32
            $region31: #{table_model_forward.17} parent=27 // pred_region
              %s189 = scalar_lea.vmem %s184, 8
              %s190 = scalar_lea.vmem %s178, 8 [#allocation3]
              loop: start=0, step=1, limit=1
              $region33: #{table_model_forward.17} parent=31 // loop_pre_header
                _
              $region34: #{table_model_forward.17} parent=31 // loop_header
                %s192 = sphi 0, %s196
                %p193 = scmp.ge.s32.totalorder %s192, 1
                %s197 = sphi %s184, %s184
                %s198 = sphi %s178, %s178
              $region35: #{table_model_forward.17} parent=31 // loop_header_branch
                %195 = sbr.rel (%p193) target = $region39
              $region36: #{table_model_forward.17} parent=31 // loop_body
                %v199 = vld [vmem:[%s197] sm:$0xff]
                %200 = vst [vmem:[%s198] sm:$0xff] %v199
                %v201 = vld [vmem:[%s197 + $0x18] sm:$0xff]
                %202 = vst [vmem:[%s198 + $0xc] sm:$0xff] %v201
                %v203 = vld [vmem:[%s197 + $0x30] sm:$0xff]
                %204 = vst [vmem:[%s198 + $0x18] sm:$0xff] %v203
                %v205 = vld [vmem:[%s197 + $0x48] sm:$0xff]
                %206 = vst [vmem:[%s198 + $0x24] sm:$0xff] %v205
                %v207 = vld [vmem:[%s197 + $0x60] sm:$0xff]
                %208 = vst [vmem:[%s198 + $0x30] sm:$0xff] %v207
                %v209 = vld [vmem:[%s197 + $0x78] sm:$0xff]
                %210 = vst [vmem:[%s198 + $0x3c] sm:$0xff] %v209
                %v211 = vld [vmem:[%s197 + $0x90] sm:$0xff]
                %212 = vst [vmem:[%s198 + $0x48] sm:$0xff] %v211
                %v213 = vld [vmem:[%s197 + $0xa8] sm:$0xff]
                %214 = vst [vmem:[%s198 + $0x54] sm:$0xff] %v213
                %v215 = vld [vmem:[%s197 + $0xc0] sm:$0xff]
                %216 = vst [vmem:[%s198 + $0x60] sm:$0xff] %v215
                %v217 = vld [vmem:[%s197 + $0xd8] sm:$0xff]
                %218 = vst [vmem:[%s198 + $0x6c] sm:$0xff] %v217
                %v219 = vld [vmem:[%s197 + $0xf0] sm:$0xff]
                %220 = vst [vmem:[%s198 + $0x78] sm:$0xff] %v219
                %v221 = vld [vmem:[%s197 + $0x108] sm:$0xff]
                %222 = vst [vmem:[%s198 + $0x84] sm:$0xff] %v221
                %v223 = vld [vmem:[%s197 + $0x120] sm:$0xff]
                %224 = vst [vmem:[%s198 + $0x90] sm:$0xff] %v223
                %v225 = vld [vmem:[%s197 + $0x138] sm:$0xff]
                %226 = vst [vmem:[%s198 + $0x9c] sm:$0xff] %v225
                %v227 = vld [vmem:[%s197 + $0x150] sm:$0xff]
                %228 = vst [vmem:[%s198 + $0xa8] sm:$0xff] %v227
                %v229 = vld [vmem:[%s197 + $0x168] sm:$0xff]
                %230 = vst [vmem:[%s198 + $0xb4] sm:$0xff] %v229
                %v231 = vld [vmem:[%s197 + $0x180] sm:$0xff]
                %232 = vst [vmem:[%s198 + $0xc0] sm:$0xff] %v231
                %v233 = vld [vmem:[%s197 + $0x198] sm:$0xff]
                %234 = vst [vmem:[%s198 + $0xcc] sm:$0xff] %v233
                %v235 = vld [vmem:[%s197 + $0x1b0] sm:$0xff]
                %236 = vst [vmem:[%s198 + $0xd8] sm:$0xff] %v235
                %v237 = vld [vmem:[%s197 + $0x1c8] sm:$0xff]
                %238 = vst [vmem:[%s198 + $0xe4] sm:$0xff] %v237
                %v239 = vld [vmem:[%s197 + $0x1e0] sm:$0xff]
                %240 = vst [vmem:[%s198 + $0xf0] sm:$0xff] %v239
                %v241 = vld [vmem:[%s197 + $0x1f8] sm:$0xff]
                %242 = vst [vmem:[%s198 + $0xfc] sm:$0xff] %v241
                %v243 = vld [vmem:[%s197 + $0x210] sm:$0xff]
                %244 = vst [vmem:[%s198 + $0x108] sm:$0xff] %v243
                %v245 = vld [vmem:[%s197 + $0x228] sm:$0xff]
                %246 = vst [vmem:[%s198 + $0x114] sm:$0xff] %v245
                %v247 = vld [vmem:[%s197 + $0x240] sm:$0xff]
                %248 = vst [vmem:[%s198 + $0x120] sm:$0xff] %v247
                %v249 = vld [vmem:[%s197 + $0x258] sm:$0xff]
                %250 = vst [vmem:[%s198 + $0x12c] sm:$0xff] %v249
                %v251 = vld [vmem:[%s197 + $0x270] sm:$0xff]
                %252 = vst [vmem:[%s198 + $0x138] sm:$0xff] %v251
                %v253 = vld [vmem:[%s197 + $0x288] sm:$0xff]
                %254 = vst [vmem:[%s198 + $0x144] sm:$0xff] %v253
                %v255 = vld [vmem:[%s197 + $0x2a0] sm:$0xff]
                %256 = vst [vmem:[%s198 + $0x150] sm:$0xff] %v255
                %v257 = vld [vmem:[%s197 + $0x2b8] sm:$0xff]
                %258 = vst [vmem:[%s198 + $0x15c] sm:$0xff] %v257
                %v259 = vld [vmem:[%s197 + $0x2d0] sm:$0xff]
                %260 = vst [vmem:[%s198 + $0x168] sm:$0xff] %v259
                %v261 = vld [vmem:[%s197 + $0x2e8] sm:$0xff]
                %262 = vst [vmem:[%s198 + $0x174] sm:$0xff] %v261
              $region37: #{table_model_forward.17} parent=31 // loop_footer
                %s196 = sadd.s32 1, %s192
              $region38: #{table_model_forward.17} parent=31 // loop_footer_branch
                %191 = sbr.rel target = $region34
              $region39: #{table_model_forward.17} parent=31 // loop_exit
                _
              loop: start=0, step=1, limit=1
              $region40: #{table_model_forward.17} parent=31 // loop_pre_header
                _
              $region41: #{table_model_forward.17} parent=31 // loop_header
                %s265 = sphi 0, %s269
                %p266 = scmp.ge.s32.totalorder %s265, 1
                %s270 = sphi %s189, %s189
                %s271 = sphi %s190, %s190
              $region42: #{table_model_forward.17} parent=31 // loop_header_branch
                %268 = sbr.rel (%p266) target = $region46
              $region43: #{table_model_forward.17} parent=31 // loop_body
                %v272 = vld [vmem:[%s270] sm:$0xf]
                %273 = vst [vmem:[%s271] sm:$0xf] %v272
                %v274 = vld [vmem:[%s270 + $0x18] sm:$0xf]
                %275 = vst [vmem:[%s271 + $0xc] sm:$0xf] %v274
                %v276 = vld [vmem:[%s270 + $0x30] sm:$0xf]
                %277 = vst [vmem:[%s271 + $0x18] sm:$0xf] %v276
                %v278 = vld [vmem:[%s270 + $0x48] sm:$0xf]
                %279 = vst [vmem:[%s271 + $0x24] sm:$0xf] %v278
                %v280 = vld [vmem:[%s270 + $0x60] sm:$0xf]
                %281 = vst [vmem:[%s271 + $0x30] sm:$0xf] %v280
                %v282 = vld [vmem:[%s270 + $0x78] sm:$0xf]
                %283 = vst [vmem:[%s271 + $0x3c] sm:$0xf] %v282
                %v284 = vld [vmem:[%s270 + $0x90] sm:$0xf]
                %285 = vst [vmem:[%s271 + $0x48] sm:$0xf] %v284
                %v286 = vld [vmem:[%s270 + $0xa8] sm:$0xf]
                %287 = vst [vmem:[%s271 + $0x54] sm:$0xf] %v286
                %v288 = vld [vmem:[%s270 + $0xc0] sm:$0xf]
                %289 = vst [vmem:[%s271 + $0x60] sm:$0xf] %v288
                %v290 = vld [vmem:[%s270 + $0xd8] sm:$0xf]
                %291 = vst [vmem:[%s271 + $0x6c] sm:$0xf] %v290
                %v292 = vld [vmem:[%s270 + $0xf0] sm:$0xf]
                %293 = vst [vmem:[%s271 + $0x78] sm:$0xf] %v292
                %v294 = vld [vmem:[%s270 + $0x108] sm:$0xf]
                %295 = vst [vmem:[%s271 + $0x84] sm:$0xf] %v294
                %v296 = vld [vmem:[%s270 + $0x120] sm:$0xf]
                %297 = vst [vmem:[%s271 + $0x90] sm:$0xf] %v296
                %v298 = vld [vmem:[%s270 + $0x138] sm:$0xf]
                %299 = vst [vmem:[%s271 + $0x9c] sm:$0xf] %v298
                %v300 = vld [vmem:[%s270 + $0x150] sm:$0xf]
                %301 = vst [vmem:[%s271 + $0xa8] sm:$0xf] %v300
                %v302 = vld [vmem:[%s270 + $0x168] sm:$0xf]
                %303 = vst [vmem:[%s271 + $0xb4] sm:$0xf] %v302
                %v304 = vld [vmem:[%s270 + $0x180] sm:$0xf]
                %305 = vst [vmem:[%s271 + $0xc0] sm:$0xf] %v304
                %v306 = vld [vmem:[%s270 + $0x198] sm:$0xf]
                %307 = vst [vmem:[%s271 + $0xcc] sm:$0xf] %v306
                %v308 = vld [vmem:[%s270 + $0x1b0] sm:$0xf]
                %309 = vst [vmem:[%s271 + $0xd8] sm:$0xf] %v308
                %v310 = vld [vmem:[%s270 + $0x1c8] sm:$0xf]
                %311 = vst [vmem:[%s271 + $0xe4] sm:$0xf] %v310
                %v312 = vld [vmem:[%s270 + $0x1e0] sm:$0xf]
                %313 = vst [vmem:[%s271 + $0xf0] sm:$0xf] %v312
                %v314 = vld [vmem:[%s270 + $0x1f8] sm:$0xf]
                %315 = vst [vmem:[%s271 + $0xfc] sm:$0xf] %v314
                %v316 = vld [vmem:[%s270 + $0x210] sm:$0xf]
                %317 = vst [vmem:[%s271 + $0x108] sm:$0xf] %v316
                %v318 = vld [vmem:[%s270 + $0x228] sm:$0xf]
                %319 = vst [vmem:[%s271 + $0x114] sm:$0xf] %v318
                %v320 = vld [vmem:[%s270 + $0x240] sm:$0xf]
                %321 = vst [vmem:[%s271 + $0x120] sm:$0xf] %v320
                %v322 = vld [vmem:[%s270 + $0x258] sm:$0xf]
                %323 = vst [vmem:[%s271 + $0x12c] sm:$0xf] %v322
                %v324 = vld [vmem:[%s270 + $0x270] sm:$0xf]
                %325 = vst [vmem:[%s271 + $0x138] sm:$0xf] %v324
                %v326 = vld [vmem:[%s270 + $0x288] sm:$0xf]
                %327 = vst [vmem:[%s271 + $0x144] sm:$0xf] %v326
                %v328 = vld [vmem:[%s270 + $0x2a0] sm:$0xf]
                %329 = vst [vmem:[%s271 + $0x150] sm:$0xf] %v328
                %v330 = vld [vmem:[%s270 + $0x2b8] sm:$0xf]
                %331 = vst [vmem:[%s271 + $0x15c] sm:$0xf] %v330
                %v332 = vld [vmem:[%s270 + $0x2d0] sm:$0xf]
                %333 = vst [vmem:[%s271 + $0x168] sm:$0xf] %v332
                %v334 = vld [vmem:[%s270 + $0x2e8] sm:$0xf]
                %335 = vst [vmem:[%s271 + $0x174] sm:$0xf] %v334
              $region44: #{table_model_forward.17} parent=31 // loop_footer
                %s269 = sadd.s32 1, %s265
              $region45: #{table_model_forward.17} parent=31 // loop_footer_branch
                %264 = sbr.rel target = $region41
              $region46: #{table_model_forward.17} parent=31 // loop_exit
                _
            $region32: #{table_model_forward.17} parent=27 // pred_fallthru
              _
          $region28: #{table_model_forward.17} parent=23 // pred_fallthru
            _
          %336 = vnop
        $region24: #{table_model_forward.17} parent=19 // pred_fallthru
          _
        // Predicated region
        $region47: #{table_model_forward.17} parent=19 // pred_check
          %p337 = pneg %p104
        $region48: #{table_model_forward.17} parent=19 // pred_check_branch
          %339 = sbr.rel (%p337) target = $region50
        $region49: #{table_model_forward.17} parent=19 // pred_region
          %s340 = smul.u32 3, %s17
          %p341 = scmp.lt.s32.totalorder %s340, 5
          %s342 = scalar_select %p341, %s340, 5
          %s343 = scalar_lea.vmem %s2, %s342
          %s344 = smul.u32 3, %s17
        $region50: #{table_model_forward.17} parent=19 // pred_fallthru
          _
      $region20: #{table_model_forward.17} parent=5 // pred_fallthru
        _
      %p345 = scmp.le.s32.totalorder 1, %s9
      %p346 = scmp.lt.s32.totalorder %s9, 3
      %p347 = pnand %p345, %p346
      %p348 = pneg %p347
      // Predicated region
      $region51: #{table_model_forward.17} parent=5 // pred_check
        _
      $region52: #{table_model_forward.17} parent=5 // pred_check_branch
        %350 = sbr.rel (%p347) target = $region54
      $region53: #{table_model_forward.17} parent=5 // pred_region
        %s351 = ssub.s32 %s9, 1
        %s352 = sand.u32 %s71, 1
        %s353 = sand.u32 %s71, 1
        %s354 = smul.addr %s353, 384
        %s355 = scalar_lea.vmem [#allocation3], %s354
        // Predicated region
        $region55: #{table_model_forward.17} parent=53 // pred_check
          %p356 = pneg %p84
        $region56: #{table_model_forward.17} parent=53 // pred_check_branch
          %358 = sbr.rel (%p356) target = $region58
        $region57: #{table_model_forward.17} parent=53 // pred_region
          _
        $region58: #{table_model_forward.17} parent=53 // pred_fallthru
          _
        %s359 = smul.u32 2, %s19
        %s360 = smul.u32 2, %s21
        %p361 = scmp.lt.s32.totalorder %s359, 1
        %s362 = scalar_select %p361, %s359, 1
        %p363 = scmp.lt.s32.totalorder %s360, 1
        %s364 = scalar_select %p363, %s360, 1
        %s365 = smul.addr %s362, 2
        %s366 = sadd.s32 %s364, %s365
        %s367 = smul.addr %s366, 4
        %s368 = scalar_lea.vmem %s0, %s367
        %p369 = pneg %p56
        %p370 = pneg %p53
        %s371 = sand.u32 %s71, 1
        %s372 = sand.u32 %s71, 1
        %s373 = smul.addr %s372, 384
        %s374 = scalar_lea.vmem [#allocation3], %s373
        %p375 = pneg %p84
        %p376 = pneg %p81
        %s377 = smul.u32 3, %s20
        %p378 = scmp.lt.s32.totalorder %s377, 5
        %s379 = scalar_select %p378, %s377, 5
        %s380 = scalar_lea.vmem %s2, %s379
        %p381 = pneg %p110
        %p382 = pneg %p107
        %p383 = pneg %p138
        %p384 = pneg %p135
        %s385 = sand.u32 %s125, 1
        %s386 = sand.u32 %s125, 1
        %s387 = smul.addr %s386, 24
        %s388 = scalar_lea.vmem [#allocation4], %s387
        %s389 = smul.u32 2, %s19
        %s390 = smul.u32 2, %s21
        %p391 = scmp.lt.s32.totalorder %s389, 1
        %s392 = scalar_select %p391, %s389, 1
        %p393 = scmp.lt.s32.totalorder %s390, 1
        %s394 = scalar_select %p393, %s390, 1
        %s395 = smul.addr %s392, 2
        %s396 = sadd.s32 %s394, %s395
        %s397 = smul.addr %s396, 4
        %s398 = scalar_lea.vmem %s0, %s397
        %s399 = smul.u32 2, %s19
        %s400 = smul.u32 2, %s21
        %s401 = smul.u32 32, %s21
        %s402 = smul.u32 3, %s20
        %s403 = smul.u32 3, %s20
        %p404 = scmp.lt.s32.totalorder %s403, 5
        %s405 = scalar_select %p404, %s403, 5
        %s406 = scalar_lea.vmem %s2, %s405
        %s407 = smul.u32 3, %s20
        %s408 = smul.u32 2, %s19
        %s409 = smul.u32 3, %s20
        %p411 = scmp.eq.s32.totalorder %s21, 0
        // Predicated region
        $region59: #{table_model_forward.17} parent=53 // pred_check
          %p412 = pneg %p411
        $region60: #{table_model_forward.17} parent=53 // pred_check_branch
          %414 = sbr.rel (%p412) target = $region62
        $region61: #{table_model_forward.17} parent=53 // pred_region
          %415 = vst [vmem:[#allocation2] sm:$0xff] 0.0
          %416 = vst [vmem:[#allocation2 + $0x8] sm:$0xff] 0.0
          %417 = vst [vmem:[#allocation2 + $0x10] sm:$0xff] 0.0
          %418 = vst [vmem:[#allocation2 + $0x18] sm:$0xff] 0.0
          %419 = vst [vmem:[#allocation2 + $0x20] sm:$0xff] 0.0
          %420 = vst [vmem:[#allocation2 + $0x28] sm:$0xff] 0.0
        $region62: #{table_model_forward.17} parent=53 // pred_fallthru
          _
        %v421 = vld [vmem:[#allocation2] sm:$0xff]
        %v422 = vld [vmem:[#allocation2 + $0x8] sm:$0xff]
        %v423 = vld [vmem:[#allocation2 + $0x10] sm:$0xff]
        %v424 = vld [vmem:[#allocation2 + $0x18] sm:$0xff]
        %v425 = vld [vmem:[#allocation2 + $0x20] sm:$0xff]
        %v426 = vld [vmem:[#allocation2 + $0x28] sm:$0xff]
        %v427 = vld [vmem:[%s398] sm:$0xff]
        %v428 = vld [vmem:[%s398 + $0x8] sm:$0xff]
        %v429 = vld [vmem:[%s355] sm:$0xff]
        %v430 = vld [vmem:[%s355 + $0x8] sm:$0xf]
        %v431 = vld [vmem:[%s355 + $0xc] sm:$0xff]
        %v432 = vld [vmem:[%s355 + $0x14] sm:$0xf]
        %v433 = vld [vmem:[%s355 + $0x18] sm:$0xff]
        %v434 = vld [vmem:[%s355 + $0x20] sm:$0xf]
        %v435 = vld [vmem:[%s355 + $0x24] sm:$0xff]
        %v436 = vld [vmem:[%s355 + $0x2c] sm:$0xf]
        %v437 = vld [vmem:[%s355 + $0x30] sm:$0xff]
        %v438 = vld [vmem:[%s355 + $0x38] sm:$0xf]
        %v439 = vld [vmem:[%s355 + $0x3c] sm:$0xff]
        %v440 = vld [vmem:[%s355 + $0x44] sm:$0xf]
        %v441 = vld [vmem:[%s355 + $0x48] sm:$0xff]
        %v442 = vld [vmem:[%s355 + $0x50] sm:$0xf]
        %v443 = vld [vmem:[%s355 + $0x54] sm:$0xff]
        %v444 = vld [vmem:[%s355 + $0x5c] sm:$0xf]
        %v445 = vld [vmem:[%s355 + $0x60] sm:$0xff]
        %v446 = vld [vmem:[%s355 + $0x68] sm:$0xf]
        %v447 = vld [vmem:[%s355 + $0x6c] sm:$0xff]
        %v448 = vld [vmem:[%s355 + $0x74] sm:$0xf]
        %v449 = vld [vmem:[%s355 + $0x78] sm:$0xff]
        %v450 = vld [vmem:[%s355 + $0x80] sm:$0xf]
        %v451 = vld [vmem:[%s355 + $0x84] sm:$0xff]
        %v452 = vld [vmem:[%s355 + $0x8c] sm:$0xf]
        %v453 = vld [vmem:[%s355 + $0x90] sm:$0xff]
        %v454 = vld [vmem:[%s355 + $0x98] sm:$0xf]
        %v455 = vld [vmem:[%s355 + $0x9c] sm:$0xff]
        %v456 = vld [vmem:[%s355 + $0xa4] sm:$0xf]
        %v457 = vld [vmem:[%s355 + $0xa8] sm:$0xff]
        %v458 = vld [vmem:[%s355 + $0xb0] sm:$0xf]
        %v459 = vld [vmem:[%s355 + $0xb4] sm:$0xff]
        %v460 = vld [vmem:[%s355 + $0xbc] sm:$0xf]
        %v461 = vld [vmem:[%s355 + $0xc0] sm:$0xff]
        %v462 = vld [vmem:[%s355 + $0xc8] sm:$0xf]
        %v463 = vld [vmem:[%s355 + $0xcc] sm:$0xff]
        %v464 = vld [vmem:[%s355 + $0xd4] sm:$0xf]
        %v465 = vld [vmem:[%s355 + $0xd8] sm:$0xff]
        %v466 = vld [vmem:[%s355 + $0xe0] sm:$0xf]
        %v467 = vld [vmem:[%s355 + $0xe4] sm:$0xff]
        %v468 = vld [vmem:[%s355 + $0xec] sm:$0xf]
        %v469 = vld [vmem:[%s355 + $0xf0] sm:$0xff]
        %v470 = vld [vmem:[%s355 + $0xf8] sm:$0xf]
        %v471 = vld [vmem:[%s355 + $0xfc] sm:$0xff]
        %v472 = vld [vmem:[%s355 + $0x104] sm:$0xf]
        %v473 = vld [vmem:[%s355 + $0x108] sm:$0xff]
        %v474 = vld [vmem:[%s355 + $0x110] sm:$0xf]
        %v475 = vld [vmem:[%s355 + $0x114] sm:$0xff]
        %v476 = vld [vmem:[%s355 + $0x11c] sm:$0xf]
        %v477 = vld [vmem:[%s355 + $0x120] sm:$0xff]
        %v478 = vld [vmem:[%s355 + $0x128] sm:$0xf]
        %v479 = vld [vmem:[%s355 + $0x12c] sm:$0xff]
        %v480 = vld [vmem:[%s355 + $0x134] sm:$0xf]
        %v481 = vld [vmem:[%s355 + $0x138] sm:$0xff]
        %v482 = vld [vmem:[%s355 + $0x140] sm:$0xf]
        %v483 = vld [vmem:[%s355 + $0x144] sm:$0xff]
        %v484 = vld [vmem:[%s355 + $0x14c] sm:$0xf]
        %v485 = vld [vmem:[%s355 + $0x150] sm:$0xff]
        %v486 = vld [vmem:[%s355 + $0x158] sm:$0xf]
        %v487 = vld [vmem:[%s355 + $0x15c] sm:$0xff]
        %v488 = vld [vmem:[%s355 + $0x164] sm:$0xf]
        %v489 = vld [vmem:[%s355 + $0x168] sm:$0xff]
        %v490 = vld [vmem:[%s355 + $0x170] sm:$0xf]
        %v491 = vld [vmem:[%s355 + $0x174] sm:$0xff]
        %v492 = vld [vmem:[%s355 + $0x17c] sm:$0xf]
        %v495 = vunpack.c.l.b16 %v427
        %v496 = vunpack.c.h.b16 %v427
        %v497 = vunpack.c.l.b16 %v428
        %v498 = vunpack.c.h.b16 %v428
        %v499 = vpack.c.b16 %v497, %v495
        %v500 = vpack.c.b16 %v498, %v496
        %v567 = vunpack.c.l.b16 %v429
        %v568 = vunpack.c.h.b16 %v429
        %v569 = vunpack.c.l.b16 %v430
        %v570 = vunpack.c.l.b16 %v431
        %v571 = vunpack.c.h.b16 %v431
        %v572 = vunpack.c.l.b16 %v432
        %v573 = vunpack.c.l.b16 %v433
        %v574 = vunpack.c.h.b16 %v433
        %v575 = vunpack.c.l.b16 %v434
        %v576 = vunpack.c.l.b16 %v435
        %v577 = vunpack.c.h.b16 %v435
        %v578 = vunpack.c.l.b16 %v436
        %v579 = vunpack.c.l.b16 %v437
        %v580 = vunpack.c.h.b16 %v437
        %v581 = vunpack.c.l.b16 %v438
        %v582 = vunpack.c.l.b16 %v439
        %v583 = vunpack.c.h.b16 %v439
        %v584 = vunpack.c.l.b16 %v440
        %v585 = vunpack.c.l.b16 %v441
        %v586 = vunpack.c.h.b16 %v441
        %v587 = vunpack.c.l.b16 %v442
        %v588 = vunpack.c.l.b16 %v443
        %v589 = vunpack.c.h.b16 %v443
        %v590 = vunpack.c.l.b16 %v444
        %v591 = vunpack.c.l.b16 %v445
        %v592 = vunpack.c.h.b16 %v445
        %v593 = vunpack.c.l.b16 %v446
        %v594 = vunpack.c.l.b16 %v447
        %v595 = vunpack.c.h.b16 %v447
        %v596 = vunpack.c.l.b16 %v448
        %v597 = vunpack.c.l.b16 %v449
        %v598 = vunpack.c.h.b16 %v449
        %v599 = vunpack.c.l.b16 %v450
        %v600 = vunpack.c.l.b16 %v451
        %v601 = vunpack.c.h.b16 %v451
        %v602 = vunpack.c.l.b16 %v452
        %v603 = vunpack.c.l.b16 %v453
        %v604 = vunpack.c.h.b16 %v453
        %v605 = vunpack.c.l.b16 %v454
        %v606 = vunpack.c.l.b16 %v455
        %v607 = vunpack.c.h.b16 %v455
        %v608 = vunpack.c.l.b16 %v456
        %v609 = vunpack.c.l.b16 %v457
        %v610 = vunpack.c.h.b16 %v457
        %v611 = vunpack.c.l.b16 %v458
        %v612 = vunpack.c.l.b16 %v459
        %v613 = vunpack.c.h.b16 %v459
        %v614 = vunpack.c.l.b16 %v460
        %v615 = vunpack.c.l.b16 %v461
        %v616 = vunpack.c.h.b16 %v461
        %v617 = vunpack.c.l.b16 %v462
        %v618 = vunpack.c.l.b16 %v463
        %v619 = vunpack.c.h.b16 %v463
        %v620 = vunpack.c.l.b16 %v464
        %v621 = vunpack.c.l.b16 %v465
        %v622 = vunpack.c.h.b16 %v465
        %v623 = vunpack.c.l.b16 %v466
        %v624 = vunpack.c.l.b16 %v467
        %v625 = vunpack.c.h.b16 %v467
        %v626 = vunpack.c.l.b16 %v468
        %v627 = vunpack.c.l.b16 %v469
        %v628 = vunpack.c.h.b16 %v469
        %v629 = vunpack.c.l.b16 %v470
        %v630 = vunpack.c.l.b16 %v471
        %v631 = vunpack.c.h.b16 %v471
        %v632 = vunpack.c.l.b16 %v472
        %v633 = vunpack.c.l.b16 %v473
        %v634 = vunpack.c.h.b16 %v473
        %v635 = vunpack.c.l.b16 %v474
        %v636 = vunpack.c.l.b16 %v475
        %v637 = vunpack.c.h.b16 %v475
        %v638 = vunpack.c.l.b16 %v476
        %v639 = vunpack.c.l.b16 %v477
        %v640 = vunpack.c.h.b16 %v477
        %v641 = vunpack.c.l.b16 %v478
        %v642 = vunpack.c.l.b16 %v479
        %v643 = vunpack.c.h.b16 %v479
        %v644 = vunpack.c.l.b16 %v480
        %v645 = vunpack.c.l.b16 %v481
        %v646 = vunpack.c.h.b16 %v481
        %v647 = vunpack.c.l.b16 %v482
        %v648 = vunpack.c.l.b16 %v483
        %v649 = vunpack.c.h.b16 %v483
        %v650 = vunpack.c.l.b16 %v484
        %v651 = vunpack.c.l.b16 %v485
        %v652 = vunpack.c.h.b16 %v485
        %v653 = vunpack.c.l.b16 %v486
        %v654 = vunpack.c.l.b16 %v487
        %v655 = vunpack.c.h.b16 %v487
        %v656 = vunpack.c.l.b16 %v488
        %v657 = vunpack.c.l.b16 %v489
        %v658 = vunpack.c.h.b16 %v489
        %v659 = vunpack.c.l.b16 %v490
        %v660 = vunpack.c.l.b16 %v491
        %v661 = vunpack.c.h.b16 %v491
        %v662 = vunpack.c.l.b16 %v492
        %v663 = vpack.c.b16 %v570, %v567
        %v664 = vpack.c.b16 %v571, %v568
        %v665 = vpack.c.b16 %v572, %v569
        %v666 = vpack.c.b16 %v576, %v573
        %v667 = vpack.c.b16 %v577, %v574
        %v668 = vpack.c.b16 %v578, %v575
        %v669 = vpack.c.b16 %v582, %v579
        %v670 = vpack.c.b16 %v583, %v580
        %v671 = vpack.c.b16 %v584, %v581
        %v672 = vpack.c.b16 %v588, %v585
        %v673 = vpack.c.b16 %v589, %v586
        %v674 = vpack.c.b16 %v590, %v587
        %v675 = vpack.c.b16 %v594, %v591
        %v676 = vpack.c.b16 %v595, %v592
        %v677 = vpack.c.b16 %v596, %v593
        %v678 = vpack.c.b16 %v600, %v597
        %v679 = vpack.c.b16 %v601, %v598
        %v680 = vpack.c.b16 %v602, %v599
        %v681 = vpack.c.b16 %v606, %v603
        %v682 = vpack.c.b16 %v607, %v604
        %v683 = vpack.c.b16 %v608, %v605
        %v684 = vpack.c.b16 %v612, %v609
        %v685 = vpack.c.b16 %v613, %v610
        %v686 = vpack.c.b16 %v614, %v611
        %v687 = vpack.c.b16 %v618, %v615
        %v688 = vpack.c.b16 %v619, %v616
        %v689 = vpack.c.b16 %v620, %v617
        %v690 = vpack.c.b16 %v624, %v621
        %v691 = vpack.c.b16 %v625, %v622
        %v692 = vpack.c.b16 %v626, %v623
        %v693 = vpack.c.b16 %v630, %v627
        %v694 = vpack.c.b16 %v631, %v628
        %v695 = vpack.c.b16 %v632, %v629
        %v696 = vpack.c.b16 %v636, %v633
        %v697 = vpack.c.b16 %v637, %v634
        %v698 = vpack.c.b16 %v638, %v635
        %v699 = vpack.c.b16 %v642, %v639
        %v700 = vpack.c.b16 %v643, %v640
        %v701 = vpack.c.b16 %v644, %v641
        %v702 = vpack.c.b16 %v648, %v645
        %v703 = vpack.c.b16 %v649, %v646
        %v704 = vpack.c.b16 %v650, %v647
        %v705 = vpack.c.b16 %v654, %v651
        %v706 = vpack.c.b16 %v655, %v652
        %v707 = vpack.c.b16 %v656, %v653
        %v708 = vpack.c.b16 %v660, %v657
        %v709 = vpack.c.b16 %v661, %v658
        %v710 = vpack.c.b16 %v662, %v659
        %759 = vmatprep.subr.bf16.mxu0 %v664
        %760 = vmatpush1.bf16.msra.mxu0 %v663
        %761 = vmatprep.subr.bf16.mxu0 %v667
        %762 = vmatpush1.bf16.msra.mxu0 %v666
        %763 = vmatprep.subr.bf16.mxu0 %v670
        %764 = vmatpush1.bf16.msra.mxu0 %v669
        %765 = vmatprep.subr.bf16.mxu0 %v673
        %766 = vmatpush1.bf16.msra.mxu0 %v672
        %767 = vmatprep.subr.bf16.mxu0 %v676
        %768 = vmatpush1.bf16.msra.mxu0 %v675
        %769 = vmatprep.subr.bf16.mxu0 %v679
        %770 = vmatpush1.bf16.msra.mxu0 %v678
        %771 = vmatprep.subr.bf16.mxu0 %v682
        %772 = vmatpush1.bf16.msra.mxu0 %v681
        %773 = vmatprep.subr.bf16.mxu0 %v685
        %774 = vmatpush1.bf16.msra.mxu0 %v684
        %775 = vmatprep.subr.bf16.mxu0 %v688
        %776 = vmatpush1.bf16.msra.mxu0 %v687
        %777 = vmatprep.subr.bf16.mxu0 %v691
        %778 = vmatpush1.bf16.msra.mxu0 %v690
        %779 = vmatprep.subr.bf16.mxu0 %v694
        %780 = vmatpush1.bf16.msra.mxu0 %v693
        %781 = vmatprep.subr.bf16.mxu0 %v697
        %782 = vmatpush1.bf16.msra.mxu0 %v696
        %783 = vmatprep.subr.bf16.mxu0 %v700
        %784 = vmatpush1.bf16.msra.mxu0 %v699
        %785 = vmatprep.subr.bf16.mxu0 %v703
        %786 = vmatpush1.bf16.msra.mxu0 %v702
        %787 = vmatprep.subr.bf16.mxu0 %v706
        %788 = vmatpush1.bf16.msra.mxu0 %v705
        %789 = vmatprep.subr.bf16.mxu0 %v709
        %790 = vmatpush1.bf16.msra.mxu0 %v708
        %791 = vmatprep.mubr.bf16.mxu0 %v500
        %792 = vmatmul.mubr.bf16.gmra.mrb[0].mxu0 %v499
        %v793 = vpop.f32.mrb[0].mxu0
        %v794 = vadd.f32 0.0, %v793
        %v795 = vpop.f32.mrb[0].mxu0
        %v796 = vadd.f32 0.0, %v795
        %v797 = vpop.f32.mrb[0].mxu0
        %v798 = vadd.f32 0.0, %v797
        %v799 = vpop.f32.mrb[0].mxu0
        %v800 = vadd.f32 0.0, %v799
        %801 = vdwg.mxu0
        %802 = vmatprep.subr.bf16.mxu0 0
        %803 = vmatpush1.bf16.msra.mxu0 %v665
        %804 = vmatprep.subr.bf16.mxu0 0
        %805 = vmatpush1.bf16.msra.mxu0 %v668
        %806 = vmatprep.subr.bf16.mxu0 0
        %807 = vmatpush1.bf16.msra.mxu0 %v671
        %808 = vmatprep.subr.bf16.mxu0 0
        %809 = vmatpush1.bf16.msra.mxu0 %v674
        %810 = vmatprep.subr.bf16.mxu0 0
        %811 = vmatpush1.bf16.msra.mxu0 %v677
        %812 = vmatprep.subr.bf16.mxu0 0
        %813 = vmatpush1.bf16.msra.mxu0 %v680
        %814 = vmatprep.subr.bf16.mxu0 0
        %815 = vmatpush1.bf16.msra.mxu0 %v683
        %816 = vmatprep.subr.bf16.mxu0 0
        %817 = vmatpush1.bf16.msra.mxu0 %v686
        %818 = vmatprep.subr.bf16.mxu0 0
        %819 = vmatpush1.bf16.msra.mxu0 %v689
        %820 = vmatprep.subr.bf16.mxu0 0
        %821 = vmatpush1.bf16.msra.mxu0 %v692
        %822 = vmatprep.subr.bf16.mxu0 0
        %823 = vmatpush1.bf16.msra.mxu0 %v695
        %824 = vmatprep.subr.bf16.mxu0 0
        %825 = vmatpush1.bf16.msra.mxu0 %v698
        %826 = vmatprep.subr.bf16.mxu0 0
        %827 = vmatpush1.bf16.msra.mxu0 %v701
        %828 = vmatprep.subr.bf16.mxu0 0
        %829 = vmatpush1.bf16.msra.mxu0 %v704
        %830 = vmatprep.subr.bf16.mxu0 0
        %831 = vmatpush1.bf16.msra.mxu0 %v707
        %832 = vmatprep.subr.bf16.mxu0 0
        %833 = vmatpush1.bf16.msra.mxu0 %v710
        %834 = vmatprep.mubr.bf16.mxu0 %v500
        %835 = vmatmul.mubr.bf16.gmra.mrb[0].mxu0 %v499
        %v836 = vpop.f32.mrb[0].mxu0
        %v837 = vadd.f32 0.0, %v836
        %v838 = vpop.f32.mrb[0].mxu0
        %v839 = vpop.f32.mrb[0].mxu0
        %v840 = vadd.f32 0.0, %v839
        %v841 = vpop.f32.mrb[0].mxu0
        %842 = vdwg.mxu0
        %v843 = vadd.f32 %v421, %v794
        %v844 = vadd.f32 %v422, %v796
        %v845 = vadd.f32 %v423, %v837
        %v846 = vadd.f32 %v424, %v798
        %v847 = vadd.f32 %v425, %v800
        %v848 = vadd.f32 %v426, %v840
        %849 = vst [vmem:[#allocation2] sm:$0xff] %v843
        %850 = vst [vmem:[#allocation2 + $0x8] sm:$0xff] %v844
        %851 = vst [vmem:[#allocation2 + $0x10] sm:$0xff] %v845
        %852 = vst [vmem:[#allocation2 + $0x18] sm:$0xff] %v846
        %853 = vst [vmem:[#allocation2 + $0x20] sm:$0xff] %v847
        %854 = vst [vmem:[#allocation2 + $0x28] sm:$0xff] %v848
        // Predicated region
        $region63: #{table_model_forward.17} parent=53 // pred_check
          %p855 = pneg %p411
        $region64: #{table_model_forward.17} parent=53 // pred_check_branch
          %857 = sbr.rel (%p855) target = $region66
        $region65: #{table_model_forward.17} parent=53 // pred_region
          %v858 = vld [vmem:[#allocation2] sm:$0xff]
          %v859 = vld [vmem:[#allocation2 + $0x8] sm:$0xff]
          %v860 = vld [vmem:[#allocation2 + $0x10] sm:$0xff]
          %v861 = vld [vmem:[#allocation2 + $0x18] sm:$0xff]
          %v862 = vld [vmem:[#allocation2 + $0x20] sm:$0xff]
          %v863 = vld [vmem:[#allocation2 + $0x28] sm:$0xff]
          %v864 = vld [vmem:[%s406] sm:$0x7]
          %v866 = vlaneseq
          %v867 = vshrl.u32 %v866, 7
          %v868 = vsub.s32 0, %v867
          %v869 = vrot.slane %v864, %v868
          %v870 = vlaneseq
          %v871 = vshrl.u32 %v870, 7
          %v872 = vsub.s32 1, %v871
          %v873 = vrot.slane %v864, %v872
          %v874 = vlaneseq
          %v875 = vshrl.u32 %v874, 7
          %v876 = vsub.s32 2, %v875
          %v877 = vrot.slane %v864, %v876
          %v881 = vadd.f32 %v858, %v869
          %v882 = vadd.f32 %v859, %v873
          %v883 = vadd.f32 %v860, %v877
          %v884 = vadd.f32 %v861, %v869
          %v885 = vadd.f32 %v862, %v873
          %v886 = vadd.f32 %v863, %v877
          %v887 = vpack.c.bf16 %v884, %v881
          %v888 = vpack.c.bf16 %v885, %v882
          %v889 = vpack.c.bf16 %v886, %v883
          %v893 = vunpack.c.l.b16 %v887
          %v894 = vunpack.c.l.b16 %v888
          %v895 = vunpack.c.l.b16 %v889
          %v896 = vunpack.c.h.b16 %v887
          %v897 = vunpack.c.h.b16 %v888
          %v898 = vunpack.c.h.b16 %v889
          %v899 = vpack.c.b16 %v894, %v893
          %v900 = vpack.c.b16 %v895, %v895
          %v901 = vpack.c.b16 %v897, %v896
          %v902 = vpack.c.b16 %v898, %v898
          %907 = vst [vmem:[%s388] sm:$0xff] %v899
          %908 = vst [vmem:[%s388 + $0x8] sm:$0xf] %v900
          %909 = vst [vmem:[%s388 + $0xc] sm:$0xff] %v901
          %910 = vst [vmem:[%s388 + $0x14] sm:$0xf] %v902
        $region66: #{table_model_forward.17} parent=53 // pred_fallthru
          _
        %s911 = sand.u32 %s125, 1
        %s912 = sand.u32 %s125, 1
        %s913 = smul.addr %s912, 24
        %s914 = scalar_lea.vmem [#allocation4], %s913
        // Predicated region
        $region67: #{table_model_forward.17} parent=53 // pred_check
          %p915 = pneg %p135
        $region68: #{table_model_forward.17} parent=53 // pred_check_branch
          %917 = sbr.rel (%p915) target = $region70
        $region69: #{table_model_forward.17} parent=53 // pred_region
          %s918 = smul.u32 2, %s19
          %s919 = smul.u32 3, %s20
          %s920 = smul.addr %s918, 6
          %s921 = sadd.s32 %s919, %s920
          %s922 = smul.addr %s921, 4
          %s923 = scalar_lea.vmem %s3, %s922
          // Predicated region
          $region71: #{table_model_forward.17} parent=69 // pred_check
            _
          $region72: #{table_model_forward.17} parent=69 // pred_check_branch
            %925 = sbr.rel (0) target = $region74
          $region73: #{table_model_forward.17} parent=69 // pred_region
            // Predicated region
            $region75: #{table_model_forward.17} parent=73 // pred_check
              _
            $region76: #{table_model_forward.17} parent=73 // pred_check_branch
              %927 = sbr.rel (0) target = $region78
            $region77: #{table_model_forward.17} parent=73 // pred_region
              %s928 = scalar_lea.vmem %s914, 8 [#allocation4]
              %s929 = scalar_lea.vmem %s923, 8
              loop: start=0, step=1, limit=1
              $region79: #{table_model_forward.17} parent=77 // loop_pre_header
                _
              $region80: #{table_model_forward.17} parent=77 // loop_header
                %s931 = sphi 0, %s935
                %p932 = scmp.ge.s32.totalorder %s931, 1
                %s936 = sphi %s914, %s914
                %s937 = sphi %s923, %s923
              $region81: #{table_model_forward.17} parent=77 // loop_header_branch
                %934 = sbr.rel (%p932) target = $region85
              $region82: #{table_model_forward.17} parent=77 // loop_body
                %v938 = vld [vmem:[%s936] sm:$0xff]
                %939 = vst [vmem:[%s937] sm:$0xff] %v938
                %v940 = vld [vmem:[%s936 + $0xc] sm:$0xff]
                %941 = vst [vmem:[%s937 + $0x18] sm:$0xff] %v940
              $region83: #{table_model_forward.17} parent=77 // loop_footer
                %s935 = sadd.s32 1, %s931
              $region84: #{table_model_forward.17} parent=77 // loop_footer_branch
                %930 = sbr.rel target = $region80
              $region85: #{table_model_forward.17} parent=77 // loop_exit
                _
              loop: start=0, step=1, limit=1
              $region86: #{table_model_forward.17} parent=77 // loop_pre_header
                _
              $region87: #{table_model_forward.17} parent=77 // loop_header
                %s944 = sphi 0, %s948
                %p945 = scmp.ge.s32.totalorder %s944, 1
                %s949 = sphi %s928, %s928
                %s950 = sphi %s929, %s929
              $region88: #{table_model_forward.17} parent=77 // loop_header_branch
                %947 = sbr.rel (%p945) target = $region92
              $region89: #{table_model_forward.17} parent=77 // loop_body
                %v951 = vld [vmem:[%s949] sm:$0xf]
                %952 = vst [vmem:[%s950] sm:$0xf] %v951
                %v953 = vld [vmem:[%s949 + $0xc] sm:$0xf]
                %954 = vst [vmem:[%s950 + $0x18] sm:$0xf] %v953
              $region90: #{table_model_forward.17} parent=77 // loop_footer
                %s948 = sadd.s32 1, %s944
              $region91: #{table_model_forward.17} parent=77 // loop_footer_branch
                %943 = sbr.rel target = $region87
              $region92: #{table_model_forward.17} parent=77 // loop_exit
                _
            $region78: #{table_model_forward.17} parent=73 // pred_fallthru
              _
          $region74: #{table_model_forward.17} parent=69 // pred_fallthru
            _
          %955 = vnop
        $region70: #{table_model_forward.17} parent=53 // pred_fallthru
          _
      $region54: #{table_model_forward.17} parent=5 // pred_fallthru
        _
      %p956 = scmp.le.s32.totalorder 2, %s9
      // Predicated region
      $region93: #{table_model_forward.17} parent=5 // pred_check
        %p957 = pneg %p956
      $region94: #{table_model_forward.17} parent=5 // pred_check_branch
        %959 = sbr.rel (%p957) target = $region96
      $region95: #{table_model_forward.17} parent=5 // pred_region
        %s960 = ssub.s32 %s9, 2
        // Predicated region
        $region97: #{table_model_forward.17} parent=95 // pred_check
          %p961 = pneg %p141
        $region98: #{table_model_forward.17} parent=95 // pred_check_branch
          %963 = sbr.rel (%p961) target = $region100
        $region99: #{table_model_forward.17} parent=95 // pred_region
          %s964 = sand.u32 %s126, 1
          %s965 = sand.u32 %s126, 1
          %s966 = smul.addr %s965, 24
          %s967 = scalar_lea.vmem [#allocation4], %s966
        $region100: #{table_model_forward.17} parent=95 // pred_fallthru
          _
      $region96: #{table_model_forward.17} parent=5 // pred_fallthru
        _
    $region6: #{table_model_forward.17} parent=1 // loop_footer
      %s13 = sadd.s32 1, %s9
    $region7: #{table_model_forward.17} parent=1 // loop_footer_branch
      %8 = sbr.rel target = $region3
    $region8: #{table_model_forward.17} parent=1 // loop_exit
      _

</llo_original>
